<compile_context>
chip_gen: v7x
topology: tpu7x:2x2x1
jax: 0.10.0
libtpu: 0.0.40
codegen_flags: <defaults>
</compile_context>

<pallas_src>
import math
from functools import partial

import numpy as np
import jax
import jax.numpy as jnp
from jax import lax
from jax.experimental import pallas as pl
from jax.experimental.pallas import tpu as pltpu


# ------------------------------ fused kernel --------------------------------

def _caption_decoder_kernel(ids_ref, emb_ref, pe_ref, mem_ref,
                            attn_w_ref, attn_b_ref, attn_ow_ref, attn_ob_ref,
                            ffn_w1_ref, ffn_b1_ref, ffn_w2_ref, ffn_b2_ref,
                            ln_g_ref, ln_b_ref, fc_w_ref, fc_b_ref,
                            out_ref, *, nhead):
    # Per grid step: one batch element.  All weights are fully VMEM-resident.
    S = ids_ref.shape[0]
    V, D = emb_ref.shape
    num_layers = attn_w_ref.shape[0]
    dh = D // nhead
    scale = 1.0 / math.sqrt(dh)

    def layernorm(y, g, b):
        # LayerNorm with eps=1e-5 (PyTorch default, biased variance).
        mean = jnp.mean(y, axis=-1, keepdims=True)
        var = jnp.mean(jnp.square(y - mean), axis=-1, keepdims=True)
        return (y - mean) * lax.rsqrt(var + 1e-5) * g + b

    def softmax(s):
        s = s - jnp.max(s, axis=-1, keepdims=True)
        p = jnp.exp(s)
        # reciprocal goes to the EUP slot -> overlaps with VALU work
        return p * pl.reciprocal(jnp.sum(p, axis=-1, keepdims=True), approx=True)

    def attention(q, k, v):
        # q: (Lq, D), k/v: (Lk, D).  Per-head matmuls, unrolled in-kernel.
        heads = []
        for h in range(nhead):
            lo, hi = h * dh, (h + 1) * dh
            qh, kh, vh = q[:, lo:hi], k[:, lo:hi], v[:, lo:hi]
            s = lax.dot_general(qh, kh, (((1,), (1,)), ((), ())),
                                preferred_element_type=jnp.float32) * scale
            heads.append(jnp.dot(softmax(s), vh,
                                 preferred_element_type=jnp.float32))
        return jnp.concatenate(heads, axis=-1)            # (Lq, D)

    # --- embedding lookup (one-hot matmul) + positional encoding ---
    # TODO(synk): at realistic vocab sizes replace the O(S*V*D) one-hot matmul
    # with a scalar-prefetch / DMA row gather.
    ids = ids_ref[...]                                     # (S, 1) int32
    onehot = (ids == lax.broadcasted_iota(jnp.int32, (S, V), 1)).astype(jnp.float32)
    x = jnp.dot(onehot, emb_ref[...],
                preferred_element_type=jnp.float32) + pe_ref[...]
    mem = mem_ref[...]                                     # (Lm, D)

    for l in range(num_layers):
        # --- self-attention (fused QKV projection) ---
        qkv = (jnp.dot(x, attn_w_ref[l, 0], preferred_element_type=jnp.float32)
               + attn_b_ref[l, 0])                         # (S, 3D)
        sa = attention(qkv[:, :D], qkv[:, D:2 * D], qkv[:, 2 * D:])
        sa = (jnp.dot(sa, attn_ow_ref[l, 0], preferred_element_type=jnp.float32)
              + attn_ob_ref[l, 0])
        x = layernorm(x + sa, ln_g_ref[l, 0], ln_b_ref[l, 0])

        # --- cross-attention (fused KV projection from memory) ---
        cw = attn_w_ref[l, 1]                              # (D, 3D)
        cb = attn_b_ref[l, 1]                              # (1, 3D)
        q = jnp.dot(x, cw[:, :D], preferred_element_type=jnp.float32) + cb[:, :D]
        kv = jnp.dot(mem, cw[:, D:], preferred_element_type=jnp.float32) + cb[:, D:]
        ca = attention(q, kv[:, :D], kv[:, D:])
        ca = (jnp.dot(ca, attn_ow_ref[l, 1], preferred_element_type=jnp.float32)
              + attn_ob_ref[l, 1])
        x = layernorm(x + ca, ln_g_ref[l, 1], ln_b_ref[l, 1])

        # --- feed-forward (relu) ---
        h = jnp.maximum(
            jnp.dot(x, ffn_w1_ref[l], preferred_element_type=jnp.float32)
            + ffn_b1_ref[l], 0.0)
        h = jnp.dot(h, ffn_w2_ref[l], preferred_element_type=jnp.float32) + ffn_b2_ref[l]
        x = layernorm(x + h, ln_g_ref[l, 2], ln_b_ref[l, 2])

    # --- output vocabulary projection ---
    # TODO(synk): at realistic vocab sizes tile the (D, V) projection over V
    # (grid axis + f32 accumulator) and cap vmem_limit_bytes for v7x's 64 MiB.
    out_ref[...] = (jnp.dot(x, fc_w_ref[...], preferred_element_type=jnp.float32)
                    + fc_b_ref[...])


# ------------------------------ wrapper --------------------------------------

def _replicated(shape):
    # Full-array block with a constant index map (DMA'd into VMEM once).
    return pl.BlockSpec(shape, lambda b: (0,) * len(shape))


def caption_decoder_forward(tgt, memory, prepared, nhead):
    """tgt: (B, S) int32 token ids; memory: (B, Lm, D) -> logits (B, S, V)."""
    B, S = tgt.shape
    Lm, D = memory.shape[1], memory.shape[2]
    V = prepared["fc_w_t"].shape[1]

    ids = tgt.reshape(B * S, 1).astype(jnp.int32)          # rows in (b, s) order
    mem_flat = memory.reshape(B * Lm, D)                   # rows in (b, l) order
    pe = prepared["pe"][:S]                                # (S, D)

    args = (ids, prepared["embedding"], pe, mem_flat,
            prepared["attn_w"], prepared["attn_b"],
            prepared["attn_ow"], prepared["attn_ob"],
            prepared["ffn_w1"], prepared["ffn_b1"],
            prepared["ffn_w2"], prepared["ffn_b2"],
            prepared["ln_g"], prepared["ln_b"],
            prepared["fc_w_t"], prepared["fc_b"])

    in_specs = [
        pl.BlockSpec((S, 1), lambda b: (b, 0)),            # ids: per-batch rows
        _replicated(prepared["embedding"].shape),          # embedding table
        _replicated((S, D)),                               # positional encoding
        pl.BlockSpec((Lm, D), lambda b: (b, 0)),           # memory: per-batch rows
    ] + [_replicated(a.shape) for a in args[4:]]           # all weights/biases

    out_flat = pl.pallas_call(
        partial(_caption_decoder_kernel, nhead=nhead),
        out_shape=jax.ShapeDtypeStruct((B * S, V), jnp.float32),
        grid=(B,),
        in_specs=in_specs,
        out_specs=pl.BlockSpec((S, V), lambda b: (b, 0)),
        compiler_params=pltpu.CompilerParams(
            dimension_semantics=("parallel",)),
    )(*args)
    return out_flat.reshape(B, S, V)


# --------------------------- parameter setup ---------------------------------

def make_positional_encoding(max_len, d_model):
    position = jnp.arange(max_len, dtype=jnp.float32)[:, None]
    div_term = jnp.exp(jnp.arange(0, d_model, 2, dtype=jnp.float32)
                       * (-math.log(10000.0) / d_model))
    pe = jnp.zeros((max_len, d_model), dtype=jnp.float32)
    pe = pe.at[:, 0::2].set(jnp.sin(position * div_term))
    pe = pe.at[:, 1::2].set(jnp.cos(position * div_term))
    return pe[:, None, :]                                  # (max_len, 1, D)


def init_params(key, vocab_size, d_model, nhead, num_layers, dim_ff, max_len=64):
    n_keys = 3 + 12 * num_layers
    keys = iter(jax.random.split(key, n_keys))

    def nrm(shape, scale=0.02):
        return scale * jax.random.normal(next(keys), shape, dtype=jnp.float32)

    params = {
        "embedding": nrm((vocab_size, d_model), 1.0),
        "pe": make_positional_encoding(max_len, d_model),
        "fc_w": nrm((vocab_size, d_model)),
        "fc_b": nrm((vocab_size,)),
        "layers": [],
    }
    for _ in range(num_layers):
        def attn_params():
            return {
                "in_w": nrm((3 * d_model, d_model)),
                "in_b": nrm((3 * d_model,)),
                "out_w": nrm((d_model, d_model)),
                "out_b": nrm((d_model,)),
            }
        lp = {
            "self_attn": attn_params(),
            "cross_attn": attn_params(),
            "lin1_w": nrm((dim_ff, d_model)),
            "lin1_b": nrm((dim_ff,)),
            "lin2_w": nrm((d_model, dim_ff)),
            "lin2_b": nrm((d_model,)),
            "norm1_g": jnp.ones((d_model,), jnp.float32),
            "norm1_b": jnp.zeros((d_model,), jnp.float32),
            "norm2_g": jnp.ones((d_model,), jnp.float32),
            "norm2_b": jnp.zeros((d_model,), jnp.float32),
            "norm3_g": jnp.ones((d_model,), jnp.float32),
            "norm3_b": jnp.zeros((d_model,), jnp.float32),
        }
        params["layers"].append(lp)
    return params


def prepare_params(params):
    """One-time conversion to kernel layout: pre-transposed (K, N) weights,
    stacked per layer so the whole forward is a single pallas_call."""
    layers = params["layers"]

    def stack(fn):
        return jnp.stack([fn(lp) for lp in layers], axis=0)

    def row(v):
        return v.reshape(1, -1)

    return {
        "embedding": params["embedding"],                     # (V, D)
        "pe": params["pe"][:, 0, :],                          # (max_len, D)
        "fc_w_t": params["fc_w"].T,                           # (D, V)
        "fc_b": row(params["fc_b"]),                          # (1, V)
        "attn_w": stack(lambda lp: jnp.stack(
            [lp["self_attn"]["in_w"].T, lp["cross_attn"]["in_w"].T], 0)),   # (L,2,D,3D)
        "attn_b": stack(lambda lp: jnp.stack(
            [row(lp["self_attn"]["in_b"]), row(lp["cross_attn"]["in_b"])], 0)),
        "attn_ow": stack(lambda lp: jnp.stack(
            [lp["self_attn"]["out_w"].T, lp["cross_attn"]["out_w"].T], 0)),  # (L,2,D,D)
        "attn_ob": stack(lambda lp: jnp.stack(
            [row(lp["self_attn"]["out_b"]), row(lp["cross_attn"]["out_b"])], 0)),
        "ffn_w1": stack(lambda lp: lp["lin1_w"].T),           # (L, D, F)
        "ffn_b1": stack(lambda lp: row(lp["lin1_b"])),        # (L, 1, F)
        "ffn_w2": stack(lambda lp: lp["lin2_w"].T),           # (L, F, D)
        "ffn_b2": stack(lambda lp: row(lp["lin2_b"])),        # (L, 1, D)
        "ln_g": stack(lambda lp: jnp.stack(
            [row(lp["norm1_g"]), row(lp["norm2_g"]), row(lp["norm3_g"])], 0)),
        "ln_b": stack(lambda lp: jnp.stack(
            [row(lp["norm1_b"]), row(lp["norm2_b"]), row(lp["norm3_b"])], 0)),
    }


# ------------------------- pure-JAX reference --------------------------------

def reference_forward(tgt, memory, params, nhead):
    B, S = tgt.shape
    D = params["embedding"].shape[1]

    x = params["embedding"][tgt]                  # (B, S, D)
    x = jnp.transpose(x, (1, 0, 2)) + params["pe"][:S]
    mem = jnp.transpose(memory, (1, 0, 2))

    def mha(q, kv, p):
        Lq, Lk = q.shape[0], kv.shape[0]
        dh = D // nhead
        wq, wk, wv = p["in_w"][:D], p["in_w"][D:2 * D], p["in_w"][2 * D:]
        bq, bk, bv = p["in_b"][:D], p["in_b"][D:2 * D], p["in_b"][2 * D:]
        qp, kp, vp = q @ wq.T + bq, kv @ wk.T + bk, kv @ wv.T + bv

        def sh(t, L):
            return jnp.transpose(t.reshape(L, B, nhead, dh), (1, 2, 0, 3))

        qh, kh, vh = sh(qp, Lq), sh(kp, Lk), sh(vp, Lk)
        s = jnp.einsum("bhqd,bhkd->bhqk", qh, kh) / math.sqrt(dh)
        a = jax.nn.softmax(s, axis=-1)
        oh = jnp.einsum("bhqk,bhkd->bhqd", a, vh)
        o = jnp.transpose(oh, (2, 0, 1, 3)).reshape(Lq, B, D)
        return o @ p["out_w"].T + p["out_b"]

    def ln(y, g, b):
        mean = jnp.mean(y, axis=-1, keepdims=True)
        var = jnp.mean((y - mean) ** 2, axis=-1, keepdims=True)
        return (y - mean) / jnp.sqrt(var + 1e-5) * g + b

    for lp in params["layers"]:
        x = ln(x + mha(x, x, lp["self_attn"]), lp["norm1_g"], lp["norm1_b"])
        x = ln(x + mha(x, mem, lp["cross_attn"]), lp["norm2_g"], lp["norm2_b"])
        h = jnp.maximum(x @ lp["lin1_w"].T + lp["lin1_b"], 0.0)
        h = h @ lp["lin2_w"].T + lp["lin2_b"]
        x = ln(x + h, lp["norm3_g"], lp["norm3_b"])

    out = x @ params["fc_w"].T + params["fc_b"]   # (S, B, V)
    return jnp.transpose(out, (1, 0, 2))


# --------------------------------- main ---------------------------------------

if __name__ == "__main__":
    vocab_size, d_model, nhead, num_layers, dim_ff = 64, 32, 4, 2, 64
    B, S, Lm = 2, 8, 8

    key = jax.random.PRNGKey(0)
    pkey, tkey, mkey = jax.random.split(key, 3)
    params = init_params(pkey, vocab_size, d_model, nhead, num_layers, dim_ff)
    prepared = prepare_params(params)             # one-time layout conversion
    tgt = jax.random.randint(tkey, (B, S), 0, vocab_size, dtype=jnp.int32)
    memory = jax.random.normal(mkey, (B, Lm, d_model), dtype=jnp.float32)

    fwd = jax.jit(partial(caption_decoder_forward, nhead=nhead))
    out = jax.block_until_ready(fwd(tgt, memory, prepared))

    assert out.shape == (B, S, vocab_size)
    ref = reference_forward(tgt, memory, params, nhead)
    np.testing.assert_allclose(np.asarray(out), np.asarray(ref), rtol=2e-2, atol=2e-2)
    print("KERNEL_OK")
</pallas_src>

<mosaic_0001>
module attributes {stable_mosaic.version = 11 : i64} {
  func.func @_caption_decoder_kernel(%arg0: i32, %arg1: memref<8x1xi32, #tpu.memory_space<vmem>>, %arg2: memref<64x32xf32, #tpu.memory_space<vmem>>, %arg3: memref<8x32xf32, #tpu.memory_space<vmem>>, %arg4: memref<8x32xf32, #tpu.memory_space<vmem>>, %arg5: memref<2x2x32x96xf32, #tpu.memory_space<vmem>>, %arg6: memref<2x2x1x96xf32, #tpu.memory_space<vmem>>, %arg7: memref<2x2x32x32xf32, #tpu.memory_space<vmem>>, %arg8: memref<2x2x1x32xf32, #tpu.memory_space<vmem>>, %arg9: memref<2x32x64xf32, #tpu.memory_space<vmem>>, %arg10: memref<2x1x64xf32, #tpu.memory_space<vmem>>, %arg11: memref<2x64x32xf32, #tpu.memory_space<vmem>>, %arg12: memref<2x1x32xf32, #tpu.memory_space<vmem>>, %arg13: memref<2x3x1x32xf32, #tpu.memory_space<vmem>>, %arg14: memref<2x3x1x32xf32, #tpu.memory_space<vmem>>, %arg15: memref<32x64xf32, #tpu.memory_space<vmem>>, %arg16: memref<1x64xf32, #tpu.memory_space<vmem>>, %arg17: memref<8x64xf32, #tpu.memory_space<vmem>>) attributes {dimension_semantics = [#tpu.dimension_semantics<parallel>], iteration_bounds = array<i64: 2>, scalar_prefetch = 0 : i64, scratch_operands = 0 : i64, tpu.core_type = #tpu.core_type<tc>, window_params = [{transform_indices = @transform_0, window_bounds = array<i64: 8, 1>}, {pipeline_mode = #tpu.pipeline_mode<synchronous>, transform_indices = @transform_1, window_bounds = array<i64: 64, 32>}, {pipeline_mode = #tpu.pipeline_mode<synchronous>, transform_indices = @transform_2, window_bounds = array<i64: 8, 32>}, {transform_indices = @transform_3, window_bounds = array<i64: 8, 32>}, {pipeline_mode = #tpu.pipeline_mode<synchronous>, transform_indices = @transform_4, window_bounds = array<i64: 2, 2, 32, 96>}, {pipeline_mode = #tpu.pipeline_mode<synchronous>, transform_indices = @transform_5, window_bounds = array<i64: 2, 2, 1, 96>}, {pipeline_mode = #tpu.pipeline_mode<synchronous>, transform_indices = @transform_6, window_bounds = array<i64: 2, 2, 32, 32>}, {pipeline_mode = #tpu.pipeline_mode<synchronous>, transform_indices = @transform_7, window_bounds = array<i64: 2, 2, 1, 32>}, {pipeline_mode = #tpu.pipeline_mode<synchronous>, transform_indices = @transform_8, window_bounds = array<i64: 2, 32, 64>}, {pipeline_mode = #tpu.pipeline_mode<synchronous>, transform_indices = @transform_9, window_bounds = array<i64: 2, 1, 64>}, {pipeline_mode = #tpu.pipeline_mode<synchronous>, transform_indices = @transform_10, window_bounds = array<i64: 2, 64, 32>}, {pipeline_mode = #tpu.pipeline_mode<synchronous>, transform_indices = @transform_11, window_bounds = array<i64: 2, 1, 32>}, {pipeline_mode = #tpu.pipeline_mode<synchronous>, transform_indices = @transform_12, window_bounds = array<i64: 2, 3, 1, 32>}, {pipeline_mode = #tpu.pipeline_mode<synchronous>, transform_indices = @transform_13, window_bounds = array<i64: 2, 3, 1, 32>}, {pipeline_mode = #tpu.pipeline_mode<synchronous>, transform_indices = @transform_14, window_bounds = array<i64: 32, 64>}, {pipeline_mode = #tpu.pipeline_mode<synchronous>, transform_indices = @transform_15, window_bounds = array<i64: 1, 64>}, {transform_indices = @transform_16, window_bounds = array<i64: 8, 64>}]} {
    %c0 = arith.constant 0 : index
    %c0_0 = arith.constant 0 : index
    %0 = vector.load %arg1[%c0, %c0_0] : memref<8x1xi32, #tpu.memory_space<vmem>>, vector<8x1xi32>
    %1 = tpu.iota {dimensions = array<i32: 1>} : vector<8x64xi32>
    %2 = vector.broadcast %0 : vector<8x1xi32> to vector<8x64xi32>
    %3 = arith.cmpi eq, %2, %1 : vector<8x64xi32>
    %4 = arith.extui %3 : vector<8x64xi1> to vector<8x64xi32>
    %5 = arith.sitofp %4 : vector<8x64xi32> to vector<8x64xf32>
    %c0_1 = arith.constant 0 : index
    %c0_2 = arith.constant 0 : index
    %6 = vector.load %arg2[%c0_1, %c0_2] : memref<64x32xf32, #tpu.memory_space<vmem>>, vector<64x32xf32>
    %cst = arith.constant dense<0.000000e+00> : vector<8x32xf32>
    %7 = tpu.matmul %5, %6, %cst {dimension_numbers = #tpu.dot_dimension_numbers<[1], [0], [0], [1], [0, 0, 1, 1], [], []>} : vector<8x64xf32>, vector<64x32xf32>, vector<8x32xf32> -> vector<8x32xf32>
    %c0_3 = arith.constant 0 : index
    %c0_4 = arith.constant 0 : index
    %8 = vector.load %arg3[%c0_3, %c0_4] : memref<8x32xf32, #tpu.memory_space<vmem>>, vector<8x32xf32>
    %9 = arith.addf %7, %8 : vector<8x32xf32>
    %c0_5 = arith.constant 0 : index
    %c0_6 = arith.constant 0 : index
    %10 = vector.load %arg4[%c0_5, %c0_6] : memref<8x32xf32, #tpu.memory_space<vmem>>, vector<8x32xf32>
    %c0_7 = arith.constant 0 : index
    %c0_8 = arith.constant 0 : index
    %c0_9 = arith.constant 0 : index
    %c0_10 = arith.constant 0 : index
    %11 = vector.load %arg5[%c0_7, %c0_8, %c0_9, %c0_10] : memref<2x2x32x96xf32, #tpu.memory_space<vmem>>, vector<1x1x32x96xf32>
    %12 = vector.shape_cast %11 : vector<1x1x32x96xf32> to vector<32x96xf32>
    %cst_11 = arith.constant dense<0.000000e+00> : vector<8x96xf32>
    %13 = tpu.matmul %9, %12, %cst_11 {dimension_numbers = #tpu.dot_dimension_numbers<[1], [0], [0], [1], [0, 0, 1, 1], [], []>} : vector<8x32xf32>, vector<32x96xf32>, vector<8x96xf32> -> vector<8x96xf32>
    %c0_12 = arith.constant 0 : index
    %c0_13 = arith.constant 0 : index
    %c0_14 = arith.constant 0 : index
    %c0_15 = arith.constant 0 : index
    %14 = vector.load %arg6[%c0_12, %c0_13, %c0_14, %c0_15] : memref<2x2x1x96xf32, #tpu.memory_space<vmem>>, vector<1x1x1x96xf32>
    %15 = vector.shape_cast %14 : vector<1x1x1x96xf32> to vector<1x96xf32>
    %16 = vector.broadcast %15 : vector<1x96xf32> to vector<8x96xf32>
    %17 = arith.addf %13, %16 : vector<8x96xf32>
    %18 = vector.extract_strided_slice %17 {offsets = [0, 0], sizes = [8, 32], strides = [1, 1]} : vector<8x96xf32> to vector<8x32xf32>
    %19 = vector.extract_strided_slice %17 {offsets = [0, 32], sizes = [8, 32], strides = [1, 1]} : vector<8x96xf32> to vector<8x32xf32>
    %20 = vector.extract_strided_slice %17 {offsets = [0, 64], sizes = [8, 32], strides = [1, 1]} : vector<8x96xf32> to vector<8x32xf32>
    %21 = vector.extract_strided_slice %18 {offsets = [0, 0], sizes = [8, 8], strides = [1, 1]} : vector<8x32xf32> to vector<8x8xf32>
    %22 = vector.extract_strided_slice %19 {offsets = [0, 0], sizes = [8, 8], strides = [1, 1]} : vector<8x32xf32> to vector<8x8xf32>
    %23 = vector.extract_strided_slice %20 {offsets = [0, 0], sizes = [8, 8], strides = [1, 1]} : vector<8x32xf32> to vector<8x8xf32>
    %cst_16 = arith.constant dense<0.000000e+00> : vector<8x8xf32>
    %24 = tpu.matmul %21, %22, %cst_16 {dimension_numbers = #tpu.dot_dimension_numbers<[1], [1], [0], [0], [0, 0, 1, 0], [], []>} : vector<8x8xf32>, vector<8x8xf32>, vector<8x8xf32> -> vector<8x8xf32>
    %cst_17 = arith.constant 0.353553385 : f32
    %25 = vector.broadcast %cst_17 : f32 to vector<8x8xf32>
    %26 = arith.mulf %24, %25 : vector<8x8xf32>
    %cst_18 = arith.constant dense<0xFF800000> : vector<8xf32>
    %27 = vector.multi_reduction <maximumf>, %26, %cst_18 [1] : vector<8x8xf32> to vector<8xf32>
    %28 = vector.shape_cast %27 : vector<8xf32> to vector<8x1xf32>
    %29 = vector.broadcast %28 : vector<8x1xf32> to vector<8x8xf32>
    %30 = arith.subf %26, %29 : vector<8x8xf32>
    %31 = math.exp %30 : vector<8x8xf32>
    %cst_19 = arith.constant dense<0.000000e+00> : vector<8xf32>
    %32 = vector.multi_reduction <add>, %31, %cst_19 [1] : vector<8x8xf32> to vector<8xf32>
    %33 = vector.shape_cast %32 : vector<8xf32> to vector<8x1xf32>
    %34 = tpu.reciprocal %33 {approx = true} : vector<8x1xf32> -> vector<8x1xf32>
    %35 = vector.broadcast %34 : vector<8x1xf32> to vector<8x8xf32>
    %36 = arith.mulf %31, %35 : vector<8x8xf32>
    %cst_20 = arith.constant dense<0.000000e+00> : vector<8x8xf32>
    %37 = tpu.matmul %36, %23, %cst_20 {dimension_numbers = #tpu.dot_dimension_numbers<[1], [0], [0], [1], [0, 0, 1, 1], [], []>} : vector<8x8xf32>, vector<8x8xf32>, vector<8x8xf32> -> vector<8x8xf32>
    %38 = vector.extract_strided_slice %18 {offsets = [0, 8], sizes = [8, 8], strides = [1, 1]} : vector<8x32xf32> to vector<8x8xf32>
    %39 = vector.extract_strided_slice %19 {offsets = [0, 8], sizes = [8, 8], strides = [1, 1]} : vector<8x32xf32> to vector<8x8xf32>
    %40 = vector.extract_strided_slice %20 {offsets = [0, 8], sizes = [8, 8], strides = [1, 1]} : vector<8x32xf32> to vector<8x8xf32>
    %cst_21 = arith.constant dense<0.000000e+00> : vector<8x8xf32>
    %41 = tpu.matmul %38, %39, %cst_21 {dimension_numbers = #tpu.dot_dimension_numbers<[1], [1], [0], [0], [0, 0, 1, 0], [], []>} : vector<8x8xf32>, vector<8x8xf32>, vector<8x8xf32> -> vector<8x8xf32>
    %cst_22 = arith.constant 0.353553385 : f32
    %42 = vector.broadcast %cst_22 : f32 to vector<8x8xf32>
    %43 = arith.mulf %41, %42 : vector<8x8xf32>
    %cst_23 = arith.constant dense<0xFF800000> : vector<8xf32>
    %44 = vector.multi_reduction <maximumf>, %43, %cst_23 [1] : vector<8x8xf32> to vector<8xf32>
    %45 = vector.shape_cast %44 : vector<8xf32> to vector<8x1xf32>
    %46 = vector.broadcast %45 : vector<8x1xf32> to vector<8x8xf32>
    %47 = arith.subf %43, %46 : vector<8x8xf32>
    %48 = math.exp %47 : vector<8x8xf32>
    %cst_24 = arith.constant dense<0.000000e+00> : vector<8xf32>
    %49 = vector.multi_reduction <add>, %48, %cst_24 [1] : vector<8x8xf32> to vector<8xf32>
    %50 = vector.shape_cast %49 : vector<8xf32> to vector<8x1xf32>
    %51 = tpu.reciprocal %50 {approx = true} : vector<8x1xf32> -> vector<8x1xf32>
    %52 = vector.broadcast %51 : vector<8x1xf32> to vector<8x8xf32>
    %53 = arith.mulf %48, %52 : vector<8x8xf32>
    %cst_25 = arith.constant dense<0.000000e+00> : vector<8x8xf32>
    %54 = tpu.matmul %53, %40, %cst_25 {dimension_numbers = #tpu.dot_dimension_numbers<[1], [0], [0], [1], [0, 0, 1, 1], [], []>} : vector<8x8xf32>, vector<8x8xf32>, vector<8x8xf32> -> vector<8x8xf32>
    %55 = vector.extract_strided_slice %18 {offsets = [0, 16], sizes = [8, 8], strides = [1, 1]} : vector<8x32xf32> to vector<8x8xf32>
    %56 = vector.extract_strided_slice %19 {offsets = [0, 16], sizes = [8, 8], strides = [1, 1]} : vector<8x32xf32> to vector<8x8xf32>
    %57 = vector.extract_strided_slice %20 {offsets = [0, 16], sizes = [8, 8], strides = [1, 1]} : vector<8x32xf32> to vector<8x8xf32>
    %cst_26 = arith.constant dense<0.000000e+00> : vector<8x8xf32>
    %58 = tpu.matmul %55, %56, %cst_26 {dimension_numbers = #tpu.dot_dimension_numbers<[1], [1], [0], [0], [0, 0, 1, 0], [], []>} : vector<8x8xf32>, vector<8x8xf32>, vector<8x8xf32> -> vector<8x8xf32>
    %cst_27 = arith.constant 0.353553385 : f32
    %59 = vector.broadcast %cst_27 : f32 to vector<8x8xf32>
    %60 = arith.mulf %58, %59 : vector<8x8xf32>
    %cst_28 = arith.constant dense<0xFF800000> : vector<8xf32>
    %61 = vector.multi_reduction <maximumf>, %60, %cst_28 [1] : vector<8x8xf32> to vector<8xf32>
    %62 = vector.shape_cast %61 : vector<8xf32> to vector<8x1xf32>
    %63 = vector.broadcast %62 : vector<8x1xf32> to vector<8x8xf32>
    %64 = arith.subf %60, %63 : vector<8x8xf32>
    %65 = math.exp %64 : vector<8x8xf32>
    %cst_29 = arith.constant dense<0.000000e+00> : vector<8xf32>
    %66 = vector.multi_reduction <add>, %65, %cst_29 [1] : vector<8x8xf32> to vector<8xf32>
    %67 = vector.shape_cast %66 : vector<8xf32> to vector<8x1xf32>
    %68 = tpu.reciprocal %67 {approx = true} : vector<8x1xf32> -> vector<8x1xf32>
    %69 = vector.broadcast %68 : vector<8x1xf32> to vector<8x8xf32>
    %70 = arith.mulf %65, %69 : vector<8x8xf32>
    %cst_30 = arith.constant dense<0.000000e+00> : vector<8x8xf32>
    %71 = tpu.matmul %70, %57, %cst_30 {dimension_numbers = #tpu.dot_dimension_numbers<[1], [0], [0], [1], [0, 0, 1, 1], [], []>} : vector<8x8xf32>, vector<8x8xf32>, vector<8x8xf32> -> vector<8x8xf32>
    %72 = vector.extract_strided_slice %18 {offsets = [0, 24], sizes = [8, 8], strides = [1, 1]} : vector<8x32xf32> to vector<8x8xf32>
    %73 = vector.extract_strided_slice %19 {offsets = [0, 24], sizes = [8, 8], strides = [1, 1]} : vector<8x32xf32> to vector<8x8xf32>
    %74 = vector.extract_strided_slice %20 {offsets = [0, 24], sizes = [8, 8], strides = [1, 1]} : vector<8x32xf32> to vector<8x8xf32>
    %cst_31 = arith.constant dense<0.000000e+00> : vector<8x8xf32>
    %75 = tpu.matmul %72, %73, %cst_31 {dimension_numbers = #tpu.dot_dimension_numbers<[1], [1], [0], [0], [0, 0, 1, 0], [], []>} : vector<8x8xf32>, vector<8x8xf32>, vector<8x8xf32> -> vector<8x8xf32>
    %cst_32 = arith.constant 0.353553385 : f32
    %76 = vector.broadcast %cst_32 : f32 to vector<8x8xf32>
    %77 = arith.mulf %75, %76 : vector<8x8xf32>
    %cst_33 = arith.constant dense<0xFF800000> : vector<8xf32>
    %78 = vector.multi_reduction <maximumf>, %77, %cst_33 [1] : vector<8x8xf32> to vector<8xf32>
    %79 = vector.shape_cast %78 : vector<8xf32> to vector<8x1xf32>
    %80 = vector.broadcast %79 : vector<8x1xf32> to vector<8x8xf32>
    %81 = arith.subf %77, %80 : vector<8x8xf32>
    %82 = math.exp %81 : vector<8x8xf32>
    %cst_34 = arith.constant dense<0.000000e+00> : vector<8xf32>
    %83 = vector.multi_reduction <add>, %82, %cst_34 [1] : vector<8x8xf32> to vector<8xf32>
    %84 = vector.shape_cast %83 : vector<8xf32> to vector<8x1xf32>
    %85 = tpu.reciprocal %84 {approx = true} : vector<8x1xf32> -> vector<8x1xf32>
    %86 = vector.broadcast %85 : vector<8x1xf32> to vector<8x8xf32>
    %87 = arith.mulf %82, %86 : vector<8x8xf32>
    %cst_35 = arith.constant dense<0.000000e+00> : vector<8x8xf32>
    %88 = tpu.matmul %87, %74, %cst_35 {dimension_numbers = #tpu.dot_dimension_numbers<[1], [0], [0], [1], [0, 0, 1, 1], [], []>} : vector<8x8xf32>, vector<8x8xf32>, vector<8x8xf32> -> vector<8x8xf32>
    %89 = tpu.concatenate %37, %54, %71, %88 in 1 : vector<8x8xf32>, vector<8x8xf32>, vector<8x8xf32>, vector<8x8xf32> -> vector<8x32xf32>
    %c0_36 = arith.constant 0 : index
    %c0_37 = arith.constant 0 : index
    %c0_38 = arith.constant 0 : index
    %c0_39 = arith.constant 0 : index
    %90 = vector.load %arg7[%c0_36, %c0_37, %c0_38, %c0_39] : memref<2x2x32x32xf32, #tpu.memory_space<vmem>>, vector<1x1x32x32xf32>
    %91 = vector.shape_cast %90 : vector<1x1x32x32xf32> to vector<32x32xf32>
    %cst_40 = arith.constant dense<0.000000e+00> : vector<8x32xf32>
    %92 = tpu.matmul %89, %91, %cst_40 {dimension_numbers = #tpu.dot_dimension_numbers<[1], [0], [0], [1], [0, 0, 1, 1], [], []>} : vector<8x32xf32>, vector<32x32xf32>, vector<8x32xf32> -> vector<8x32xf32>
    %c0_41 = arith.constant 0 : index
    %c0_42 = arith.constant 0 : index
    %c0_43 = arith.constant 0 : index
    %c0_44 = arith.constant 0 : index
    %93 = vector.load %arg8[%c0_41, %c0_42, %c0_43, %c0_44] : memref<2x2x1x32xf32, #tpu.memory_space<vmem>>, vector<1x1x1x32xf32>
    %94 = vector.shape_cast %93 : vector<1x1x1x32xf32> to vector<1x32xf32>
    %95 = vector.broadcast %94 : vector<1x32xf32> to vector<8x32xf32>
    %96 = arith.addf %92, %95 : vector<8x32xf32>
    %97 = arith.addf %9, %96 : vector<8x32xf32>
    %c0_45 = arith.constant 0 : index
    %c0_46 = arith.constant 0 : index
    %c0_47 = arith.constant 0 : index
    %c0_48 = arith.constant 0 : index
    %98 = vector.load %arg13[%c0_45, %c0_46, %c0_47, %c0_48] : memref<2x3x1x32xf32, #tpu.memory_space<vmem>>, vector<1x1x1x32xf32>
    %99 = vector.shape_cast %98 : vector<1x1x1x32xf32> to vector<1x32xf32>
    %c0_49 = arith.constant 0 : index
    %c0_50 = arith.constant 0 : index
    %c0_51 = arith.constant 0 : index
    %c0_52 = arith.constant 0 : index
    %100 = vector.load %arg14[%c0_49, %c0_50, %c0_51, %c0_52] : memref<2x3x1x32xf32, #tpu.memory_space<vmem>>, vector<1x1x1x32xf32>
    %101 = vector.shape_cast %100 : vector<1x1x1x32xf32> to vector<1x32xf32>
    %cst_53 = arith.constant dense<0.000000e+00> : vector<8xf32>
    %102 = vector.multi_reduction <add>, %97, %cst_53 [1] : vector<8x32xf32> to vector<8xf32>
    %103 = vector.shape_cast %102 : vector<8xf32> to vector<8x1xf32>
    %cst_54 = arith.constant 3.200000e+01 : f32
    %104 = vector.broadcast %cst_54 : f32 to vector<8x1xf32>
    %105 = arith.divf %103, %104 : vector<8x1xf32>
    %106 = vector.broadcast %105 : vector<8x1xf32> to vector<8x32xf32>
    %107 = arith.subf %97, %106 : vector<8x32xf32>
    %108 = arith.mulf %107, %107 : vector<8x32xf32>
    %cst_55 = arith.constant dense<0.000000e+00> : vector<8xf32>
    %109 = vector.multi_reduction <add>, %108, %cst_55 [1] : vector<8x32xf32> to vector<8xf32>
    %110 = vector.shape_cast %109 : vector<8xf32> to vector<8x1xf32>
    %cst_56 = arith.constant 3.200000e+01 : f32
    %111 = vector.broadcast %cst_56 : f32 to vector<8x1xf32>
    %112 = arith.divf %110, %111 : vector<8x1xf32>
    %113 = vector.broadcast %105 : vector<8x1xf32> to vector<8x32xf32>
    %114 = arith.subf %97, %113 : vector<8x32xf32>
    %cst_57 = arith.constant 9.99999974E-6 : f32
    %115 = vector.broadcast %cst_57 : f32 to vector<8x1xf32>
    %116 = arith.addf %112, %115 : vector<8x1xf32>
    %117 = math.rsqrt %116 : vector<8x1xf32>
    %118 = vector.broadcast %117 : vector<8x1xf32> to vector<8x32xf32>
    %119 = arith.mulf %114, %118 : vector<8x32xf32>
    %120 = vector.broadcast %99 : vector<1x32xf32> to vector<8x32xf32>
    %121 = arith.mulf %119, %120 : vector<8x32xf32>
    %122 = vector.broadcast %101 : vector<1x32xf32> to vector<8x32xf32>
    %123 = arith.addf %121, %122 : vector<8x32xf32>
    %c0_58 = arith.constant 0 : index
    %c1 = arith.constant 1 : index
    %c0_59 = arith.constant 0 : index
    %c0_60 = arith.constant 0 : index
    %124 = vector.load %arg5[%c0_58, %c1, %c0_59, %c0_60] : memref<2x2x32x96xf32, #tpu.memory_space<vmem>>, vector<1x1x32x96xf32>
    %125 = vector.shape_cast %124 : vector<1x1x32x96xf32> to vector<32x96xf32>
    %c0_61 = arith.constant 0 : index
    %c1_62 = arith.constant 1 : index
    %c0_63 = arith.constant 0 : index
    %c0_64 = arith.constant 0 : index
    %126 = vector.load %arg6[%c0_61, %c1_62, %c0_63, %c0_64] : memref<2x2x1x96xf32, #tpu.memory_space<vmem>>, vector<1x1x1x96xf32>
    %127 = vector.shape_cast %126 : vector<1x1x1x96xf32> to vector<1x96xf32>
    %128 = vector.extract_strided_slice %125 {offsets = [0, 0], sizes = [32, 32], strides = [1, 1]} : vector<32x96xf32> to vector<32x32xf32>
    %cst_65 = arith.constant dense<0.000000e+00> : vector<8x32xf32>
    %129 = tpu.matmul %123, %128, %cst_65 {dimension_numbers = #tpu.dot_dimension_numbers<[1], [0], [0], [1], [0, 0, 1, 1], [], []>} : vector<8x32xf32>, vector<32x32xf32>, vector<8x32xf32> -> vector<8x32xf32>
    %130 = vector.extract_strided_slice %127 {offsets = [0, 0], sizes = [1, 32], strides = [1, 1]} : vector<1x96xf32> to vector<1x32xf32>
    %131 = vector.broadcast %130 : vector<1x32xf32> to vector<8x32xf32>
    %132 = arith.addf %129, %131 : vector<8x32xf32>
    %133 = vector.extract_strided_slice %125 {offsets = [0, 32], sizes = [32, 64], strides = [1, 1]} : vector<32x96xf32> to vector<32x64xf32>
    %cst_66 = arith.constant dense<0.000000e+00> : vector<8x64xf32>
    %134 = tpu.matmul %10, %133, %cst_66 {dimension_numbers = #tpu.dot_dimension_numbers<[1], [0], [0], [1], [0, 0, 1, 1], [], []>} : vector<8x32xf32>, vector<32x64xf32>, vector<8x64xf32> -> vector<8x64xf32>
    %135 = vector.extract_strided_slice %127 {offsets = [0, 32], sizes = [1, 64], strides = [1, 1]} : vector<1x96xf32> to vector<1x64xf32>
    %136 = vector.broadcast %135 : vector<1x64xf32> to vector<8x64xf32>
    %137 = arith.addf %134, %136 : vector<8x64xf32>
    %138 = vector.extract_strided_slice %137 {offsets = [0, 0], sizes = [8, 32], strides = [1, 1]} : vector<8x64xf32> to vector<8x32xf32>
    %139 = vector.extract_strided_slice %137 {offsets = [0, 32], sizes = [8, 32], strides = [1, 1]} : vector<8x64xf32> to vector<8x32xf32>
    %140 = vector.extract_strided_slice %132 {offsets = [0, 0], sizes = [8, 8], strides = [1, 1]} : vector<8x32xf32> to vector<8x8xf32>
    %141 = vector.extract_strided_slice %138 {offsets = [0, 0], sizes = [8, 8], strides = [1, 1]} : vector<8x32xf32> to vector<8x8xf32>
    %142 = vector.extract_strided_slice %139 {offsets = [0, 0], sizes = [8, 8], strides = [1, 1]} : vector<8x32xf32> to vector<8x8xf32>
    %cst_67 = arith.constant dense<0.000000e+00> : vector<8x8xf32>
    %143 = tpu.matmul %140, %141, %cst_67 {dimension_numbers = #tpu.dot_dimension_numbers<[1], [1], [0], [0], [0, 0, 1, 0], [], []>} : vector<8x8xf32>, vector<8x8xf32>, vector<8x8xf32> -> vector<8x8xf32>
    %cst_68 = arith.constant 0.353553385 : f32
    %144 = vector.broadcast %cst_68 : f32 to vector<8x8xf32>
    %145 = arith.mulf %143, %144 : vector<8x8xf32>
    %cst_69 = arith.constant dense<0xFF800000> : vector<8xf32>
    %146 = vector.multi_reduction <maximumf>, %145, %cst_69 [1] : vector<8x8xf32> to vector<8xf32>
    %147 = vector.shape_cast %146 : vector<8xf32> to vector<8x1xf32>
    %148 = vector.broadcast %147 : vector<8x1xf32> to vector<8x8xf32>
    %149 = arith.subf %145, %148 : vector<8x8xf32>
    %150 = math.exp %149 : vector<8x8xf32>
    %cst_70 = arith.constant dense<0.000000e+00> : vector<8xf32>
    %151 = vector.multi_reduction <add>, %150, %cst_70 [1] : vector<8x8xf32> to vector<8xf32>
    %152 = vector.shape_cast %151 : vector<8xf32> to vector<8x1xf32>
    %153 = tpu.reciprocal %152 {approx = true} : vector<8x1xf32> -> vector<8x1xf32>
    %154 = vector.broadcast %153 : vector<8x1xf32> to vector<8x8xf32>
    %155 = arith.mulf %150, %154 : vector<8x8xf32>
    %cst_71 = arith.constant dense<0.000000e+00> : vector<8x8xf32>
    %156 = tpu.matmul %155, %142, %cst_71 {dimension_numbers = #tpu.dot_dimension_numbers<[1], [0], [0], [1], [0, 0, 1, 1], [], []>} : vector<8x8xf32>, vector<8x8xf32>, vector<8x8xf32> -> vector<8x8xf32>
    %157 = vector.extract_strided_slice %132 {offsets = [0, 8], sizes = [8, 8], strides = [1, 1]} : vector<8x32xf32> to vector<8x8xf32>
    %158 = vector.extract_strided_slice %138 {offsets = [0, 8], sizes = [8, 8], strides = [1, 1]} : vector<8x32xf32> to vector<8x8xf32>
    %159 = vector.extract_strided_slice %139 {offsets = [0, 8], sizes = [8, 8], strides = [1, 1]} : vector<8x32xf32> to vector<8x8xf32>
    %cst_72 = arith.constant dense<0.000000e+00> : vector<8x8xf32>
    %160 = tpu.matmul %157, %158, %cst_72 {dimension_numbers = #tpu.dot_dimension_numbers<[1], [1], [0], [0], [0, 0, 1, 0], [], []>} : vector<8x8xf32>, vector<8x8xf32>, vector<8x8xf32> -> vector<8x8xf32>
    %cst_73 = arith.constant 0.353553385 : f32
    %161 = vector.broadcast %cst_73 : f32 to vector<8x8xf32>
    %162 = arith.mulf %160, %161 : vector<8x8xf32>
    %cst_74 = arith.constant dense<0xFF800000> : vector<8xf32>
    %163 = vector.multi_reduction <maximumf>, %162, %cst_74 [1] : vector<8x8xf32> to vector<8xf32>
    %164 = vector.shape_cast %163 : vector<8xf32> to vector<8x1xf32>
    %165 = vector.broadcast %164 : vector<8x1xf32> to vector<8x8xf32>
    %166 = arith.subf %162, %165 : vector<8x8xf32>
    %167 = math.exp %166 : vector<8x8xf32>
    %cst_75 = arith.constant dense<0.000000e+00> : vector<8xf32>
    %168 = vector.multi_reduction <add>, %167, %cst_75 [1] : vector<8x8xf32> to vector<8xf32>
    %169 = vector.shape_cast %168 : vector<8xf32> to vector<8x1xf32>
    %170 = tpu.reciprocal %169 {approx = true} : vector<8x1xf32> -> vector<8x1xf32>
    %171 = vector.broadcast %170 : vector<8x1xf32> to vector<8x8xf32>
    %172 = arith.mulf %167, %171 : vector<8x8xf32>
    %cst_76 = arith.constant dense<0.000000e+00> : vector<8x8xf32>
    %173 = tpu.matmul %172, %159, %cst_76 {dimension_numbers = #tpu.dot_dimension_numbers<[1], [0], [0], [1], [0, 0, 1, 1], [], []>} : vector<8x8xf32>, vector<8x8xf32>, vector<8x8xf32> -> vector<8x8xf32>
    %174 = vector.extract_strided_slice %132 {offsets = [0, 16], sizes = [8, 8], strides = [1, 1]} : vector<8x32xf32> to vector<8x8xf32>
    %175 = vector.extract_strided_slice %138 {offsets = [0, 16], sizes = [8, 8], strides = [1, 1]} : vector<8x32xf32> to vector<8x8xf32>
    %176 = vector.extract_strided_slice %139 {offsets = [0, 16], sizes = [8, 8], strides = [1, 1]} : vector<8x32xf32> to vector<8x8xf32>
    %cst_77 = arith.constant dense<0.000000e+00> : vector<8x8xf32>
    %177 = tpu.matmul %174, %175, %cst_77 {dimension_numbers = #tpu.dot_dimension_numbers<[1], [1], [0], [0], [0, 0, 1, 0], [], []>} : vector<8x8xf32>, vector<8x8xf32>, vector<8x8xf32> -> vector<8x8xf32>
    %cst_78 = arith.constant 0.353553385 : f32
    %178 = vector.broadcast %cst_78 : f32 to vector<8x8xf32>
    %179 = arith.mulf %177, %178 : vector<8x8xf32>
    %cst_79 = arith.constant dense<0xFF800000> : vector<8xf32>
    %180 = vector.multi_reduction <maximumf>, %179, %cst_79 [1] : vector<8x8xf32> to vector<8xf32>
    %181 = vector.shape_cast %180 : vector<8xf32> to vector<8x1xf32>
    %182 = vector.broadcast %181 : vector<8x1xf32> to vector<8x8xf32>
    %183 = arith.subf %179, %182 : vector<8x8xf32>
    %184 = math.exp %183 : vector<8x8xf32>
    %cst_80 = arith.constant dense<0.000000e+00> : vector<8xf32>
    %185 = vector.multi_reduction <add>, %184, %cst_80 [1] : vector<8x8xf32> to vector<8xf32>
    %186 = vector.shape_cast %185 : vector<8xf32> to vector<8x1xf32>
    %187 = tpu.reciprocal %186 {approx = true} : vector<8x1xf32> -> vector<8x1xf32>
    %188 = vector.broadcast %187 : vector<8x1xf32> to vector<8x8xf32>
    %189 = arith.mulf %184, %188 : vector<8x8xf32>
    %cst_81 = arith.constant dense<0.000000e+00> : vector<8x8xf32>
    %190 = tpu.matmul %189, %176, %cst_81 {dimension_numbers = #tpu.dot_dimension_numbers<[1], [0], [0], [1], [0, 0, 1, 1], [], []>} : vector<8x8xf32>, vector<8x8xf32>, vector<8x8xf32> -> vector<8x8xf32>
    %191 = vector.extract_strided_slice %132 {offsets = [0, 24], sizes = [8, 8], strides = [1, 1]} : vector<8x32xf32> to vector<8x8xf32>
    %192 = vector.extract_strided_slice %138 {offsets = [0, 24], sizes = [8, 8], strides = [1, 1]} : vector<8x32xf32> to vector<8x8xf32>
    %193 = vector.extract_strided_slice %139 {offsets = [0, 24], sizes = [8, 8], strides = [1, 1]} : vector<8x32xf32> to vector<8x8xf32>
    %cst_82 = arith.constant dense<0.000000e+00> : vector<8x8xf32>
    %194 = tpu.matmul %191, %192, %cst_82 {dimension_numbers = #tpu.dot_dimension_numbers<[1], [1], [0], [0], [0, 0, 1, 0], [], []>} : vector<8x8xf32>, vector<8x8xf32>, vector<8x8xf32> -> vector<8x8xf32>
    %cst_83 = arith.constant 0.353553385 : f32
    %195 = vector.broadcast %cst_83 : f32 to vector<8x8xf32>
    %196 = arith.mulf %194, %195 : vector<8x8xf32>
    %cst_84 = arith.constant dense<0xFF800000> : vector<8xf32>
    %197 = vector.multi_reduction <maximumf>, %196, %cst_84 [1] : vector<8x8xf32> to vector<8xf32>
    %198 = vector.shape_cast %197 : vector<8xf32> to vector<8x1xf32>
    %199 = vector.broadcast %198 : vector<8x1xf32> to vector<8x8xf32>
    %200 = arith.subf %196, %199 : vector<8x8xf32>
    %201 = math.exp %200 : vector<8x8xf32>
    %cst_85 = arith.constant dense<0.000000e+00> : vector<8xf32>
    %202 = vector.multi_reduction <add>, %201, %cst_85 [1] : vector<8x8xf32> to vector<8xf32>
    %203 = vector.shape_cast %202 : vector<8xf32> to vector<8x1xf32>
    %204 = tpu.reciprocal %203 {approx = true} : vector<8x1xf32> -> vector<8x1xf32>
    %205 = vector.broadcast %204 : vector<8x1xf32> to vector<8x8xf32>
    %206 = arith.mulf %201, %205 : vector<8x8xf32>
    %cst_86 = arith.constant dense<0.000000e+00> : vector<8x8xf32>
    %207 = tpu.matmul %206, %193, %cst_86 {dimension_numbers = #tpu.dot_dimension_numbers<[1], [0], [0], [1], [0, 0, 1, 1], [], []>} : vector<8x8xf32>, vector<8x8xf32>, vector<8x8xf32> -> vector<8x8xf32>
    %208 = tpu.concatenate %156, %173, %190, %207 in 1 : vector<8x8xf32>, vector<8x8xf32>, vector<8x8xf32>, vector<8x8xf32> -> vector<8x32xf32>
    %c0_87 = arith.constant 0 : index
    %c1_88 = arith.constant 1 : index
    %c0_89 = arith.constant 0 : index
    %c0_90 = arith.constant 0 : index
    %209 = vector.load %arg7[%c0_87, %c1_88, %c0_89, %c0_90] : memref<2x2x32x32xf32, #tpu.memory_space<vmem>>, vector<1x1x32x32xf32>
    %210 = vector.shape_cast %209 : vector<1x1x32x32xf32> to vector<32x32xf32>
    %cst_91 = arith.constant dense<0.000000e+00> : vector<8x32xf32>
    %211 = tpu.matmul %208, %210, %cst_91 {dimension_numbers = #tpu.dot_dimension_numbers<[1], [0], [0], [1], [0, 0, 1, 1], [], []>} : vector<8x32xf32>, vector<32x32xf32>, vector<8x32xf32> -> vector<8x32xf32>
    %c0_92 = arith.constant 0 : index
    %c1_93 = arith.constant 1 : index
    %c0_94 = arith.constant 0 : index
    %c0_95 = arith.constant 0 : index
    %212 = vector.load %arg8[%c0_92, %c1_93, %c0_94, %c0_95] : memref<2x2x1x32xf32, #tpu.memory_space<vmem>>, vector<1x1x1x32xf32>
    %213 = vector.shape_cast %212 : vector<1x1x1x32xf32> to vector<1x32xf32>
    %214 = vector.broadcast %213 : vector<1x32xf32> to vector<8x32xf32>
    %215 = arith.addf %211, %214 : vector<8x32xf32>
    %216 = arith.addf %123, %215 : vector<8x32xf32>
    %c0_96 = arith.constant 0 : index
    %c1_97 = arith.constant 1 : index
    %c0_98 = arith.constant 0 : index
    %c0_99 = arith.constant 0 : index
    %217 = vector.load %arg13[%c0_96, %c1_97, %c0_98, %c0_99] : memref<2x3x1x32xf32, #tpu.memory_space<vmem>>, vector<1x1x1x32xf32>
    %218 = vector.shape_cast %217 : vector<1x1x1x32xf32> to vector<1x32xf32>
    %c0_100 = arith.constant 0 : index
    %c1_101 = arith.constant 1 : index
    %c0_102 = arith.constant 0 : index
    %c0_103 = arith.constant 0 : index
    %219 = vector.load %arg14[%c0_100, %c1_101, %c0_102, %c0_103] : memref<2x3x1x32xf32, #tpu.memory_space<vmem>>, vector<1x1x1x32xf32>
    %220 = vector.shape_cast %219 : vector<1x1x1x32xf32> to vector<1x32xf32>
    %cst_104 = arith.constant dense<0.000000e+00> : vector<8xf32>
    %221 = vector.multi_reduction <add>, %216, %cst_104 [1] : vector<8x32xf32> to vector<8xf32>
    %222 = vector.shape_cast %221 : vector<8xf32> to vector<8x1xf32>
    %cst_105 = arith.constant 3.200000e+01 : f32
    %223 = vector.broadcast %cst_105 : f32 to vector<8x1xf32>
    %224 = arith.divf %222, %223 : vector<8x1xf32>
    %225 = vector.broadcast %224 : vector<8x1xf32> to vector<8x32xf32>
    %226 = arith.subf %216, %225 : vector<8x32xf32>
    %227 = arith.mulf %226, %226 : vector<8x32xf32>
    %cst_106 = arith.constant dense<0.000000e+00> : vector<8xf32>
    %228 = vector.multi_reduction <add>, %227, %cst_106 [1] : vector<8x32xf32> to vector<8xf32>
    %229 = vector.shape_cast %228 : vector<8xf32> to vector<8x1xf32>
    %cst_107 = arith.constant 3.200000e+01 : f32
    %230 = vector.broadcast %cst_107 : f32 to vector<8x1xf32>
    %231 = arith.divf %229, %230 : vector<8x1xf32>
    %232 = vector.broadcast %224 : vector<8x1xf32> to vector<8x32xf32>
    %233 = arith.subf %216, %232 : vector<8x32xf32>
    %cst_108 = arith.constant 9.99999974E-6 : f32
    %234 = vector.broadcast %cst_108 : f32 to vector<8x1xf32>
    %235 = arith.addf %231, %234 : vector<8x1xf32>
    %236 = math.rsqrt %235 : vector<8x1xf32>
    %237 = vector.broadcast %236 : vector<8x1xf32> to vector<8x32xf32>
    %238 = arith.mulf %233, %237 : vector<8x32xf32>
    %239 = vector.broadcast %218 : vector<1x32xf32> to vector<8x32xf32>
    %240 = arith.mulf %238, %239 : vector<8x32xf32>
    %241 = vector.broadcast %220 : vector<1x32xf32> to vector<8x32xf32>
    %242 = arith.addf %240, %241 : vector<8x32xf32>
    %c0_109 = arith.constant 0 : index
    %c0_110 = arith.constant 0 : index
    %c0_111 = arith.constant 0 : index
    %243 = vector.load %arg9[%c0_109, %c0_110, %c0_111] : memref<2x32x64xf32, #tpu.memory_space<vmem>>, vector<1x32x64xf32>
    %244 = vector.shape_cast %243 : vector<1x32x64xf32> to vector<32x64xf32>
    %cst_112 = arith.constant dense<0.000000e+00> : vector<8x64xf32>
    %245 = tpu.matmul %242, %244, %cst_112 {dimension_numbers = #tpu.dot_dimension_numbers<[1], [0], [0], [1], [0, 0, 1, 1], [], []>} : vector<8x32xf32>, vector<32x64xf32>, vector<8x64xf32> -> vector<8x64xf32>
    %c0_113 = arith.constant 0 : index
    %c0_114 = arith.constant 0 : index
    %c0_115 = arith.constant 0 : index
    %246 = vector.load %arg10[%c0_113, %c0_114, %c0_115] : memref<2x1x64xf32, #tpu.memory_space<vmem>>, vector<1x1x64xf32>
    %247 = vector.shape_cast %246 : vector<1x1x64xf32> to vector<1x64xf32>
    %248 = vector.broadcast %247 : vector<1x64xf32> to vector<8x64xf32>
    %249 = arith.addf %245, %248 : vector<8x64xf32>
    %cst_116 = arith.constant 0.000000e+00 : f32
    %250 = vector.broadcast %cst_116 : f32 to vector<8x64xf32>
    %251 = arith.maximumf %249, %250 : vector<8x64xf32>
    %c0_117 = arith.constant 0 : index
    %c0_118 = arith.constant 0 : index
    %c0_119 = arith.constant 0 : index
    %252 = vector.load %arg11[%c0_117, %c0_118, %c0_119] : memref<2x64x32xf32, #tpu.memory_space<vmem>>, vector<1x64x32xf32>
    %253 = vector.shape_cast %252 : vector<1x64x32xf32> to vector<64x32xf32>
    %cst_120 = arith.constant dense<0.000000e+00> : vector<8x32xf32>
    %254 = tpu.matmul %251, %253, %cst_120 {dimension_numbers = #tpu.dot_dimension_numbers<[1], [0], [0], [1], [0, 0, 1, 1], [], []>} : vector<8x64xf32>, vector<64x32xf32>, vector<8x32xf32> -> vector<8x32xf32>
    %c0_121 = arith.constant 0 : index
    %c0_122 = arith.constant 0 : index
    %c0_123 = arith.constant 0 : index
    %255 = vector.load %arg12[%c0_121, %c0_122, %c0_123] : memref<2x1x32xf32, #tpu.memory_space<vmem>>, vector<1x1x32xf32>
    %256 = vector.shape_cast %255 : vector<1x1x32xf32> to vector<1x32xf32>
    %257 = vector.broadcast %256 : vector<1x32xf32> to vector<8x32xf32>
    %258 = arith.addf %254, %257 : vector<8x32xf32>
    %259 = arith.addf %242, %258 : vector<8x32xf32>
    %c0_124 = arith.constant 0 : index
    %c2 = arith.constant 2 : index
    %c0_125 = arith.constant 0 : index
    %c0_126 = arith.constant 0 : index
    %260 = vector.load %arg13[%c0_124, %c2, %c0_125, %c0_126] : memref<2x3x1x32xf32, #tpu.memory_space<vmem>>, vector<1x1x1x32xf32>
    %261 = vector.shape_cast %260 : vector<1x1x1x32xf32> to vector<1x32xf32>
    %c0_127 = arith.constant 0 : index
    %c2_128 = arith.constant 2 : index
    %c0_129 = arith.constant 0 : index
    %c0_130 = arith.constant 0 : index
    %262 = vector.load %arg14[%c0_127, %c2_128, %c0_129, %c0_130] : memref<2x3x1x32xf32, #tpu.memory_space<vmem>>, vector<1x1x1x32xf32>
    %263 = vector.shape_cast %262 : vector<1x1x1x32xf32> to vector<1x32xf32>
    %cst_131 = arith.constant dense<0.000000e+00> : vector<8xf32>
    %264 = vector.multi_reduction <add>, %259, %cst_131 [1] : vector<8x32xf32> to vector<8xf32>
    %265 = vector.shape_cast %264 : vector<8xf32> to vector<8x1xf32>
    %cst_132 = arith.constant 3.200000e+01 : f32
    %266 = vector.broadcast %cst_132 : f32 to vector<8x1xf32>
    %267 = arith.divf %265, %266 : vector<8x1xf32>
    %268 = vector.broadcast %267 : vector<8x1xf32> to vector<8x32xf32>
    %269 = arith.subf %259, %268 : vector<8x32xf32>
    %270 = arith.mulf %269, %269 : vector<8x32xf32>
    %cst_133 = arith.constant dense<0.000000e+00> : vector<8xf32>
    %271 = vector.multi_reduction <add>, %270, %cst_133 [1] : vector<8x32xf32> to vector<8xf32>
    %272 = vector.shape_cast %271 : vector<8xf32> to vector<8x1xf32>
    %cst_134 = arith.constant 3.200000e+01 : f32
    %273 = vector.broadcast %cst_134 : f32 to vector<8x1xf32>
    %274 = arith.divf %272, %273 : vector<8x1xf32>
    %275 = vector.broadcast %267 : vector<8x1xf32> to vector<8x32xf32>
    %276 = arith.subf %259, %275 : vector<8x32xf32>
    %cst_135 = arith.constant 9.99999974E-6 : f32
    %277 = vector.broadcast %cst_135 : f32 to vector<8x1xf32>
    %278 = arith.addf %274, %277 : vector<8x1xf32>
    %279 = math.rsqrt %278 : vector<8x1xf32>
    %280 = vector.broadcast %279 : vector<8x1xf32> to vector<8x32xf32>
    %281 = arith.mulf %276, %280 : vector<8x32xf32>
    %282 = vector.broadcast %261 : vector<1x32xf32> to vector<8x32xf32>
    %283 = arith.mulf %281, %282 : vector<8x32xf32>
    %284 = vector.broadcast %263 : vector<1x32xf32> to vector<8x32xf32>
    %285 = arith.addf %283, %284 : vector<8x32xf32>
    %c1_136 = arith.constant 1 : index
    %c0_137 = arith.constant 0 : index
    %c0_138 = arith.constant 0 : index
    %c0_139 = arith.constant 0 : index
    %286 = vector.load %arg5[%c1_136, %c0_137, %c0_138, %c0_139] : memref<2x2x32x96xf32, #tpu.memory_space<vmem>>, vector<1x1x32x96xf32>
    %287 = vector.shape_cast %286 : vector<1x1x32x96xf32> to vector<32x96xf32>
    %cst_140 = arith.constant dense<0.000000e+00> : vector<8x96xf32>
    %288 = tpu.matmul %285, %287, %cst_140 {dimension_numbers = #tpu.dot_dimension_numbers<[1], [0], [0], [1], [0, 0, 1, 1], [], []>} : vector<8x32xf32>, vector<32x96xf32>, vector<8x96xf32> -> vector<8x96xf32>
    %c1_141 = arith.constant 1 : index
    %c0_142 = arith.constant 0 : index
    %c0_143 = arith.constant 0 : index
    %c0_144 = arith.constant 0 : index
    %289 = vector.load %arg6[%c1_141, %c0_142, %c0_143, %c0_144] : memref<2x2x1x96xf32, #tpu.memory_space<vmem>>, vector<1x1x1x96xf32>
    %290 = vector.shape_cast %289 : vector<1x1x1x96xf32> to vector<1x96xf32>
    %291 = vector.broadcast %290 : vector<1x96xf32> to vector<8x96xf32>
    %292 = arith.addf %288, %291 : vector<8x96xf32>
    %293 = vector.extract_strided_slice %292 {offsets = [0, 0], sizes = [8, 32], strides = [1, 1]} : vector<8x96xf32> to vector<8x32xf32>
    %294 = vector.extract_strided_slice %292 {offsets = [0, 32], sizes = [8, 32], strides = [1, 1]} : vector<8x96xf32> to vector<8x32xf32>
    %295 = vector.extract_strided_slice %292 {offsets = [0, 64], sizes = [8, 32], strides = [1, 1]} : vector<8x96xf32> to vector<8x32xf32>
    %296 = vector.extract_strided_slice %293 {offsets = [0, 0], sizes = [8, 8], strides = [1, 1]} : vector<8x32xf32> to vector<8x8xf32>
    %297 = vector.extract_strided_slice %294 {offsets = [0, 0], sizes = [8, 8], strides = [1, 1]} : vector<8x32xf32> to vector<8x8xf32>
    %298 = vector.extract_strided_slice %295 {offsets = [0, 0], sizes = [8, 8], strides = [1, 1]} : vector<8x32xf32> to vector<8x8xf32>
    %cst_145 = arith.constant dense<0.000000e+00> : vector<8x8xf32>
    %299 = tpu.matmul %296, %297, %cst_145 {dimension_numbers = #tpu.dot_dimension_numbers<[1], [1], [0], [0], [0, 0, 1, 0], [], []>} : vector<8x8xf32>, vector<8x8xf32>, vector<8x8xf32> -> vector<8x8xf32>
    %cst_146 = arith.constant 0.353553385 : f32
    %300 = vector.broadcast %cst_146 : f32 to vector<8x8xf32>
    %301 = arith.mulf %299, %300 : vector<8x8xf32>
    %cst_147 = arith.constant dense<0xFF800000> : vector<8xf32>
    %302 = vector.multi_reduction <maximumf>, %301, %cst_147 [1] : vector<8x8xf32> to vector<8xf32>
    %303 = vector.shape_cast %302 : vector<8xf32> to vector<8x1xf32>
    %304 = vector.broadcast %303 : vector<8x1xf32> to vector<8x8xf32>
    %305 = arith.subf %301, %304 : vector<8x8xf32>
    %306 = math.exp %305 : vector<8x8xf32>
    %cst_148 = arith.constant dense<0.000000e+00> : vector<8xf32>
    %307 = vector.multi_reduction <add>, %306, %cst_148 [1] : vector<8x8xf32> to vector<8xf32>
    %308 = vector.shape_cast %307 : vector<8xf32> to vector<8x1xf32>
    %309 = tpu.reciprocal %308 {approx = true} : vector<8x1xf32> -> vector<8x1xf32>
    %310 = vector.broadcast %309 : vector<8x1xf32> to vector<8x8xf32>
    %311 = arith.mulf %306, %310 : vector<8x8xf32>
    %cst_149 = arith.constant dense<0.000000e+00> : vector<8x8xf32>
    %312 = tpu.matmul %311, %298, %cst_149 {dimension_numbers = #tpu.dot_dimension_numbers<[1], [0], [0], [1], [0, 0, 1, 1], [], []>} : vector<8x8xf32>, vector<8x8xf32>, vector<8x8xf32> -> vector<8x8xf32>
    %313 = vector.extract_strided_slice %293 {offsets = [0, 8], sizes = [8, 8], strides = [1, 1]} : vector<8x32xf32> to vector<8x8xf32>
    %314 = vector.extract_strided_slice %294 {offsets = [0, 8], sizes = [8, 8], strides = [1, 1]} : vector<8x32xf32> to vector<8x8xf32>
    %315 = vector.extract_strided_slice %295 {offsets = [0, 8], sizes = [8, 8], strides = [1, 1]} : vector<8x32xf32> to vector<8x8xf32>
    %cst_150 = arith.constant dense<0.000000e+00> : vector<8x8xf32>
    %316 = tpu.matmul %313, %314, %cst_150 {dimension_numbers = #tpu.dot_dimension_numbers<[1], [1], [0], [0], [0, 0, 1, 0], [], []>} : vector<8x8xf32>, vector<8x8xf32>, vector<8x8xf32> -> vector<8x8xf32>
    %cst_151 = arith.constant 0.353553385 : f32
    %317 = vector.broadcast %cst_151 : f32 to vector<8x8xf32>
    %318 = arith.mulf %316, %317 : vector<8x8xf32>
    %cst_152 = arith.constant dense<0xFF800000> : vector<8xf32>
    %319 = vector.multi_reduction <maximumf>, %318, %cst_152 [1] : vector<8x8xf32> to vector<8xf32>
    %320 = vector.shape_cast %319 : vector<8xf32> to vector<8x1xf32>
    %321 = vector.broadcast %320 : vector<8x1xf32> to vector<8x8xf32>
    %322 = arith.subf %318, %321 : vector<8x8xf32>
    %323 = math.exp %322 : vector<8x8xf32>
    %cst_153 = arith.constant dense<0.000000e+00> : vector<8xf32>
    %324 = vector.multi_reduction <add>, %323, %cst_153 [1] : vector<8x8xf32> to vector<8xf32>
    %325 = vector.shape_cast %324 : vector<8xf32> to vector<8x1xf32>
    %326 = tpu.reciprocal %325 {approx = true} : vector<8x1xf32> -> vector<8x1xf32>
    %327 = vector.broadcast %326 : vector<8x1xf32> to vector<8x8xf32>
    %328 = arith.mulf %323, %327 : vector<8x8xf32>
    %cst_154 = arith.constant dense<0.000000e+00> : vector<8x8xf32>
    %329 = tpu.matmul %328, %315, %cst_154 {dimension_numbers = #tpu.dot_dimension_numbers<[1], [0], [0], [1], [0, 0, 1, 1], [], []>} : vector<8x8xf32>, vector<8x8xf32>, vector<8x8xf32> -> vector<8x8xf32>
    %330 = vector.extract_strided_slice %293 {offsets = [0, 16], sizes = [8, 8], strides = [1, 1]} : vector<8x32xf32> to vector<8x8xf32>
    %331 = vector.extract_strided_slice %294 {offsets = [0, 16], sizes = [8, 8], strides = [1, 1]} : vector<8x32xf32> to vector<8x8xf32>
    %332 = vector.extract_strided_slice %295 {offsets = [0, 16], sizes = [8, 8], strides = [1, 1]} : vector<8x32xf32> to vector<8x8xf32>
    %cst_155 = arith.constant dense<0.000000e+00> : vector<8x8xf32>
    %333 = tpu.matmul %330, %331, %cst_155 {dimension_numbers = #tpu.dot_dimension_numbers<[1], [1], [0], [0], [0, 0, 1, 0], [], []>} : vector<8x8xf32>, vector<8x8xf32>, vector<8x8xf32> -> vector<8x8xf32>
    %cst_156 = arith.constant 0.353553385 : f32
    %334 = vector.broadcast %cst_156 : f32 to vector<8x8xf32>
    %335 = arith.mulf %333, %334 : vector<8x8xf32>
    %cst_157 = arith.constant dense<0xFF800000> : vector<8xf32>
    %336 = vector.multi_reduction <maximumf>, %335, %cst_157 [1] : vector<8x8xf32> to vector<8xf32>
    %337 = vector.shape_cast %336 : vector<8xf32> to vector<8x1xf32>
    %338 = vector.broadcast %337 : vector<8x1xf32> to vector<8x8xf32>
    %339 = arith.subf %335, %338 : vector<8x8xf32>
    %340 = math.exp %339 : vector<8x8xf32>
    %cst_158 = arith.constant dense<0.000000e+00> : vector<8xf32>
    %341 = vector.multi_reduction <add>, %340, %cst_158 [1] : vector<8x8xf32> to vector<8xf32>
    %342 = vector.shape_cast %341 : vector<8xf32> to vector<8x1xf32>
    %343 = tpu.reciprocal %342 {approx = true} : vector<8x1xf32> -> vector<8x1xf32>
    %344 = vector.broadcast %343 : vector<8x1xf32> to vector<8x8xf32>
    %345 = arith.mulf %340, %344 : vector<8x8xf32>
    %cst_159 = arith.constant dense<0.000000e+00> : vector<8x8xf32>
    %346 = tpu.matmul %345, %332, %cst_159 {dimension_numbers = #tpu.dot_dimension_numbers<[1], [0], [0], [1], [0, 0, 1, 1], [], []>} : vector<8x8xf32>, vector<8x8xf32>, vector<8x8xf32> -> vector<8x8xf32>
    %347 = vector.extract_strided_slice %293 {offsets = [0, 24], sizes = [8, 8], strides = [1, 1]} : vector<8x32xf32> to vector<8x8xf32>
    %348 = vector.extract_strided_slice %294 {offsets = [0, 24], sizes = [8, 8], strides = [1, 1]} : vector<8x32xf32> to vector<8x8xf32>
    %349 = vector.extract_strided_slice %295 {offsets = [0, 24], sizes = [8, 8], strides = [1, 1]} : vector<8x32xf32> to vector<8x8xf32>
    %cst_160 = arith.constant dense<0.000000e+00> : vector<8x8xf32>
    %350 = tpu.matmul %347, %348, %cst_160 {dimension_numbers = #tpu.dot_dimension_numbers<[1], [1], [0], [0], [0, 0, 1, 0], [], []>} : vector<8x8xf32>, vector<8x8xf32>, vector<8x8xf32> -> vector<8x8xf32>
    %cst_161 = arith.constant 0.353553385 : f32
    %351 = vector.broadcast %cst_161 : f32 to vector<8x8xf32>
    %352 = arith.mulf %350, %351 : vector<8x8xf32>
    %cst_162 = arith.constant dense<0xFF800000> : vector<8xf32>
    %353 = vector.multi_reduction <maximumf>, %352, %cst_162 [1] : vector<8x8xf32> to vector<8xf32>
    %354 = vector.shape_cast %353 : vector<8xf32> to vector<8x1xf32>
    %355 = vector.broadcast %354 : vector<8x1xf32> to vector<8x8xf32>
    %356 = arith.subf %352, %355 : vector<8x8xf32>
    %357 = math.exp %356 : vector<8x8xf32>
    %cst_163 = arith.constant dense<0.000000e+00> : vector<8xf32>
    %358 = vector.multi_reduction <add>, %357, %cst_163 [1] : vector<8x8xf32> to vector<8xf32>
    %359 = vector.shape_cast %358 : vector<8xf32> to vector<8x1xf32>
    %360 = tpu.reciprocal %359 {approx = true} : vector<8x1xf32> -> vector<8x1xf32>
    %361 = vector.broadcast %360 : vector<8x1xf32> to vector<8x8xf32>
    %362 = arith.mulf %357, %361 : vector<8x8xf32>
    %cst_164 = arith.constant dense<0.000000e+00> : vector<8x8xf32>
    %363 = tpu.matmul %362, %349, %cst_164 {dimension_numbers = #tpu.dot_dimension_numbers<[1], [0], [0], [1], [0, 0, 1, 1], [], []>} : vector<8x8xf32>, vector<8x8xf32>, vector<8x8xf32> -> vector<8x8xf32>
    %364 = tpu.concatenate %312, %329, %346, %363 in 1 : vector<8x8xf32>, vector<8x8xf32>, vector<8x8xf32>, vector<8x8xf32> -> vector<8x32xf32>
    %c1_165 = arith.constant 1 : index
    %c0_166 = arith.constant 0 : index
    %c0_167 = arith.constant 0 : index
    %c0_168 = arith.constant 0 : index
    %365 = vector.load %arg7[%c1_165, %c0_166, %c0_167, %c0_168] : memref<2x2x32x32xf32, #tpu.memory_space<vmem>>, vector<1x1x32x32xf32>
    %366 = vector.shape_cast %365 : vector<1x1x32x32xf32> to vector<32x32xf32>
    %cst_169 = arith.constant dense<0.000000e+00> : vector<8x32xf32>
    %367 = tpu.matmul %364, %366, %cst_169 {dimension_numbers = #tpu.dot_dimension_numbers<[1], [0], [0], [1], [0, 0, 1, 1], [], []>} : vector<8x32xf32>, vector<32x32xf32>, vector<8x32xf32> -> vector<8x32xf32>
    %c1_170 = arith.constant 1 : index
    %c0_171 = arith.constant 0 : index
    %c0_172 = arith.constant 0 : index
    %c0_173 = arith.constant 0 : index
    %368 = vector.load %arg8[%c1_170, %c0_171, %c0_172, %c0_173] : memref<2x2x1x32xf32, #tpu.memory_space<vmem>>, vector<1x1x1x32xf32>
    %369 = vector.shape_cast %368 : vector<1x1x1x32xf32> to vector<1x32xf32>
    %370 = vector.broadcast %369 : vector<1x32xf32> to vector<8x32xf32>
    %371 = arith.addf %367, %370 : vector<8x32xf32>
    %372 = arith.addf %285, %371 : vector<8x32xf32>
    %c1_174 = arith.constant 1 : index
    %c0_175 = arith.constant 0 : index
    %c0_176 = arith.constant 0 : index
    %c0_177 = arith.constant 0 : index
    %373 = vector.load %arg13[%c1_174, %c0_175, %c0_176, %c0_177] : memref<2x3x1x32xf32, #tpu.memory_space<vmem>>, vector<1x1x1x32xf32>
    %374 = vector.shape_cast %373 : vector<1x1x1x32xf32> to vector<1x32xf32>
    %c1_178 = arith.constant 1 : index
    %c0_179 = arith.constant 0 : index
    %c0_180 = arith.constant 0 : index
    %c0_181 = arith.constant 0 : index
    %375 = vector.load %arg14[%c1_178, %c0_179, %c0_180, %c0_181] : memref<2x3x1x32xf32, #tpu.memory_space<vmem>>, vector<1x1x1x32xf32>
    %376 = vector.shape_cast %375 : vector<1x1x1x32xf32> to vector<1x32xf32>
    %cst_182 = arith.constant dense<0.000000e+00> : vector<8xf32>
    %377 = vector.multi_reduction <add>, %372, %cst_182 [1] : vector<8x32xf32> to vector<8xf32>
    %378 = vector.shape_cast %377 : vector<8xf32> to vector<8x1xf32>
    %cst_183 = arith.constant 3.200000e+01 : f32
    %379 = vector.broadcast %cst_183 : f32 to vector<8x1xf32>
    %380 = arith.divf %378, %379 : vector<8x1xf32>
    %381 = vector.broadcast %380 : vector<8x1xf32> to vector<8x32xf32>
    %382 = arith.subf %372, %381 : vector<8x32xf32>
    %383 = arith.mulf %382, %382 : vector<8x32xf32>
    %cst_184 = arith.constant dense<0.000000e+00> : vector<8xf32>
    %384 = vector.multi_reduction <add>, %383, %cst_184 [1] : vector<8x32xf32> to vector<8xf32>
    %385 = vector.shape_cast %384 : vector<8xf32> to vector<8x1xf32>
    %cst_185 = arith.constant 3.200000e+01 : f32
    %386 = vector.broadcast %cst_185 : f32 to vector<8x1xf32>
    %387 = arith.divf %385, %386 : vector<8x1xf32>
    %388 = vector.broadcast %380 : vector<8x1xf32> to vector<8x32xf32>
    %389 = arith.subf %372, %388 : vector<8x32xf32>
    %cst_186 = arith.constant 9.99999974E-6 : f32
    %390 = vector.broadcast %cst_186 : f32 to vector<8x1xf32>
    %391 = arith.addf %387, %390 : vector<8x1xf32>
    %392 = math.rsqrt %391 : vector<8x1xf32>
    %393 = vector.broadcast %392 : vector<8x1xf32> to vector<8x32xf32>
    %394 = arith.mulf %389, %393 : vector<8x32xf32>
    %395 = vector.broadcast %374 : vector<1x32xf32> to vector<8x32xf32>
    %396 = arith.mulf %394, %395 : vector<8x32xf32>
    %397 = vector.broadcast %376 : vector<1x32xf32> to vector<8x32xf32>
    %398 = arith.addf %396, %397 : vector<8x32xf32>
    %c1_187 = arith.constant 1 : index
    %c1_188 = arith.constant 1 : index
    %c0_189 = arith.constant 0 : index
    %c0_190 = arith.constant 0 : index
    %399 = vector.load %arg5[%c1_187, %c1_188, %c0_189, %c0_190] : memref<2x2x32x96xf32, #tpu.memory_space<vmem>>, vector<1x1x32x96xf32>
    %400 = vector.shape_cast %399 : vector<1x1x32x96xf32> to vector<32x96xf32>
    %c1_191 = arith.constant 1 : index
    %c1_192 = arith.constant 1 : index
    %c0_193 = arith.constant 0 : index
    %c0_194 = arith.constant 0 : index
    %401 = vector.load %arg6[%c1_191, %c1_192, %c0_193, %c0_194] : memref<2x2x1x96xf32, #tpu.memory_space<vmem>>, vector<1x1x1x96xf32>
    %402 = vector.shape_cast %401 : vector<1x1x1x96xf32> to vector<1x96xf32>
    %403 = vector.extract_strided_slice %400 {offsets = [0, 0], sizes = [32, 32], strides = [1, 1]} : vector<32x96xf32> to vector<32x32xf32>
    %cst_195 = arith.constant dense<0.000000e+00> : vector<8x32xf32>
    %404 = tpu.matmul %398, %403, %cst_195 {dimension_numbers = #tpu.dot_dimension_numbers<[1], [0], [0], [1], [0, 0, 1, 1], [], []>} : vector<8x32xf32>, vector<32x32xf32>, vector<8x32xf32> -> vector<8x32xf32>
    %405 = vector.extract_strided_slice %402 {offsets = [0, 0], sizes = [1, 32], strides = [1, 1]} : vector<1x96xf32> to vector<1x32xf32>
    %406 = vector.broadcast %405 : vector<1x32xf32> to vector<8x32xf32>
    %407 = arith.addf %404, %406 : vector<8x32xf32>
    %408 = vector.extract_strided_slice %400 {offsets = [0, 32], sizes = [32, 64], strides = [1, 1]} : vector<32x96xf32> to vector<32x64xf32>
    %cst_196 = arith.constant dense<0.000000e+00> : vector<8x64xf32>
    %409 = tpu.matmul %10, %408, %cst_196 {dimension_numbers = #tpu.dot_dimension_numbers<[1], [0], [0], [1], [0, 0, 1, 1], [], []>} : vector<8x32xf32>, vector<32x64xf32>, vector<8x64xf32> -> vector<8x64xf32>
    %410 = vector.extract_strided_slice %402 {offsets = [0, 32], sizes = [1, 64], strides = [1, 1]} : vector<1x96xf32> to vector<1x64xf32>
    %411 = vector.broadcast %410 : vector<1x64xf32> to vector<8x64xf32>
    %412 = arith.addf %409, %411 : vector<8x64xf32>
    %413 = vector.extract_strided_slice %412 {offsets = [0, 0], sizes = [8, 32], strides = [1, 1]} : vector<8x64xf32> to vector<8x32xf32>
    %414 = vector.extract_strided_slice %412 {offsets = [0, 32], sizes = [8, 32], strides = [1, 1]} : vector<8x64xf32> to vector<8x32xf32>
    %415 = vector.extract_strided_slice %407 {offsets = [0, 0], sizes = [8, 8], strides = [1, 1]} : vector<8x32xf32> to vector<8x8xf32>
    %416 = vector.extract_strided_slice %413 {offsets = [0, 0], sizes = [8, 8], strides = [1, 1]} : vector<8x32xf32> to vector<8x8xf32>
    %417 = vector.extract_strided_slice %414 {offsets = [0, 0], sizes = [8, 8], strides = [1, 1]} : vector<8x32xf32> to vector<8x8xf32>
    %cst_197 = arith.constant dense<0.000000e+00> : vector<8x8xf32>
    %418 = tpu.matmul %415, %416, %cst_197 {dimension_numbers = #tpu.dot_dimension_numbers<[1], [1], [0], [0], [0, 0, 1, 0], [], []>} : vector<8x8xf32>, vector<8x8xf32>, vector<8x8xf32> -> vector<8x8xf32>
    %cst_198 = arith.constant 0.353553385 : f32
    %419 = vector.broadcast %cst_198 : f32 to vector<8x8xf32>
    %420 = arith.mulf %418, %419 : vector<8x8xf32>
    %cst_199 = arith.constant dense<0xFF800000> : vector<8xf32>
    %421 = vector.multi_reduction <maximumf>, %420, %cst_199 [1] : vector<8x8xf32> to vector<8xf32>
    %422 = vector.shape_cast %421 : vector<8xf32> to vector<8x1xf32>
    %423 = vector.broadcast %422 : vector<8x1xf32> to vector<8x8xf32>
    %424 = arith.subf %420, %423 : vector<8x8xf32>
    %425 = math.exp %424 : vector<8x8xf32>
    %cst_200 = arith.constant dense<0.000000e+00> : vector<8xf32>
    %426 = vector.multi_reduction <add>, %425, %cst_200 [1] : vector<8x8xf32> to vector<8xf32>
    %427 = vector.shape_cast %426 : vector<8xf32> to vector<8x1xf32>
    %428 = tpu.reciprocal %427 {approx = true} : vector<8x1xf32> -> vector<8x1xf32>
    %429 = vector.broadcast %428 : vector<8x1xf32> to vector<8x8xf32>
    %430 = arith.mulf %425, %429 : vector<8x8xf32>
    %cst_201 = arith.constant dense<0.000000e+00> : vector<8x8xf32>
    %431 = tpu.matmul %430, %417, %cst_201 {dimension_numbers = #tpu.dot_dimension_numbers<[1], [0], [0], [1], [0, 0, 1, 1], [], []>} : vector<8x8xf32>, vector<8x8xf32>, vector<8x8xf32> -> vector<8x8xf32>
    %432 = vector.extract_strided_slice %407 {offsets = [0, 8], sizes = [8, 8], strides = [1, 1]} : vector<8x32xf32> to vector<8x8xf32>
    %433 = vector.extract_strided_slice %413 {offsets = [0, 8], sizes = [8, 8], strides = [1, 1]} : vector<8x32xf32> to vector<8x8xf32>
    %434 = vector.extract_strided_slice %414 {offsets = [0, 8], sizes = [8, 8], strides = [1, 1]} : vector<8x32xf32> to vector<8x8xf32>
    %cst_202 = arith.constant dense<0.000000e+00> : vector<8x8xf32>
    %435 = tpu.matmul %432, %433, %cst_202 {dimension_numbers = #tpu.dot_dimension_numbers<[1], [1], [0], [0], [0, 0, 1, 0], [], []>} : vector<8x8xf32>, vector<8x8xf32>, vector<8x8xf32> -> vector<8x8xf32>
    %cst_203 = arith.constant 0.353553385 : f32
    %436 = vector.broadcast %cst_203 : f32 to vector<8x8xf32>
    %437 = arith.mulf %435, %436 : vector<8x8xf32>
    %cst_204 = arith.constant dense<0xFF800000> : vector<8xf32>
    %438 = vector.multi_reduction <maximumf>, %437, %cst_204 [1] : vector<8x8xf32> to vector<8xf32>
    %439 = vector.shape_cast %438 : vector<8xf32> to vector<8x1xf32>
    %440 = vector.broadcast %439 : vector<8x1xf32> to vector<8x8xf32>
    %441 = arith.subf %437, %440 : vector<8x8xf32>
    %442 = math.exp %441 : vector<8x8xf32>
    %cst_205 = arith.constant dense<0.000000e+00> : vector<8xf32>
    %443 = vector.multi_reduction <add>, %442, %cst_205 [1] : vector<8x8xf32> to vector<8xf32>
    %444 = vector.shape_cast %443 : vector<8xf32> to vector<8x1xf32>
    %445 = tpu.reciprocal %444 {approx = true} : vector<8x1xf32> -> vector<8x1xf32>
    %446 = vector.broadcast %445 : vector<8x1xf32> to vector<8x8xf32>
    %447 = arith.mulf %442, %446 : vector<8x8xf32>
    %cst_206 = arith.constant dense<0.000000e+00> : vector<8x8xf32>
    %448 = tpu.matmul %447, %434, %cst_206 {dimension_numbers = #tpu.dot_dimension_numbers<[1], [0], [0], [1], [0, 0, 1, 1], [], []>} : vector<8x8xf32>, vector<8x8xf32>, vector<8x8xf32> -> vector<8x8xf32>
    %449 = vector.extract_strided_slice %407 {offsets = [0, 16], sizes = [8, 8], strides = [1, 1]} : vector<8x32xf32> to vector<8x8xf32>
    %450 = vector.extract_strided_slice %413 {offsets = [0, 16], sizes = [8, 8], strides = [1, 1]} : vector<8x32xf32> to vector<8x8xf32>
    %451 = vector.extract_strided_slice %414 {offsets = [0, 16], sizes = [8, 8], strides = [1, 1]} : vector<8x32xf32> to vector<8x8xf32>
    %cst_207 = arith.constant dense<0.000000e+00> : vector<8x8xf32>
    %452 = tpu.matmul %449, %450, %cst_207 {dimension_numbers = #tpu.dot_dimension_numbers<[1], [1], [0], [0], [0, 0, 1, 0], [], []>} : vector<8x8xf32>, vector<8x8xf32>, vector<8x8xf32> -> vector<8x8xf32>
    %cst_208 = arith.constant 0.353553385 : f32
    %453 = vector.broadcast %cst_208 : f32 to vector<8x8xf32>
    %454 = arith.mulf %452, %453 : vector<8x8xf32>
    %cst_209 = arith.constant dense<0xFF800000> : vector<8xf32>
    %455 = vector.multi_reduction <maximumf>, %454, %cst_209 [1] : vector<8x8xf32> to vector<8xf32>
    %456 = vector.shape_cast %455 : vector<8xf32> to vector<8x1xf32>
    %457 = vector.broadcast %456 : vector<8x1xf32> to vector<8x8xf32>
    %458 = arith.subf %454, %457 : vector<8x8xf32>
    %459 = math.exp %458 : vector<8x8xf32>
    %cst_210 = arith.constant dense<0.000000e+00> : vector<8xf32>
    %460 = vector.multi_reduction <add>, %459, %cst_210 [1] : vector<8x8xf32> to vector<8xf32>
    %461 = vector.shape_cast %460 : vector<8xf32> to vector<8x1xf32>
    %462 = tpu.reciprocal %461 {approx = true} : vector<8x1xf32> -> vector<8x1xf32>
    %463 = vector.broadcast %462 : vector<8x1xf32> to vector<8x8xf32>
    %464 = arith.mulf %459, %463 : vector<8x8xf32>
    %cst_211 = arith.constant dense<0.000000e+00> : vector<8x8xf32>
    %465 = tpu.matmul %464, %451, %cst_211 {dimension_numbers = #tpu.dot_dimension_numbers<[1], [0], [0], [1], [0, 0, 1, 1], [], []>} : vector<8x8xf32>, vector<8x8xf32>, vector<8x8xf32> -> vector<8x8xf32>
    %466 = vector.extract_strided_slice %407 {offsets = [0, 24], sizes = [8, 8], strides = [1, 1]} : vector<8x32xf32> to vector<8x8xf32>
    %467 = vector.extract_strided_slice %413 {offsets = [0, 24], sizes = [8, 8], strides = [1, 1]} : vector<8x32xf32> to vector<8x8xf32>
    %468 = vector.extract_strided_slice %414 {offsets = [0, 24], sizes = [8, 8], strides = [1, 1]} : vector<8x32xf32> to vector<8x8xf32>
    %cst_212 = arith.constant dense<0.000000e+00> : vector<8x8xf32>
    %469 = tpu.matmul %466, %467, %cst_212 {dimension_numbers = #tpu.dot_dimension_numbers<[1], [1], [0], [0], [0, 0, 1, 0], [], []>} : vector<8x8xf32>, vector<8x8xf32>, vector<8x8xf32> -> vector<8x8xf32>
    %cst_213 = arith.constant 0.353553385 : f32
    %470 = vector.broadcast %cst_213 : f32 to vector<8x8xf32>
    %471 = arith.mulf %469, %470 : vector<8x8xf32>
    %cst_214 = arith.constant dense<0xFF800000> : vector<8xf32>
    %472 = vector.multi_reduction <maximumf>, %471, %cst_214 [1] : vector<8x8xf32> to vector<8xf32>
    %473 = vector.shape_cast %472 : vector<8xf32> to vector<8x1xf32>
    %474 = vector.broadcast %473 : vector<8x1xf32> to vector<8x8xf32>
    %475 = arith.subf %471, %474 : vector<8x8xf32>
    %476 = math.exp %475 : vector<8x8xf32>
    %cst_215 = arith.constant dense<0.000000e+00> : vector<8xf32>
    %477 = vector.multi_reduction <add>, %476, %cst_215 [1] : vector<8x8xf32> to vector<8xf32>
    %478 = vector.shape_cast %477 : vector<8xf32> to vector<8x1xf32>
    %479 = tpu.reciprocal %478 {approx = true} : vector<8x1xf32> -> vector<8x1xf32>
    %480 = vector.broadcast %479 : vector<8x1xf32> to vector<8x8xf32>
    %481 = arith.mulf %476, %480 : vector<8x8xf32>
    %cst_216 = arith.constant dense<0.000000e+00> : vector<8x8xf32>
    %482 = tpu.matmul %481, %468, %cst_216 {dimension_numbers = #tpu.dot_dimension_numbers<[1], [0], [0], [1], [0, 0, 1, 1], [], []>} : vector<8x8xf32>, vector<8x8xf32>, vector<8x8xf32> -> vector<8x8xf32>
    %483 = tpu.concatenate %431, %448, %465, %482 in 1 : vector<8x8xf32>, vector<8x8xf32>, vector<8x8xf32>, vector<8x8xf32> -> vector<8x32xf32>
    %c1_217 = arith.constant 1 : index
    %c1_218 = arith.constant 1 : index
    %c0_219 = arith.constant 0 : index
    %c0_220 = arith.constant 0 : index
    %484 = vector.load %arg7[%c1_217, %c1_218, %c0_219, %c0_220] : memref<2x2x32x32xf32, #tpu.memory_space<vmem>>, vector<1x1x32x32xf32>
    %485 = vector.shape_cast %484 : vector<1x1x32x32xf32> to vector<32x32xf32>
    %cst_221 = arith.constant dense<0.000000e+00> : vector<8x32xf32>
    %486 = tpu.matmul %483, %485, %cst_221 {dimension_numbers = #tpu.dot_dimension_numbers<[1], [0], [0], [1], [0, 0, 1, 1], [], []>} : vector<8x32xf32>, vector<32x32xf32>, vector<8x32xf32> -> vector<8x32xf32>
    %c1_222 = arith.constant 1 : index
    %c1_223 = arith.constant 1 : index
    %c0_224 = arith.constant 0 : index
    %c0_225 = arith.constant 0 : index
    %487 = vector.load %arg8[%c1_222, %c1_223, %c0_224, %c0_225] : memref<2x2x1x32xf32, #tpu.memory_space<vmem>>, vector<1x1x1x32xf32>
    %488 = vector.shape_cast %487 : vector<1x1x1x32xf32> to vector<1x32xf32>
    %489 = vector.broadcast %488 : vector<1x32xf32> to vector<8x32xf32>
    %490 = arith.addf %486, %489 : vector<8x32xf32>
    %491 = arith.addf %398, %490 : vector<8x32xf32>
    %c1_226 = arith.constant 1 : index
    %c1_227 = arith.constant 1 : index
    %c0_228 = arith.constant 0 : index
    %c0_229 = arith.constant 0 : index
    %492 = vector.load %arg13[%c1_226, %c1_227, %c0_228, %c0_229] : memref<2x3x1x32xf32, #tpu.memory_space<vmem>>, vector<1x1x1x32xf32>
    %493 = vector.shape_cast %492 : vector<1x1x1x32xf32> to vector<1x32xf32>
    %c1_230 = arith.constant 1 : index
    %c1_231 = arith.constant 1 : index
    %c0_232 = arith.constant 0 : index
    %c0_233 = arith.constant 0 : index
    %494 = vector.load %arg14[%c1_230, %c1_231, %c0_232, %c0_233] : memref<2x3x1x32xf32, #tpu.memory_space<vmem>>, vector<1x1x1x32xf32>
    %495 = vector.shape_cast %494 : vector<1x1x1x32xf32> to vector<1x32xf32>
    %cst_234 = arith.constant dense<0.000000e+00> : vector<8xf32>
    %496 = vector.multi_reduction <add>, %491, %cst_234 [1] : vector<8x32xf32> to vector<8xf32>
    %497 = vector.shape_cast %496 : vector<8xf32> to vector<8x1xf32>
    %cst_235 = arith.constant 3.200000e+01 : f32
    %498 = vector.broadcast %cst_235 : f32 to vector<8x1xf32>
    %499 = arith.divf %497, %498 : vector<8x1xf32>
    %500 = vector.broadcast %499 : vector<8x1xf32> to vector<8x32xf32>
    %501 = arith.subf %491, %500 : vector<8x32xf32>
    %502 = arith.mulf %501, %501 : vector<8x32xf32>
    %cst_236 = arith.constant dense<0.000000e+00> : vector<8xf32>
    %503 = vector.multi_reduction <add>, %502, %cst_236 [1] : vector<8x32xf32> to vector<8xf32>
    %504 = vector.shape_cast %503 : vector<8xf32> to vector<8x1xf32>
    %cst_237 = arith.constant 3.200000e+01 : f32
    %505 = vector.broadcast %cst_237 : f32 to vector<8x1xf32>
    %506 = arith.divf %504, %505 : vector<8x1xf32>
    %507 = vector.broadcast %499 : vector<8x1xf32> to vector<8x32xf32>
    %508 = arith.subf %491, %507 : vector<8x32xf32>
    %cst_238 = arith.constant 9.99999974E-6 : f32
    %509 = vector.broadcast %cst_238 : f32 to vector<8x1xf32>
    %510 = arith.addf %506, %509 : vector<8x1xf32>
    %511 = math.rsqrt %510 : vector<8x1xf32>
    %512 = vector.broadcast %511 : vector<8x1xf32> to vector<8x32xf32>
    %513 = arith.mulf %508, %512 : vector<8x32xf32>
    %514 = vector.broadcast %493 : vector<1x32xf32> to vector<8x32xf32>
    %515 = arith.mulf %513, %514 : vector<8x32xf32>
    %516 = vector.broadcast %495 : vector<1x32xf32> to vector<8x32xf32>
    %517 = arith.addf %515, %516 : vector<8x32xf32>
    %c1_239 = arith.constant 1 : index
    %c0_240 = arith.constant 0 : index
    %c0_241 = arith.constant 0 : index
    %518 = vector.load %arg9[%c1_239, %c0_240, %c0_241] : memref<2x32x64xf32, #tpu.memory_space<vmem>>, vector<1x32x64xf32>
    %519 = vector.shape_cast %518 : vector<1x32x64xf32> to vector<32x64xf32>
    %cst_242 = arith.constant dense<0.000000e+00> : vector<8x64xf32>
    %520 = tpu.matmul %517, %519, %cst_242 {dimension_numbers = #tpu.dot_dimension_numbers<[1], [0], [0], [1], [0, 0, 1, 1], [], []>} : vector<8x32xf32>, vector<32x64xf32>, vector<8x64xf32> -> vector<8x64xf32>
    %c1_243 = arith.constant 1 : index
    %c0_244 = arith.constant 0 : index
    %c0_245 = arith.constant 0 : index
    %521 = vector.load %arg10[%c1_243, %c0_244, %c0_245] : memref<2x1x64xf32, #tpu.memory_space<vmem>>, vector<1x1x64xf32>
    %522 = vector.shape_cast %521 : vector<1x1x64xf32> to vector<1x64xf32>
    %523 = vector.broadcast %522 : vector<1x64xf32> to vector<8x64xf32>
    %524 = arith.addf %520, %523 : vector<8x64xf32>
    %cst_246 = arith.constant 0.000000e+00 : f32
    %525 = vector.broadcast %cst_246 : f32 to vector<8x64xf32>
    %526 = arith.maximumf %524, %525 : vector<8x64xf32>
    %c1_247 = arith.constant 1 : index
    %c0_248 = arith.constant 0 : index
    %c0_249 = arith.constant 0 : index
    %527 = vector.load %arg11[%c1_247, %c0_248, %c0_249] : memref<2x64x32xf32, #tpu.memory_space<vmem>>, vector<1x64x32xf32>
    %528 = vector.shape_cast %527 : vector<1x64x32xf32> to vector<64x32xf32>
    %cst_250 = arith.constant dense<0.000000e+00> : vector<8x32xf32>
    %529 = tpu.matmul %526, %528, %cst_250 {dimension_numbers = #tpu.dot_dimension_numbers<[1], [0], [0], [1], [0, 0, 1, 1], [], []>} : vector<8x64xf32>, vector<64x32xf32>, vector<8x32xf32> -> vector<8x32xf32>
    %c1_251 = arith.constant 1 : index
    %c0_252 = arith.constant 0 : index
    %c0_253 = arith.constant 0 : index
    %530 = vector.load %arg12[%c1_251, %c0_252, %c0_253] : memref<2x1x32xf32, #tpu.memory_space<vmem>>, vector<1x1x32xf32>
    %531 = vector.shape_cast %530 : vector<1x1x32xf32> to vector<1x32xf32>
    %532 = vector.broadcast %531 : vector<1x32xf32> to vector<8x32xf32>
    %533 = arith.addf %529, %532 : vector<8x32xf32>
    %534 = arith.addf %517, %533 : vector<8x32xf32>
    %c1_254 = arith.constant 1 : index
    %c2_255 = arith.constant 2 : index
    %c0_256 = arith.constant 0 : index
    %c0_257 = arith.constant 0 : index
    %535 = vector.load %arg13[%c1_254, %c2_255, %c0_256, %c0_257] : memref<2x3x1x32xf32, #tpu.memory_space<vmem>>, vector<1x1x1x32xf32>
    %536 = vector.shape_cast %535 : vector<1x1x1x32xf32> to vector<1x32xf32>
    %c1_258 = arith.constant 1 : index
    %c2_259 = arith.constant 2 : index
    %c0_260 = arith.constant 0 : index
    %c0_261 = arith.constant 0 : index
    %537 = vector.load %arg14[%c1_258, %c2_259, %c0_260, %c0_261] : memref<2x3x1x32xf32, #tpu.memory_space<vmem>>, vector<1x1x1x32xf32>
    %538 = vector.shape_cast %537 : vector<1x1x1x32xf32> to vector<1x32xf32>
    %cst_262 = arith.constant dense<0.000000e+00> : vector<8xf32>
    %539 = vector.multi_reduction <add>, %534, %cst_262 [1] : vector<8x32xf32> to vector<8xf32>
    %540 = vector.shape_cast %539 : vector<8xf32> to vector<8x1xf32>
    %cst_263 = arith.constant 3.200000e+01 : f32
    %541 = vector.broadcast %cst_263 : f32 to vector<8x1xf32>
    %542 = arith.divf %540, %541 : vector<8x1xf32>
    %543 = vector.broadcast %542 : vector<8x1xf32> to vector<8x32xf32>
    %544 = arith.subf %534, %543 : vector<8x32xf32>
    %545 = arith.mulf %544, %544 : vector<8x32xf32>
    %cst_264 = arith.constant dense<0.000000e+00> : vector<8xf32>
    %546 = vector.multi_reduction <add>, %545, %cst_264 [1] : vector<8x32xf32> to vector<8xf32>
    %547 = vector.shape_cast %546 : vector<8xf32> to vector<8x1xf32>
    %cst_265 = arith.constant 3.200000e+01 : f32
    %548 = vector.broadcast %cst_265 : f32 to vector<8x1xf32>
    %549 = arith.divf %547, %548 : vector<8x1xf32>
    %550 = vector.broadcast %542 : vector<8x1xf32> to vector<8x32xf32>
    %551 = arith.subf %534, %550 : vector<8x32xf32>
    %cst_266 = arith.constant 9.99999974E-6 : f32
    %552 = vector.broadcast %cst_266 : f32 to vector<8x1xf32>
    %553 = arith.addf %549, %552 : vector<8x1xf32>
    %554 = math.rsqrt %553 : vector<8x1xf32>
    %555 = vector.broadcast %554 : vector<8x1xf32> to vector<8x32xf32>
    %556 = arith.mulf %551, %555 : vector<8x32xf32>
    %557 = vector.broadcast %536 : vector<1x32xf32> to vector<8x32xf32>
    %558 = arith.mulf %556, %557 : vector<8x32xf32>
    %559 = vector.broadcast %538 : vector<1x32xf32> to vector<8x32xf32>
    %560 = arith.addf %558, %559 : vector<8x32xf32>
    %c0_267 = arith.constant 0 : index
    %c0_268 = arith.constant 0 : index
    %561 = vector.load %arg15[%c0_267, %c0_268] : memref<32x64xf32, #tpu.memory_space<vmem>>, vector<32x64xf32>
    %cst_269 = arith.constant dense<0.000000e+00> : vector<8x64xf32>
    %562 = tpu.matmul %560, %561, %cst_269 {dimension_numbers = #tpu.dot_dimension_numbers<[1], [0], [0], [1], [0, 0, 1, 1], [], []>} : vector<8x32xf32>, vector<32x64xf32>, vector<8x64xf32> -> vector<8x64xf32>
    %c0_270 = arith.constant 0 : index
    %c0_271 = arith.constant 0 : index
    %563 = vector.load %arg16[%c0_270, %c0_271] : memref<1x64xf32, #tpu.memory_space<vmem>>, vector<1x64xf32>
    %564 = vector.broadcast %563 : vector<1x64xf32> to vector<8x64xf32>
    %565 = arith.addf %562, %564 : vector<8x64xf32>
    %c0_272 = arith.constant 0 : index
    %c0_273 = arith.constant 0 : index
    %566 = vector.load %arg17[%c0_272, %c0_273] : memref<8x64xf32, #tpu.memory_space<vmem>>, vector<8x64xf32>
    tpu.vector_store %arg17[%c0_272, %c0_273], %565 {strides = array<i32>} : memref<8x64xf32, #tpu.memory_space<vmem>>, vector<8x64xf32>,
    return
  }
  func.func @transform_0(%arg0: i32) -> (i32, i32) {
    %c0_i32 = arith.constant 0 : i32
    %c0_i32_0 = arith.constant 0 : i32
    return %arg0, %c0_i32 : i32, i32
  }
  func.func @transform_1(%arg0: i32) -> (i32, i32) {
    %c0_i32 = arith.constant 0 : i32
    %c0_i32_0 = arith.constant 0 : i32
    %c0_i32_1 = arith.constant 0 : i32
    return %c0_i32, %c0_i32_0 : i32, i32
  }
  func.func @transform_2(%arg0: i32) -> (i32, i32) {
    %c0_i32 = arith.constant 0 : i32
    %c0_i32_0 = arith.constant 0 : i32
    %c0_i32_1 = arith.constant 0 : i32
    return %c0_i32, %c0_i32_0 : i32, i32
  }
  func.func @transform_3(%arg0: i32) -> (i32, i32) {
    %c0_i32 = arith.constant 0 : i32
    %c0_i32_0 = arith.constant 0 : i32
    return %arg0, %c0_i32 : i32, i32
  }
  func.func @transform_4(%arg0: i32) -> (i32, i32, i32, i32) {
    %c0_i32 = arith.constant 0 : i32
    %c0_i32_0 = arith.constant 0 : i32
    %c0_i32_1 = arith.constant 0 : i32
    %c0_i32_2 = arith.constant 0 : i32
    %c0_i32_3 = arith.constant 0 : i32
    return %c0_i32, %c0_i32_0, %c0_i32_1, %c0_i32_2 : i32, i32, i32, i32
  }
  func.func @transform_5(%arg0: i32) -> (i32, i32, i32, i32) {
    %c0_i32 = arith.constant 0 : i32
    %c0_i32_0 = arith.constant 0 : i32
    %c0_i32_1 = arith.constant 0 : i32
    %c0_i32_2 = arith.constant 0 : i32
    %c0_i32_3 = arith.constant 0 : i32
    return %c0_i32, %c0_i32_0, %c0_i32_1, %c0_i32_2 : i32, i32, i32, i32
  }
  func.func @transform_6(%arg0: i32) -> (i32, i32, i32, i32) {
    %c0_i32 = arith.constant 0 : i32
    %c0_i32_0 = arith.constant 0 : i32
    %c0_i32_1 = arith.constant 0 : i32
    %c0_i32_2 = arith.constant 0 : i32
    %c0_i32_3 = arith.constant 0 : i32
    return %c0_i32, %c0_i32_0, %c0_i32_1, %c0_i32_2 : i32, i32, i32, i32
  }
  func.func @transform_7(%arg0: i32) -> (i32, i32, i32, i32) {
    %c0_i32 = arith.constant 0 : i32
    %c0_i32_0 = arith.constant 0 : i32
    %c0_i32_1 = arith.constant 0 : i32
    %c0_i32_2 = arith.constant 0 : i32
    %c0_i32_3 = arith.constant 0 : i32
    return %c0_i32, %c0_i32_0, %c0_i32_1, %c0_i32_2 : i32, i32, i32, i32
  }
  func.func @transform_8(%arg0: i32) -> (i32, i32, i32) {
    %c0_i32 = arith.constant 0 : i32
    %c0_i32_0 = arith.constant 0 : i32
    %c0_i32_1 = arith.constant 0 : i32
    %c0_i32_2 = arith.constant 0 : i32
    return %c0_i32, %c0_i32_0, %c0_i32_1 : i32, i32, i32
  }
  func.func @transform_9(%arg0: i32) -> (i32, i32, i32) {
    %c0_i32 = arith.constant 0 : i32
    %c0_i32_0 = arith.constant 0 : i32
    %c0_i32_1 = arith.constant 0 : i32
    %c0_i32_2 = arith.constant 0 : i32
    return %c0_i32, %c0_i32_0, %c0_i32_1 : i32, i32, i32
  }
  func.func @transform_10(%arg0: i32) -> (i32, i32, i32) {
    %c0_i32 = arith.constant 0 : i32
    %c0_i32_0 = arith.constant 0 : i32
    %c0_i32_1 = arith.constant 0 : i32
    %c0_i32_2 = arith.constant 0 : i32
    return %c0_i32, %c0_i32_0, %c0_i32_1 : i32, i32, i32
  }
  func.func @transform_11(%arg0: i32) -> (i32, i32, i32) {
    %c0_i32 = arith.constant 0 : i32
    %c0_i32_0 = arith.constant 0 : i32
    %c0_i32_1 = arith.constant 0 : i32
    %c0_i32_2 = arith.constant 0 : i32
    return %c0_i32, %c0_i32_0, %c0_i32_1 : i32, i32, i32
  }
  func.func @transform_12(%arg0: i32) -> (i32, i32, i32, i32) {
    %c0_i32 = arith.constant 0 : i32
    %c0_i32_0 = arith.constant 0 : i32
    %c0_i32_1 = arith.constant 0 : i32
    %c0_i32_2 = arith.constant 0 : i32
    %c0_i32_3 = arith.constant 0 : i32
    return %c0_i32, %c0_i32_0, %c0_i32_1, %c0_i32_2 : i32, i32, i32, i32
  }
  func.func @transform_13(%arg0: i32) -> (i32, i32, i32, i32) {
    %c0_i32 = arith.constant 0 : i32
    %c0_i32_0 = arith.constant 0 : i32
    %c0_i32_1 = arith.constant 0 : i32
    %c0_i32_2 = arith.constant 0 : i32
    %c0_i32_3 = arith.constant 0 : i32
    return %c0_i32, %c0_i32_0, %c0_i32_1, %c0_i32_2 : i32, i32, i32, i32
  }
  func.func @transform_14(%arg0: i32) -> (i32, i32) {
    %c0_i32 = arith.constant 0 : i32
    %c0_i32_0 = arith.constant 0 : i32
    %c0_i32_1 = arith.constant 0 : i32
    return %c0_i32, %c0_i32_0 : i32, i32
  }
  func.func @transform_15(%arg0: i32) -> (i32, i32) {
    %c0_i32 = arith.constant 0 : i32
    %c0_i32_0 = arith.constant 0 : i32
    %c0_i32_1 = arith.constant 0 : i32
    return %c0_i32, %c0_i32_0 : i32, i32
  }
  func.func @transform_16(%arg0: i32) -> (i32, i32) {
    %c0_i32 = arith.constant 0 : i32
    %c0_i32_0 = arith.constant 0 : i32
    return %arg0, %c0_i32 : i32, i32
  }
}

</mosaic_0001>

<llo_original>
// kernel: caption_decoder_forward.1
$region0: #{caption_decoder_forward.1}
  #allocation0 [shape = 'u32[]', space=smem, size = 0x4, offset = 0x4, fixed_abs, tag = 'smem constant byte address 0x4 - core index']
  #allocation1 [shape = 'u32[144,128]{1,0:T(1,128)}', space=vmem, size = 0x12000, scoped, tag = 'internal scratch']
  %s0 = inlined_call_operand.vmem [shape: s32[16,1], index: 0, kind: input, shape index: {}]
  %s1 = inlined_call_operand.vmem [shape: f32[64,32], index: 1, kind: input, shape index: {}]
  %s2 = inlined_call_operand.vmem [shape: f32[8,32], index: 2, kind: input, shape index: {}]
  %s3 = inlined_call_operand.hbm [shape: f32[16,32], index: 3, kind: input, shape index: {}]
  %s4 = inlined_call_operand.vmem [shape: f32[2,2,32,96], index: 4, kind: input, shape index: {}]
  %s5 = inlined_call_operand.hbm [shape: f32[2,2,1,96], index: 5, kind: input, shape index: {}]
  %s6 = inlined_call_operand.vmem [shape: f32[2,2,32,32], index: 6, kind: input, shape index: {}]
  %s7 = inlined_call_operand.hbm [shape: f32[2,2,1,32], index: 7, kind: input, shape index: {}]
  %s8 = inlined_call_operand.vmem [shape: f32[2,32,64], index: 8, kind: input, shape index: {}]
  %s9 = inlined_call_operand.hbm [shape: f32[2,1,64], index: 9, kind: input, shape index: {}]
  %s10 = inlined_call_operand.vmem [shape: f32[2,64,32], index: 10, kind: input, shape index: {}]
  %s11 = inlined_call_operand.hbm [shape: f32[2,1,32], index: 11, kind: input, shape index: {}]
  %s12 = inlined_call_operand.vmem [shape: f32[2,3,1,32], index: 12, kind: input, shape index: {}]
  %s13 = inlined_call_operand.vmem [shape: f32[2,3,1,32], index: 13, kind: input, shape index: {}]
  %s14 = inlined_call_operand.hbm [shape: f32[32,64], index: 14, kind: input, shape index: {}]
  %s15 = inlined_call_operand.vmem [shape: f32[1,64], index: 15, kind: input, shape index: {}]
  %s16 = inlined_call_operand.hbm [shape: f32[16,64], index: 16, kind: output, shape index: {}]
  %s17 = sld [smem:[#allocation0]]
  $region121: #{caption_decoder_forward.1} parent=0
    _
  %s19 = ssub.s32 1, %s17
  %s20 = scalar_select 0, %s19, %s17
  $region1: #{caption_decoder_forward.1} parent=0
    #allocation2 [shape = 'u8[8192]{0}', space=vmem, size = 0x2000, scoped, tag = 'input window, operand 3']
    #allocation3 [shape = 's32[2]{0}', space=sflag, size = 0x8, scoped, tag = 'scoped memory for caption_decoder_forward.1']
    #allocation4 [shape = 's32[2]{0}', space=sflag, size = 0x8, scoped, tag = 'scoped memory for caption_decoder_forward.1']
    #allocation5 [shape = 'u8[2048]{0}', space=vmem, size = 0x800, scoped, tag = 'input window, operand 5, single buffered']
    #allocation6 [shape = 's32[1]{0}', space=sflag, size = 0x4, scoped, tag = 'scoped memory for caption_decoder_forward.1']
    #allocation7 [shape = 'u8[2048]{0}', space=vmem, size = 0x800, scoped, tag = 'input window, operand 7, single buffered']
    #allocation8 [shape = 'u8[1024]{0}', space=vmem, size = 0x400, scoped, tag = 'input window, operand 9, single buffered']
    #allocation9 [shape = 's32[1]{0}', space=sflag, size = 0x4, scoped, tag = 'scoped memory for caption_decoder_forward.1']
    #allocation10 [shape = 'u8[1024]{0}', space=vmem, size = 0x400, scoped, tag = 'input window, operand 11, single buffered']
    #allocation11 [shape = 'u8[16384]{0}', space=vmem, size = 0x4000, scoped, tag = 'input window, operand 14, single buffered']
    #allocation12 [shape = 's32[1]{0}', space=sflag, size = 0x4, scoped, tag = 'scoped memory for caption_decoder_forward.1']
    #allocation13 [shape = 'u8[8192]{0}', space=vmem, size = 0x2000, scoped, tag = 'output window, operand 0']
    %21 = vsyncpa [#allocation3], 0
    %s22 = scalar_lea.sflag [#allocation3], 1
    %23 = vsyncpa %s22, 0
    %24 = vsyncpa [#allocation6], 0
    %25 = vsyncpa [#allocation9], 0
    %26 = vsyncpa [#allocation12], 0
    %27 = vsyncpa [#allocation4], 0
    %s28 = scalar_lea.sflag [#allocation4], 1
    %29 = vsyncpa %s28, 0
    loop: start=0, step=1, limit=4
    $region2: #{caption_decoder_forward.1} parent=1 // loop_pre_header
      _
    $region3: #{caption_decoder_forward.1} parent=1 // loop_header
      %s31 = sphi 0, %s35
      %p32 = scmp.ge.s32.totalorder %s31, 4
      %s41 = sphi 0, %s43
      %s44 = sphi 0, %s41
      %s45 = sphi 0, %s44
      %s61 = sphi 0, %s45
      %s65 = sphi 0, %s65
      %s67 = sphi 0, %s65
      %s68 = sphi 0, %s67
      %s82 = sphi 0, %s68
      %s86 = sphi 0, %s86
      %s88 = sphi 0, %s86
      %s89 = sphi 0, %s88
      %s103 = sphi 0, %s89
      %s109 = sphi 0, %s111
      %s112 = sphi 0, %s109
      %s113 = sphi 0, %s112
      %s129 = sphi 0, %s113
      %s133 = sphi 0, %s133
      %s135 = sphi 0, %s133
      %s136 = sphi 0, %s135
      %s150 = sphi 0, %s136
      %s154 = sphi 0, %s154
      %s156 = sphi 0, %s154
      %s157 = sphi 0, %s156
      %s171 = sphi 0, %s157
      %s175 = sphi 0, %s175
      %s177 = sphi 0, %s175
      %s178 = sphi 0, %s177
      %s192 = sphi 0, %s178
      %s196 = sphi 0, %s196
      %s198 = sphi 0, %s196
      %s199 = sphi 0, %s198
      %s213 = sphi 0, %s199
      %s217 = sphi 0, %s217
      %s219 = sphi 0, %s217
      %s220 = sphi 0, %s219
      %s234 = sphi 0, %s220
      %s238 = sphi 0, %s238
      %s240 = sphi 0, %s238
      %s241 = sphi 0, %s240
      %s255 = sphi 0, %s241
      %s259 = sphi 0, %s259
      %s261 = sphi 0, %s259
      %s262 = sphi 0, %s261
      %s276 = sphi 0, %s262
      %s280 = sphi 0, %s280
      %s282 = sphi 0, %s280
      %s283 = sphi 0, %s282
      %s297 = sphi 0, %s283
      %s301 = sphi 0, %s301
      %s303 = sphi 0, %s301
      %s304 = sphi 0, %s303
      %s318 = sphi 0, %s304
      %s322 = sphi 0, %s322
      %s324 = sphi 0, %s322
      %s325 = sphi 0, %s324
      %s339 = sphi 0, %s325
      %s343 = sphi 0, %s343
      %s345 = sphi 0, %s343
      %s346 = sphi 0, %s345
      %s360 = sphi 0, %s346
      %s364 = sphi 0, %s364
      %s366 = sphi 0, %s364
      %s367 = sphi 0, %s366
      %s381 = sphi 0, %s367
      %s387 = sphi 0, %s389
      %s390 = sphi 0, %s387
      %s391 = sphi 0, %s390
      %s407 = sphi 0, %s391
    $region4: #{caption_decoder_forward.1} parent=1 // loop_header_branch
      %34 = sbr.rel (%p32) target = $region8
    $region5: #{caption_decoder_forward.1} parent=1 // loop_body
      %s36 = ssub.s32 %s31, 1
      %s37 = ssub.s32 %s31, 2
      %s38 = sadd.s32 %s31, 1
      %s39 = ssub.s32 %s31, %s38
      %p40 = scmp.eq.s32.totalorder %s39, 0
      %s42 = sadd.s32 %s41, 1
      %s43 = scalar_select %p40, %s41, %s42
      %p46 = pneg %p40
      %p47 = scmp.eq.s32.totalorder %s31, 1
      %p48 = por %p46, %p47
      %p49 = scmp.ne.s32.totalorder %s41, %s44
      %p50 = scmp.eq.s32.totalorder %s31, 0
      %p51 = por %p49, %p50
      %p52 = scmp.ne.s32.totalorder %s41, %s44
      %p53 = scmp.eq.s32.totalorder %s36, 1
      %p54 = por %p52, %p53
      %p55 = scmp.ne.s32.totalorder %s44, %s45
      %p56 = scmp.eq.s32.totalorder %s36, 0
      %p57 = por %p55, %p56
      %p58 = scmp.ne.s32.totalorder %s44, %s45
      %p59 = scmp.eq.s32.totalorder %s37, 1
      %p60 = por %p58, %p59
      %p62 = scmp.ne.s32.totalorder %s45, %s61
      %p63 = scmp.eq.s32.totalorder %s37, 0
      %p64 = por %p62, %p63
      %s66 = sadd.s32 %s65, 1
      %p69 = scmp.eq.s32.totalorder %s31, 1
      %p70 = scmp.ne.s32.totalorder %s65, %s67
      %p71 = scmp.eq.s32.totalorder %s31, 0
      %p72 = por %p70, %p71
      %p73 = scmp.ne.s32.totalorder %s65, %s67
      %p74 = scmp.eq.s32.totalorder %s36, 1
      %p75 = por %p73, %p74
      %p76 = scmp.ne.s32.totalorder %s67, %s68
      %p77 = scmp.eq.s32.totalorder %s36, 0
      %p78 = por %p76, %p77
      %p79 = scmp.ne.s32.totalorder %s67, %s68
      %p80 = scmp.eq.s32.totalorder %s37, 1
      %p81 = por %p79, %p80
      %p83 = scmp.ne.s32.totalorder %s68, %s82
      %p84 = scmp.eq.s32.totalorder %s37, 0
      %p85 = por %p83, %p84
      %s87 = sadd.s32 %s86, 1
      %p90 = scmp.eq.s32.totalorder %s31, 1
      %p91 = scmp.ne.s32.totalorder %s86, %s88
      %p92 = scmp.eq.s32.totalorder %s31, 0
      %p93 = por %p91, %p92
      %p94 = scmp.ne.s32.totalorder %s86, %s88
      %p95 = scmp.eq.s32.totalorder %s36, 1
      %p96 = por %p94, %p95
      %p97 = scmp.ne.s32.totalorder %s88, %s89
      %p98 = scmp.eq.s32.totalorder %s36, 0
      %p99 = por %p97, %p98
      %p100 = scmp.ne.s32.totalorder %s88, %s89
      %p101 = scmp.eq.s32.totalorder %s37, 1
      %p102 = por %p100, %p101
      %p104 = scmp.ne.s32.totalorder %s89, %s103
      %p105 = scmp.eq.s32.totalorder %s37, 0
      %p106 = por %p104, %p105
      %s107 = ssub.s32 %s31, %s38
      %p108 = scmp.eq.s32.totalorder %s107, 0
      %s110 = sadd.s32 %s109, 1
      %s111 = scalar_select %p108, %s109, %s110
      %p114 = pneg %p108
      %p115 = scmp.eq.s32.totalorder %s31, 1
      %p116 = por %p114, %p115
      %p117 = scmp.ne.s32.totalorder %s109, %s112
      %p118 = scmp.eq.s32.totalorder %s31, 0
      %p119 = por %p117, %p118
      %p120 = scmp.ne.s32.totalorder %s109, %s112
      %p121 = scmp.eq.s32.totalorder %s36, 1
      %p122 = por %p120, %p121
      %p123 = scmp.ne.s32.totalorder %s112, %s113
      %p124 = scmp.eq.s32.totalorder %s36, 0
      %p125 = por %p123, %p124
      %p126 = scmp.ne.s32.totalorder %s112, %s113
      %p127 = scmp.eq.s32.totalorder %s37, 1
      %p128 = por %p126, %p127
      %p130 = scmp.ne.s32.totalorder %s113, %s129
      %p131 = scmp.eq.s32.totalorder %s37, 0
      %p132 = por %p130, %p131
      %s134 = sadd.s32 %s133, 1
      %p137 = scmp.eq.s32.totalorder %s31, 1
      %p138 = scmp.ne.s32.totalorder %s133, %s135
      %p139 = scmp.eq.s32.totalorder %s31, 0
      %p140 = por %p138, %p139
      %p141 = scmp.ne.s32.totalorder %s133, %s135
      %p142 = scmp.eq.s32.totalorder %s36, 1
      %p143 = por %p141, %p142
      %p144 = scmp.ne.s32.totalorder %s135, %s136
      %p145 = scmp.eq.s32.totalorder %s36, 0
      %p146 = por %p144, %p145
      %p147 = scmp.ne.s32.totalorder %s135, %s136
      %p148 = scmp.eq.s32.totalorder %s37, 1
      %p149 = por %p147, %p148
      %p151 = scmp.ne.s32.totalorder %s136, %s150
      %p152 = scmp.eq.s32.totalorder %s37, 0
      %p153 = por %p151, %p152
      %s155 = sadd.s32 %s154, 1
      %p158 = scmp.eq.s32.totalorder %s31, 1
      %p159 = scmp.ne.s32.totalorder %s154, %s156
      %p160 = scmp.eq.s32.totalorder %s31, 0
      %p161 = por %p159, %p160
      %p162 = scmp.ne.s32.totalorder %s154, %s156
      %p163 = scmp.eq.s32.totalorder %s36, 1
      %p164 = por %p162, %p163
      %p165 = scmp.ne.s32.totalorder %s156, %s157
      %p166 = scmp.eq.s32.totalorder %s36, 0
      %p167 = por %p165, %p166
      %p168 = scmp.ne.s32.totalorder %s156, %s157
      %p169 = scmp.eq.s32.totalorder %s37, 1
      %p170 = por %p168, %p169
      %p172 = scmp.ne.s32.totalorder %s157, %s171
      %p173 = scmp.eq.s32.totalorder %s37, 0
      %p174 = por %p172, %p173
      %s176 = sadd.s32 %s175, 1
      %p179 = scmp.eq.s32.totalorder %s31, 1
      %p180 = scmp.ne.s32.totalorder %s175, %s177
      %p181 = scmp.eq.s32.totalorder %s31, 0
      %p182 = por %p180, %p181
      %p183 = scmp.ne.s32.totalorder %s175, %s177
      %p184 = scmp.eq.s32.totalorder %s36, 1
      %p185 = por %p183, %p184
      %p186 = scmp.ne.s32.totalorder %s177, %s178
      %p187 = scmp.eq.s32.totalorder %s36, 0
      %p188 = por %p186, %p187
      %p189 = scmp.ne.s32.totalorder %s177, %s178
      %p190 = scmp.eq.s32.totalorder %s37, 1
      %p191 = por %p189, %p190
      %p193 = scmp.ne.s32.totalorder %s178, %s192
      %p194 = scmp.eq.s32.totalorder %s37, 0
      %p195 = por %p193, %p194
      %s197 = sadd.s32 %s196, 1
      %p200 = scmp.eq.s32.totalorder %s31, 1
      %p201 = scmp.ne.s32.totalorder %s196, %s198
      %p202 = scmp.eq.s32.totalorder %s31, 0
      %p203 = por %p201, %p202
      %p204 = scmp.ne.s32.totalorder %s196, %s198
      %p205 = scmp.eq.s32.totalorder %s36, 1
      %p206 = por %p204, %p205
      %p207 = scmp.ne.s32.totalorder %s198, %s199
      %p208 = scmp.eq.s32.totalorder %s36, 0
      %p209 = por %p207, %p208
      %p210 = scmp.ne.s32.totalorder %s198, %s199
      %p211 = scmp.eq.s32.totalorder %s37, 1
      %p212 = por %p210, %p211
      %p214 = scmp.ne.s32.totalorder %s199, %s213
      %p215 = scmp.eq.s32.totalorder %s37, 0
      %p216 = por %p214, %p215
      %s218 = sadd.s32 %s217, 1
      %p221 = scmp.eq.s32.totalorder %s31, 1
      %p222 = scmp.ne.s32.totalorder %s217, %s219
      %p223 = scmp.eq.s32.totalorder %s31, 0
      %p224 = por %p222, %p223
      %p225 = scmp.ne.s32.totalorder %s217, %s219
      %p226 = scmp.eq.s32.totalorder %s36, 1
      %p227 = por %p225, %p226
      %p228 = scmp.ne.s32.totalorder %s219, %s220
      %p229 = scmp.eq.s32.totalorder %s36, 0
      %p230 = por %p228, %p229
      %p231 = scmp.ne.s32.totalorder %s219, %s220
      %p232 = scmp.eq.s32.totalorder %s37, 1
      %p233 = por %p231, %p232
      %p235 = scmp.ne.s32.totalorder %s220, %s234
      %p236 = scmp.eq.s32.totalorder %s37, 0
      %p237 = por %p235, %p236
      %s239 = sadd.s32 %s238, 1
      %p242 = scmp.eq.s32.totalorder %s31, 1
      %p243 = scmp.ne.s32.totalorder %s238, %s240
      %p244 = scmp.eq.s32.totalorder %s31, 0
      %p245 = por %p243, %p244
      %p246 = scmp.ne.s32.totalorder %s238, %s240
      %p247 = scmp.eq.s32.totalorder %s36, 1
      %p248 = por %p246, %p247
      %p249 = scmp.ne.s32.totalorder %s240, %s241
      %p250 = scmp.eq.s32.totalorder %s36, 0
      %p251 = por %p249, %p250
      %p252 = scmp.ne.s32.totalorder %s240, %s241
      %p253 = scmp.eq.s32.totalorder %s37, 1
      %p254 = por %p252, %p253
      %p256 = scmp.ne.s32.totalorder %s241, %s255
      %p257 = scmp.eq.s32.totalorder %s37, 0
      %p258 = por %p256, %p257
      %s260 = sadd.s32 %s259, 1
      %p263 = scmp.eq.s32.totalorder %s31, 1
      %p264 = scmp.ne.s32.totalorder %s259, %s261
      %p265 = scmp.eq.s32.totalorder %s31, 0
      %p266 = por %p264, %p265
      %p267 = scmp.ne.s32.totalorder %s259, %s261
      %p268 = scmp.eq.s32.totalorder %s36, 1
      %p269 = por %p267, %p268
      %p270 = scmp.ne.s32.totalorder %s261, %s262
      %p271 = scmp.eq.s32.totalorder %s36, 0
      %p272 = por %p270, %p271
      %p273 = scmp.ne.s32.totalorder %s261, %s262
      %p274 = scmp.eq.s32.totalorder %s37, 1
      %p275 = por %p273, %p274
      %p277 = scmp.ne.s32.totalorder %s262, %s276
      %p278 = scmp.eq.s32.totalorder %s37, 0
      %p279 = por %p277, %p278
      %s281 = sadd.s32 %s280, 1
      %p284 = scmp.eq.s32.totalorder %s31, 1
      %p285 = scmp.ne.s32.totalorder %s280, %s282
      %p286 = scmp.eq.s32.totalorder %s31, 0
      %p287 = por %p285, %p286
      %p288 = scmp.ne.s32.totalorder %s280, %s282
      %p289 = scmp.eq.s32.totalorder %s36, 1
      %p290 = por %p288, %p289
      %p291 = scmp.ne.s32.totalorder %s282, %s283
      %p292 = scmp.eq.s32.totalorder %s36, 0
      %p293 = por %p291, %p292
      %p294 = scmp.ne.s32.totalorder %s282, %s283
      %p295 = scmp.eq.s32.totalorder %s37, 1
      %p296 = por %p294, %p295
      %p298 = scmp.ne.s32.totalorder %s283, %s297
      %p299 = scmp.eq.s32.totalorder %s37, 0
      %p300 = por %p298, %p299
      %s302 = sadd.s32 %s301, 1
      %p305 = scmp.eq.s32.totalorder %s31, 1
      %p306 = scmp.ne.s32.totalorder %s301, %s303
      %p307 = scmp.eq.s32.totalorder %s31, 0
      %p308 = por %p306, %p307
      %p309 = scmp.ne.s32.totalorder %s301, %s303
      %p310 = scmp.eq.s32.totalorder %s36, 1
      %p311 = por %p309, %p310
      %p312 = scmp.ne.s32.totalorder %s303, %s304
      %p313 = scmp.eq.s32.totalorder %s36, 0
      %p314 = por %p312, %p313
      %p315 = scmp.ne.s32.totalorder %s303, %s304
      %p316 = scmp.eq.s32.totalorder %s37, 1
      %p317 = por %p315, %p316
      %p319 = scmp.ne.s32.totalorder %s304, %s318
      %p320 = scmp.eq.s32.totalorder %s37, 0
      %p321 = por %p319, %p320
      %s323 = sadd.s32 %s322, 1
      %p326 = scmp.eq.s32.totalorder %s31, 1
      %p327 = scmp.ne.s32.totalorder %s322, %s324
      %p328 = scmp.eq.s32.totalorder %s31, 0
      %p329 = por %p327, %p328
      %p330 = scmp.ne.s32.totalorder %s322, %s324
      %p331 = scmp.eq.s32.totalorder %s36, 1
      %p332 = por %p330, %p331
      %p333 = scmp.ne.s32.totalorder %s324, %s325
      %p334 = scmp.eq.s32.totalorder %s36, 0
      %p335 = por %p333, %p334
      %p336 = scmp.ne.s32.totalorder %s324, %s325
      %p337 = scmp.eq.s32.totalorder %s37, 1
      %p338 = por %p336, %p337
      %p340 = scmp.ne.s32.totalorder %s325, %s339
      %p341 = scmp.eq.s32.totalorder %s37, 0
      %p342 = por %p340, %p341
      %s344 = sadd.s32 %s343, 1
      %p347 = scmp.eq.s32.totalorder %s31, 1
      %p348 = scmp.ne.s32.totalorder %s343, %s345
      %p349 = scmp.eq.s32.totalorder %s31, 0
      %p350 = por %p348, %p349
      %p351 = scmp.ne.s32.totalorder %s343, %s345
      %p352 = scmp.eq.s32.totalorder %s36, 1
      %p353 = por %p351, %p352
      %p354 = scmp.ne.s32.totalorder %s345, %s346
      %p355 = scmp.eq.s32.totalorder %s36, 0
      %p356 = por %p354, %p355
      %p357 = scmp.ne.s32.totalorder %s345, %s346
      %p358 = scmp.eq.s32.totalorder %s37, 1
      %p359 = por %p357, %p358
      %p361 = scmp.ne.s32.totalorder %s346, %s360
      %p362 = scmp.eq.s32.totalorder %s37, 0
      %p363 = por %p361, %p362
      %s365 = sadd.s32 %s364, 1
      %p368 = scmp.eq.s32.totalorder %s31, 1
      %p369 = scmp.ne.s32.totalorder %s364, %s366
      %p370 = scmp.eq.s32.totalorder %s31, 0
      %p371 = por %p369, %p370
      %p372 = scmp.ne.s32.totalorder %s364, %s366
      %p373 = scmp.eq.s32.totalorder %s36, 1
      %p374 = por %p372, %p373
      %p375 = scmp.ne.s32.totalorder %s366, %s367
      %p376 = scmp.eq.s32.totalorder %s36, 0
      %p377 = por %p375, %p376
      %p378 = scmp.ne.s32.totalorder %s366, %s367
      %p379 = scmp.eq.s32.totalorder %s37, 1
      %p380 = por %p378, %p379
      %p382 = scmp.ne.s32.totalorder %s367, %s381
      %p383 = scmp.eq.s32.totalorder %s37, 0
      %p384 = por %p382, %p383
      %s385 = ssub.s32 %s31, %s38
      %p386 = scmp.eq.s32.totalorder %s385, 0
      %s388 = sadd.s32 %s387, 1
      %s389 = scalar_select %p386, %s387, %s388
      %p392 = pneg %p386
      %p393 = scmp.eq.s32.totalorder %s31, 1
      %p394 = por %p392, %p393
      %p395 = scmp.ne.s32.totalorder %s387, %s390
      %p396 = scmp.eq.s32.totalorder %s31, 0
      %p397 = por %p395, %p396
      %p398 = scmp.ne.s32.totalorder %s387, %s390
      %p399 = scmp.eq.s32.totalorder %s36, 1
      %p400 = por %p398, %p399
      %p401 = scmp.ne.s32.totalorder %s390, %s391
      %p402 = scmp.eq.s32.totalorder %s36, 0
      %p403 = por %p401, %p402
      %p404 = scmp.ne.s32.totalorder %s390, %s391
      %p405 = scmp.eq.s32.totalorder %s37, 1
      %p406 = por %p404, %p405
      %p408 = scmp.ne.s32.totalorder %s391, %s407
      %p409 = scmp.eq.s32.totalorder %s37, 0
      %p410 = por %p408, %p409
      %p411 = scmp.le.s32.totalorder 1, %s31
      %p412 = scmp.lt.s32.totalorder %s31, 3
      %p413 = pnand %p411, %p412
      %p414 = pneg %p413
      // Predicated region
      $region9: #{caption_decoder_forward.1} parent=5 // pred_check
        _
      $region10: #{caption_decoder_forward.1} parent=5 // pred_check_branch
        %416 = sbr.rel (%p413) target = $region12
      $region11: #{caption_decoder_forward.1} parent=5 // pred_region
        %s417 = ssub.s32 %s31, 1
        // Predicated region
        $region13: #{caption_decoder_forward.1} parent=11 // pred_check
          %p418 = pneg %p78
        $region14: #{caption_decoder_forward.1} parent=11 // pred_check_branch
          %420 = sbr.rel (%p418) target = $region16
        $region15: #{caption_decoder_forward.1} parent=11 // pred_region
          _
        $region16: #{caption_decoder_forward.1} parent=11 // pred_fallthru
          _
        // Predicated region
        $region17: #{caption_decoder_forward.1} parent=11 // pred_check
          %p421 = pneg %p99
        $region18: #{caption_decoder_forward.1} parent=11 // pred_check_branch
          %423 = sbr.rel (%p421) target = $region20
        $region19: #{caption_decoder_forward.1} parent=11 // pred_region
          _
        $region20: #{caption_decoder_forward.1} parent=11 // pred_fallthru
          _
        // Predicated region
        $region21: #{caption_decoder_forward.1} parent=11 // pred_check
          %p424 = pneg %p146
        $region22: #{caption_decoder_forward.1} parent=11 // pred_check_branch
          %426 = sbr.rel (%p424) target = $region24
        $region23: #{caption_decoder_forward.1} parent=11 // pred_region
          _
        $region24: #{caption_decoder_forward.1} parent=11 // pred_fallthru
          _
        // Predicated region
        $region25: #{caption_decoder_forward.1} parent=11 // pred_check
          %p427 = pneg %p167
        $region26: #{caption_decoder_forward.1} parent=11 // pred_check_branch
          %429 = sbr.rel (%p427) target = $region28
        $region27: #{caption_decoder_forward.1} parent=11 // pred_region
          %s431 = ssub.s32 64, 64
          %432 = vsyncadd [#allocation6], %s431
          %s433 = sshll.u32 [#allocation5], 4
          %s434 = int_to_ptr.vmem [resolvable:$true] %s433
          %439 = dma.hbm_to_vmem [thread:$0]  %s5, 64, %s434, [#allocation6], 16, 16, 1
        $region28: #{caption_decoder_forward.1} parent=11 // pred_fallthru
          _
        // Predicated region
        $region29: #{caption_decoder_forward.1} parent=11 // pred_check
          %p440 = pneg %p188
        $region30: #{caption_decoder_forward.1} parent=11 // pred_check_branch
          %442 = sbr.rel (%p440) target = $region32
        $region31: #{caption_decoder_forward.1} parent=11 // pred_region
          _
        $region32: #{caption_decoder_forward.1} parent=11 // pred_fallthru
          _
        // Predicated region
        $region33: #{caption_decoder_forward.1} parent=11 // pred_check
          %p443 = pneg %p209
        $region34: #{caption_decoder_forward.1} parent=11 // pred_check_branch
          %445 = sbr.rel (%p443) target = $region36
        $region35: #{caption_decoder_forward.1} parent=11 // pred_region
          %s447 = ssub.s32 64, 64
          %448 = vsyncadd [#allocation6], %s447
          %s449 = sshll.u32 [#allocation7], 4
          %s450 = int_to_ptr.vmem [resolvable:$true] %s449
          %455 = dma.hbm_to_vmem [thread:$0]  %s7, 64, %s450, [#allocation6], 16, 16, 1
        $region36: #{caption_decoder_forward.1} parent=11 // pred_fallthru
          _
        // Predicated region
        $region37: #{caption_decoder_forward.1} parent=11 // pred_check
          %p456 = pneg %p230
        $region38: #{caption_decoder_forward.1} parent=11 // pred_check_branch
          %458 = sbr.rel (%p456) target = $region40
        $region39: #{caption_decoder_forward.1} parent=11 // pred_region
          _
        $region40: #{caption_decoder_forward.1} parent=11 // pred_fallthru
          _
        // Predicated region
        $region41: #{caption_decoder_forward.1} parent=11 // pred_check
          %p459 = pneg %p251
        $region42: #{caption_decoder_forward.1} parent=11 // pred_check_branch
          %461 = sbr.rel (%p459) target = $region44
        $region43: #{caption_decoder_forward.1} parent=11 // pred_region
          %s463 = ssub.s32 32, 32
          %464 = vsyncadd [#allocation9], %s463
          %s465 = sshll.u32 [#allocation8], 4
          %s466 = int_to_ptr.vmem [resolvable:$true] %s465
          %471 = dma.hbm_to_vmem [thread:$0]  %s9, 32, %s466, [#allocation9], 16, 16, 1
        $region44: #{caption_decoder_forward.1} parent=11 // pred_fallthru
          _
        // Predicated region
        $region45: #{caption_decoder_forward.1} parent=11 // pred_check
          %p472 = pneg %p272
        $region46: #{caption_decoder_forward.1} parent=11 // pred_check_branch
          %474 = sbr.rel (%p472) target = $region48
        $region47: #{caption_decoder_forward.1} parent=11 // pred_region
          _
        $region48: #{caption_decoder_forward.1} parent=11 // pred_fallthru
          _
        // Predicated region
        $region49: #{caption_decoder_forward.1} parent=11 // pred_check
          %p475 = pneg %p293
        $region50: #{caption_decoder_forward.1} parent=11 // pred_check_branch
          %477 = sbr.rel (%p475) target = $region52
        $region51: #{caption_decoder_forward.1} parent=11 // pred_region
          %s479 = ssub.s32 32, 32
          %480 = vsyncadd [#allocation9], %s479
          %s481 = sshll.u32 [#allocation10], 4
          %s482 = int_to_ptr.vmem [resolvable:$true] %s481
          %487 = dma.hbm_to_vmem [thread:$0]  %s11, 32, %s482, [#allocation9], 16, 16, 1
        $region52: #{caption_decoder_forward.1} parent=11 // pred_fallthru
          _
        // Predicated region
        $region53: #{caption_decoder_forward.1} parent=11 // pred_check
          %p488 = pneg %p314
        $region54: #{caption_decoder_forward.1} parent=11 // pred_check_branch
          %490 = sbr.rel (%p488) target = $region56
        $region55: #{caption_decoder_forward.1} parent=11 // pred_region
          _
        $region56: #{caption_decoder_forward.1} parent=11 // pred_fallthru
          _
        // Predicated region
        $region57: #{caption_decoder_forward.1} parent=11 // pred_check
          %p491 = pneg %p335
        $region58: #{caption_decoder_forward.1} parent=11 // pred_check_branch
          %493 = sbr.rel (%p491) target = $region60
        $region59: #{caption_decoder_forward.1} parent=11 // pred_region
          _
        $region60: #{caption_decoder_forward.1} parent=11 // pred_fallthru
          _
        // Predicated region
        $region61: #{caption_decoder_forward.1} parent=11 // pred_check
          %p494 = pneg %p356
        $region62: #{caption_decoder_forward.1} parent=11 // pred_check_branch
          %496 = sbr.rel (%p494) target = $region64
        $region63: #{caption_decoder_forward.1} parent=11 // pred_region
          %s498 = ssub.s32 512, 512
          %499 = vsyncadd [#allocation12], %s498
          %s500 = sshll.u32 [#allocation11], 4
          %s501 = int_to_ptr.vmem [resolvable:$true] %s500
          %506 = dma.hbm_to_vmem [thread:$0]  %s14, 512, %s501, [#allocation12], 128, 128, 8
        $region64: #{caption_decoder_forward.1} parent=11 // pred_fallthru
          _
        // Predicated region
        $region65: #{caption_decoder_forward.1} parent=11 // pred_check
          %p507 = pneg %p377
        $region66: #{caption_decoder_forward.1} parent=11 // pred_check_branch
          %509 = sbr.rel (%p507) target = $region68
        $region67: #{caption_decoder_forward.1} parent=11 // pred_region
          _
        $region68: #{caption_decoder_forward.1} parent=11 // pred_fallthru
          _
      $region12: #{caption_decoder_forward.1} parent=5 // pred_fallthru
        _
      %p510 = scmp.lt.s32.totalorder %s31, 2
      // Predicated region
      $region69: #{caption_decoder_forward.1} parent=5 // pred_check
        %p511 = pneg %p510
      $region70: #{caption_decoder_forward.1} parent=5 // pred_check_branch
        %513 = sbr.rel (%p511) target = $region72
      $region71: #{caption_decoder_forward.1} parent=5 // pred_region
        // Predicated region
        $region73: #{caption_decoder_forward.1} parent=71 // pred_check
          %p514 = pneg %p51
        $region74: #{caption_decoder_forward.1} parent=71 // pred_check_branch
          %516 = sbr.rel (%p514) target = $region76
        $region75: #{caption_decoder_forward.1} parent=71 // pred_region
          %p517 = scmp.lt.s32.totalorder %s31, 1
          %s518 = scalar_select %p517, %s31, 1
          %s519 = smul.addr %s518, 8
          %s520 = scalar_lea.vmem %s0, %s519
        $region76: #{caption_decoder_forward.1} parent=71 // pred_fallthru
          _
        // Predicated region
        $region77: #{caption_decoder_forward.1} parent=71 // pred_check
          %p521 = pneg %p119
        $region78: #{caption_decoder_forward.1} parent=71 // pred_check_branch
          %523 = sbr.rel (%p521) target = $region80
        $region79: #{caption_decoder_forward.1} parent=71 // pred_region
          %s524 = sand.u32 %s109, 1
          %s525 = scalar_lea.sflag [#allocation3], %s524
          %s526 = sand.u32 %s109, 1
          %s527 = smul.addr %s526, 8
          %s528 = scalar_lea.vmem [#allocation2], %s527
          %s530 = ssub.s32 128, 128
          %531 = vsyncadd %s525, %s530
          %s532 = smul.addr %s31, 128
          %s533 = scalar_lea.hbm %s3, %s532
          %s535 = sshll.u32 %s528, 4
          %s536 = int_to_ptr.vmem [resolvable:$true] %s535
          %538 = dma.hbm_to_vmem [thread:$0]  %s533, 128, %s536, %s525
        $region80: #{caption_decoder_forward.1} parent=71 // pred_fallthru
          _
      $region72: #{caption_decoder_forward.1} parent=5 // pred_fallthru
        _
      %p539 = scmp.le.s32.totalorder 1, %s31
      %p540 = scmp.lt.s32.totalorder %s31, 3
      %p541 = pnand %p539, %p540
      %p542 = pneg %p541
      // Predicated region
      $region81: #{caption_decoder_forward.1} parent=5 // pred_check
        _
      $region82: #{caption_decoder_forward.1} parent=5 // pred_check_branch
        %544 = sbr.rel (%p541) target = $region84
      $region83: #{caption_decoder_forward.1} parent=5 // pred_region
        %s545 = ssub.s32 %s31, 1
        %s546 = sand.u32 %s112, 1
        %s547 = scalar_lea.sflag [#allocation3], %s546
        %s548 = sand.u32 %s112, 1
        %s549 = smul.addr %s548, 8
        %s550 = scalar_lea.vmem [#allocation2], %s549
        // Predicated region
        $region85: #{caption_decoder_forward.1} parent=83 // pred_check
          %p551 = pneg %p125
        $region86: #{caption_decoder_forward.1} parent=83 // pred_check_branch
          %553 = sbr.rel (%p551) target = $region88
        $region87: #{caption_decoder_forward.1} parent=83 // pred_region
          %554 = dma.done %s547, 128
        $region88: #{caption_decoder_forward.1} parent=83 // pred_fallthru
          _
        // Predicated region
        $region89: #{caption_decoder_forward.1} parent=83 // pred_check
          %p555 = pneg %p167
        $region90: #{caption_decoder_forward.1} parent=83 // pred_check_branch
          %557 = sbr.rel (%p555) target = $region92
        $region91: #{caption_decoder_forward.1} parent=83 // pred_region
          %558 = dma.done [#allocation6], 64
        $region92: #{caption_decoder_forward.1} parent=83 // pred_fallthru
          _
        // Predicated region
        $region93: #{caption_decoder_forward.1} parent=83 // pred_check
          %p559 = pneg %p209
        $region94: #{caption_decoder_forward.1} parent=83 // pred_check_branch
          %561 = sbr.rel (%p559) target = $region96
        $region95: #{caption_decoder_forward.1} parent=83 // pred_region
          %562 = dma.done [#allocation6], 64
        $region96: #{caption_decoder_forward.1} parent=83 // pred_fallthru
          _
        // Predicated region
        $region97: #{caption_decoder_forward.1} parent=83 // pred_check
          %p563 = pneg %p251
        $region98: #{caption_decoder_forward.1} parent=83 // pred_check_branch
          %565 = sbr.rel (%p563) target = $region100
        $region99: #{caption_decoder_forward.1} parent=83 // pred_region
          %566 = dma.done [#allocation9], 32
        $region100: #{caption_decoder_forward.1} parent=83 // pred_fallthru
          _
        // Predicated region
        $region101: #{caption_decoder_forward.1} parent=83 // pred_check
          %p567 = pneg %p293
        $region102: #{caption_decoder_forward.1} parent=83 // pred_check_branch
          %569 = sbr.rel (%p567) target = $region104
        $region103: #{caption_decoder_forward.1} parent=83 // pred_region
          %570 = dma.done [#allocation9], 32
        $region104: #{caption_decoder_forward.1} parent=83 // pred_fallthru
          _
        // Predicated region
        $region105: #{caption_decoder_forward.1} parent=83 // pred_check
          %p571 = pneg %p356
        $region106: #{caption_decoder_forward.1} parent=83 // pred_check_branch
          %573 = sbr.rel (%p571) target = $region108
        $region107: #{caption_decoder_forward.1} parent=83 // pred_region
          %574 = dma.done [#allocation12], 512
        $region108: #{caption_decoder_forward.1} parent=83 // pred_fallthru
          _
        %p575 = scmp.lt.s32.totalorder %s36, 1
        %s576 = scalar_select %p575, %s36, 1
        %s577 = smul.addr %s576, 8
        %s578 = scalar_lea.vmem %s0, %s577
        %p579 = pneg %p57
        %p580 = pneg %p54
        %p581 = pneg %p78
        %p582 = pneg %p75
        %p583 = pneg %p99
        %p584 = pneg %p96
        %s585 = sand.u32 %s112, 1
        %s586 = scalar_lea.sflag [#allocation3], %s585
        %s587 = sand.u32 %s112, 1
        %s588 = smul.addr %s587, 8
        %s589 = scalar_lea.vmem [#allocation2], %s588
        %p590 = pneg %p125
        %p591 = pneg %p122
        %p592 = pneg %p146
        %p593 = pneg %p143
        %p594 = pneg %p167
        %p595 = pneg %p164
        %p596 = pneg %p188
        %p597 = pneg %p185
        %p598 = pneg %p209
        %p599 = pneg %p206
        %p600 = pneg %p230
        %p601 = pneg %p227
        %p602 = pneg %p251
        %p603 = pneg %p248
        %p604 = pneg %p272
        %p605 = pneg %p269
        %p606 = pneg %p293
        %p607 = pneg %p290
        %p608 = pneg %p314
        %p609 = pneg %p311
        %p610 = pneg %p335
        %p611 = pneg %p332
        %p612 = pneg %p356
        %p613 = pneg %p353
        %p614 = pneg %p377
        %p615 = pneg %p374
        %p616 = pneg %p403
        %p617 = pneg %p400
        %s618 = sand.u32 %s390, 1
        %s619 = scalar_lea.sflag [#allocation4], %s618
        %s620 = sand.u32 %s390, 1
        %s621 = smul.addr %s620, 8
        %s622 = scalar_lea.vmem [#allocation13], %s621
        %p623 = scmp.lt.s32.totalorder %s36, 1
        %s624 = scalar_select %p623, %s36, 1
        %s625 = smul.addr %s624, 8
        %s626 = scalar_lea.vmem %s0, %s625
        %v627 = vld [vmem:[%s626] sm:$0xff]
        %v628 = vlaneseq
        %v629 = vand.u32 %v628, 127
        %630 = vset.pattern.permute.xlu0 0
        %631 = vperm.xlu0 %630, %v627
        %v632 = vpop.permute.xlu0 %631
        %vm633 = vcmp.eq.s32.totalorder %v632, %v629
        %v634 = vsel %vm633, 1, 0
        %v635 = vcvt.s32.f32 %v634
        %v636 = vld [vmem:[%s1] sm:$0xff]
        %v637 = vld [vmem:[%s1 + $0x8] sm:$0xff]
        %v638 = vld [vmem:[%s1 + $0x10] sm:$0xff]
        %v639 = vld [vmem:[%s1 + $0x18] sm:$0xff]
        %v640 = vld [vmem:[%s1 + $0x20] sm:$0xff]
        %v641 = vld [vmem:[%s1 + $0x28] sm:$0xff]
        %v642 = vld [vmem:[%s1 + $0x30] sm:$0xff]
        %v643 = vld [vmem:[%s1 + $0x38] sm:$0xff]
        %v644 = vld [vmem:[%s2] sm:$0xff]
        %vm645 = vcmask 523264
        %v647 = vsel %vm645, %v635, 0
        %649 = vmatprep.subr.mxu0 0.0
        %650 = vmatpush1.msra.mxu0 %v636
        %651 = vmatprep.subr.mxu0 0.0
        %652 = vmatpush1.msra.mxu0 %v637
        %653 = vmatprep.subr.mxu0 0.0
        %654 = vmatpush1.msra.mxu0 %v638
        %655 = vmatprep.subr.mxu0 0.0
        %656 = vmatpush1.msra.mxu0 %v639
        %657 = vmatprep.subr.mxu0 0.0
        %658 = vmatpush1.msra.mxu0 %v640
        %659 = vmatprep.subr.mxu0 0.0
        %660 = vmatpush1.msra.mxu0 %v641
        %661 = vmatprep.subr.mxu0 0.0
        %662 = vmatpush1.msra.mxu0 %v642
        %663 = vmatprep.subr.mxu0 0.0
        %664 = vmatpush1.msra.mxu0 %v643
        %665 = vmatprep.subr.mxu0 0.0
        %666 = vmatpush1.msra.mxu0 0.0
        %667 = vmatprep.subr.mxu0 0.0
        %668 = vmatpush1.msra.mxu0 0.0
        %669 = vmatprep.subr.mxu0 0.0
        %670 = vmatpush1.msra.mxu0 0.0
        %671 = vmatprep.subr.mxu0 0.0
        %672 = vmatpush1.msra.mxu0 0.0
        %673 = vmatprep.subr.mxu0 0.0
        %674 = vmatpush1.msra.mxu0 0.0
        %675 = vmatprep.subr.mxu0 0.0
        %676 = vmatpush1.msra.mxu0 0.0
        %677 = vmatprep.subr.mxu0 0.0
        %678 = vmatpush1.msra.mxu0 0.0
        %679 = vmatprep.subr.mxu0 0.0
        %680 = vmatpush1.msra.mxu0 0.0
        %681 = vmatprep.subr.mxu0 0.0
        %682 = vmatpush1.msra.mxu0 0.0
        %683 = vmatprep.subr.mxu0 0.0
        %684 = vmatpush1.msra.mxu0 0.0
        %685 = vmatprep.subr.mxu0 0.0
        %686 = vmatpush1.msra.mxu0 0.0
        %687 = vmatprep.subr.mxu0 0.0
        %688 = vmatpush1.msra.mxu0 0.0
        %689 = vmatprep.subr.mxu0 0.0
        %690 = vmatpush1.msra.mxu0 0.0
        %691 = vmatprep.subr.mxu0 0.0
        %692 = vmatpush1.msra.mxu0 0.0
        %693 = vmatprep.subr.mxu0 0.0
        %694 = vmatpush1.msra.mxu0 0.0
        %695 = vmatprep.subr.mxu0 0.0
        %696 = vmatpush1.msra.mxu0 0.0
        %697 = vmatprep.subr.mxu0 0.0
        %698 = vmatpush1.msra.mxu0 0.0
        %699 = vmatprep.subr.mxu0 0.0
        %700 = vmatpush1.msra.mxu0 0.0
        %701 = vmatprep.subr.mxu0 0.0
        %702 = vmatpush1.msra.mxu0 0.0
        %703 = vmatprep.subr.mxu0 0.0
        %704 = vmatpush1.msra.mxu0 0.0
        %705 = vmatprep.subr.mxu0 0.0
        %706 = vmatpush1.msra.mxu0 0.0
        %707 = vmatprep.subr.mxu0 0.0
        %708 = vmatpush1.msra.mxu0 0.0
        %709 = vmatprep.subr.mxu0 0.0
        %710 = vmatpush1.msra.mxu0 0.0
        %711 = vmatprep.subr.mxu0 0.0
        %712 = vmatpush1.msra.mxu0 0.0
        %713 = vmatprep.mubr.f32.mxu0 0.0
        %714 = vmatmul.mubr.f32.gmra.mrb[0].mxu0 %v647
        %v715 = vpop.f32.mrb[0].mxu0
        %v716 = vadd.f32 %v644, %v715
        %v717 = vpop.f32.mrb[0].mxu0
        %718 = vdwg.mxu0
        %v719 = vld [vmem:[%s550] sm:$0xff]
        %v720 = vld [vmem:[%s4] sm:$0xff]
        %v721 = vld [vmem:[%s4 + $0x8] sm:$0xff]
        %v722 = vld [vmem:[%s4 + $0x10] sm:$0xff]
        %v723 = vld [vmem:[%s4 + $0x18] sm:$0xff]
        %v724 = vld [vmem:[#allocation5] sm:$0x1]
        %v726 = vlaneseq
        %v727 = vshrl.u32 %v726, 7
        %v728 = vsub.s32 0, %v727
        %v729 = vrot.slane %v724, %v728
        %vm731 = vcmask 261120
        %v733 = vsel %vm731, %v716, 0
        %735 = vmatprep.subr.mxu0 0.0
        %736 = vmatpush1.msra.mxu0 %v720
        %737 = vmatprep.subr.mxu0 0.0
        %738 = vmatpush1.msra.mxu0 %v721
        %739 = vmatprep.subr.mxu0 0.0
        %740 = vmatpush1.msra.mxu0 %v722
        %741 = vmatprep.subr.mxu0 0.0
        %742 = vmatpush1.msra.mxu0 %v723
        %743 = vmatprep.subr.mxu0 0.0
        %744 = vmatpush1.msra.mxu0 0.0
        %745 = vmatprep.subr.mxu0 0.0
        %746 = vmatpush1.msra.mxu0 0.0
        %747 = vmatprep.subr.mxu0 0.0
        %748 = vmatpush1.msra.mxu0 0.0
        %749 = vmatprep.subr.mxu0 0.0
        %750 = vmatpush1.msra.mxu0 0.0
        %751 = vmatprep.subr.mxu0 0.0
        %752 = vmatpush1.msra.mxu0 0.0
        %753 = vmatprep.subr.mxu0 0.0
        %754 = vmatpush1.msra.mxu0 0.0
        %755 = vmatprep.subr.mxu0 0.0
        %756 = vmatpush1.msra.mxu0 0.0
        %757 = vmatprep.subr.mxu0 0.0
        %758 = vmatpush1.msra.mxu0 0.0
        %759 = vmatprep.subr.mxu0 0.0
        %760 = vmatpush1.msra.mxu0 0.0
        %761 = vmatprep.subr.mxu0 0.0
        %762 = vmatpush1.msra.mxu0 0.0
        %763 = vmatprep.subr.mxu0 0.0
        %764 = vmatpush1.msra.mxu0 0.0
        %765 = vmatprep.subr.mxu0 0.0
        %766 = vmatpush1.msra.mxu0 0.0
        %767 = vmatprep.subr.mxu0 0.0
        %768 = vmatpush1.msra.mxu0 0.0
        %769 = vmatprep.subr.mxu0 0.0
        %770 = vmatpush1.msra.mxu0 0.0
        %771 = vmatprep.subr.mxu0 0.0
        %772 = vmatpush1.msra.mxu0 0.0
        %773 = vmatprep.subr.mxu0 0.0
        %774 = vmatpush1.msra.mxu0 0.0
        %775 = vmatprep.subr.mxu0 0.0
        %776 = vmatpush1.msra.mxu0 0.0
        %777 = vmatprep.subr.mxu0 0.0
        %778 = vmatpush1.msra.mxu0 0.0
        %779 = vmatprep.subr.mxu0 0.0
        %780 = vmatpush1.msra.mxu0 0.0
        %781 = vmatprep.subr.mxu0 0.0
        %782 = vmatpush1.msra.mxu0 0.0
        %783 = vmatprep.subr.mxu0 0.0
        %784 = vmatpush1.msra.mxu0 0.0
        %785 = vmatprep.subr.mxu0 0.0
        %786 = vmatpush1.msra.mxu0 0.0
        %787 = vmatprep.subr.mxu0 0.0
        %788 = vmatpush1.msra.mxu0 0.0
        %789 = vmatprep.subr.mxu0 0.0
        %790 = vmatpush1.msra.mxu0 0.0
        %791 = vmatprep.subr.mxu0 0.0
        %792 = vmatpush1.msra.mxu0 0.0
        %793 = vmatprep.subr.mxu0 0.0
        %794 = vmatpush1.msra.mxu0 0.0
        %795 = vmatprep.subr.mxu0 0.0
        %796 = vmatpush1.msra.mxu0 0.0
        %797 = vmatprep.subr.mxu0 0.0
        %798 = vmatpush1.msra.mxu0 0.0
        %799 = vmatprep.mubr.f32.mxu0 0.0
        %800 = vmatmul.mubr.f32.gmra.mrb[0].mxu0 %v733
        %v801 = vpop.f32.mrb[0].mxu0
        %v802 = vadd.f32 %v729, %v801
        %v803 = vpop.f32.mrb[0].mxu0
        %804 = vdwg.mxu0
        %806 = vrot.lane.b32.xlu0 %v802, 96
        %v807 = vpop.permute.xlu0 %806
        %vm808 = vcmask 64512
        %v809 = vsel %vm808, %v802, 0
        %v811 = vsel %vm808, %v807, 0
        %813 = vmatprep.subr.mxu0 0.0
        %814 = vmatpush1.xpose.msra.mxu0 %v811
        %815 = vmatprep.subr.mxu0 0.0
        %816 = vmatpush1.xpose.msra.mxu0 0.0
        %817 = vmatprep.subr.mxu0 0.0
        %818 = vmatpush1.xpose.msra.mxu0 0.0
        %819 = vmatprep.subr.mxu0 0.0
        %820 = vmatpush1.xpose.msra.mxu0 0.0
        %821 = vmatprep.subr.mxu0 0.0
        %822 = vmatpush1.xpose.msra.mxu0 0.0
        %823 = vmatprep.subr.mxu0 0.0
        %824 = vmatpush1.xpose.msra.mxu0 0.0
        %825 = vmatprep.subr.mxu0 0.0
        %826 = vmatpush1.xpose.msra.mxu0 0.0
        %827 = vmatprep.subr.mxu0 0.0
        %828 = vmatpush1.xpose.msra.mxu0 0.0
        %829 = vmatprep.subr.mxu0 0.0
        %830 = vmatpush1.xpose.msra.mxu0 0.0
        %831 = vmatprep.subr.mxu0 0.0
        %832 = vmatpush1.xpose.msra.mxu0 0.0
        %833 = vmatprep.subr.mxu0 0.0
        %834 = vmatpush1.xpose.msra.mxu0 0.0
        %835 = vmatprep.subr.mxu0 0.0
        %836 = vmatpush1.xpose.msra.mxu0 0.0
        %837 = vmatprep.subr.mxu0 0.0
        %838 = vmatpush1.xpose.msra.mxu0 0.0
        %839 = vmatprep.subr.mxu0 0.0
        %840 = vmatpush1.xpose.msra.mxu0 0.0
        %841 = vmatprep.subr.mxu0 0.0
        %842 = vmatpush1.xpose.msra.mxu0 0.0
        %843 = vmatprep.subr.mxu0 0.0
        %844 = vmatpush1.xpose.msra.mxu0 0.0
        %845 = vmatprep.subr.mxu0 0.0
        %846 = vmatpush1.xpose.msra.mxu0 0.0
        %847 = vmatprep.subr.mxu0 0.0
        %848 = vmatpush1.xpose.msra.mxu0 0.0
        %849 = vmatprep.subr.mxu0 0.0
        %850 = vmatpush1.xpose.msra.mxu0 0.0
        %851 = vmatprep.subr.mxu0 0.0
        %852 = vmatpush1.xpose.msra.mxu0 0.0
        %853 = vmatprep.subr.mxu0 0.0
        %854 = vmatpush1.xpose.msra.mxu0 0.0
        %855 = vmatprep.subr.mxu0 0.0
        %856 = vmatpush1.xpose.msra.mxu0 0.0
        %857 = vmatprep.subr.mxu0 0.0
        %858 = vmatpush1.xpose.msra.mxu0 0.0
        %859 = vmatprep.subr.mxu0 0.0
        %860 = vmatpush1.xpose.msra.mxu0 0.0
        %861 = vmatprep.subr.mxu0 0.0
        %862 = vmatpush1.xpose.msra.mxu0 0.0
        %863 = vmatprep.subr.mxu0 0.0
        %864 = vmatpush1.xpose.msra.mxu0 0.0
        %865 = vmatprep.subr.mxu0 0.0
        %866 = vmatpush1.xpose.msra.mxu0 0.0
        %867 = vmatprep.subr.mxu0 0.0
        %868 = vmatpush1.xpose.msra.mxu0 0.0
        %869 = vmatprep.subr.mxu0 0.0
        %870 = vmatpush1.xpose.msra.mxu0 0.0
        %871 = vmatprep.subr.mxu0 0.0
        %872 = vmatpush1.xpose.msra.mxu0 0.0
        %873 = vmatprep.subr.mxu0 0.0
        %874 = vmatpush1.xpose.msra.mxu0 0.0
        %875 = vmatprep.subr.mxu0 0.0
        %876 = vmatpush1.xpose.msra.mxu0 0.0
        %877 = vmatprep.mubr.f32.mxu0 0.0
        %878 = vmatmul.mubr.f32.gmra.mrb[0].mxu0 %v809
        %v879 = vpop.f32.mrb[0].mxu0
        %v880 = vadd.f32 0.0, %v879
        %v881 = vpop.f32.mrb[0].mxu0
        %882 = vdwg.mxu0
        %v883 = vmul.f32 %v880, 0.35355338
        %v884 = vsel %vm808, %v883, -inf
        %885 = vmax.xlane.f32.xlu0 %v884
        %v886 = vpop.xlane.xlu0 %885
        %v887 = vsub.f32 %v883, %v886
        %v888 = vmul.f32 %v887, 1.442695
        %v889 = vpow.pop %v888
        %v890 = vsel %vm808, %v889, 0.0
        %891 = vadd.xlane.f32.xlu0 %v890
        %v892 = vpop.xlane.xlu0 %891
        %v893 = vrcp.pop %v892
        %v894 = vmul.f32 %v889, %v893
        %895 = vrot.lane.b32.xlu0 %v802, 64
        %v896 = vpop.permute.xlu0 %895
        %v899 = vsel %vm808, %v894, 0
        %901 = vmatprep.subr.mxu0 0.0
        %902 = vmatpush1.msra.mxu0 %v896
        %903 = vmatprep.subr.mxu0 0.0
        %904 = vmatpush1.msra.mxu0 0.0
        %905 = vmatprep.subr.mxu0 0.0
        %906 = vmatpush1.msra.mxu0 0.0
        %907 = vmatprep.subr.mxu0 0.0
        %908 = vmatpush1.msra.mxu0 0.0
        %909 = vmatprep.subr.mxu0 0.0
        %910 = vmatpush1.msra.mxu0 0.0
        %911 = vmatprep.subr.mxu0 0.0
        %912 = vmatpush1.msra.mxu0 0.0
        %913 = vmatprep.subr.mxu0 0.0
        %914 = vmatpush1.msra.mxu0 0.0
        %915 = vmatprep.subr.mxu0 0.0
        %916 = vmatpush1.msra.mxu0 0.0
        %917 = vmatprep.subr.mxu0 0.0
        %918 = vmatpush1.msra.mxu0 0.0
        %919 = vmatprep.subr.mxu0 0.0
        %920 = vmatpush1.msra.mxu0 0.0
        %921 = vmatprep.subr.mxu0 0.0
        %922 = vmatpush1.msra.mxu0 0.0
        %923 = vmatprep.subr.mxu0 0.0
        %924 = vmatpush1.msra.mxu0 0.0
        %925 = vmatprep.subr.mxu0 0.0
        %926 = vmatpush1.msra.mxu0 0.0
        %927 = vmatprep.subr.mxu0 0.0
        %928 = vmatpush1.msra.mxu0 0.0
        %929 = vmatprep.subr.mxu0 0.0
        %930 = vmatpush1.msra.mxu0 0.0
        %931 = vmatprep.subr.mxu0 0.0
        %932 = vmatpush1.msra.mxu0 0.0
        %933 = vmatprep.subr.mxu0 0.0
        %934 = vmatpush1.msra.mxu0 0.0
        %935 = vmatprep.subr.mxu0 0.0
        %936 = vmatpush1.msra.mxu0 0.0
        %937 = vmatprep.subr.mxu0 0.0
        %938 = vmatpush1.msra.mxu0 0.0
        %939 = vmatprep.subr.mxu0 0.0
        %940 = vmatpush1.msra.mxu0 0.0
        %941 = vmatprep.subr.mxu0 0.0
        %942 = vmatpush1.msra.mxu0 0.0
        %943 = vmatprep.subr.mxu0 0.0
        %944 = vmatpush1.msra.mxu0 0.0
        %945 = vmatprep.subr.mxu0 0.0
        %946 = vmatpush1.msra.mxu0 0.0
        %947 = vmatprep.subr.mxu0 0.0
        %948 = vmatpush1.msra.mxu0 0.0
        %949 = vmatprep.subr.mxu0 0.0
        %950 = vmatpush1.msra.mxu0 0.0
        %951 = vmatprep.subr.mxu0 0.0
        %952 = vmatpush1.msra.mxu0 0.0
        %953 = vmatprep.subr.mxu0 0.0
        %954 = vmatpush1.msra.mxu0 0.0
        %955 = vmatprep.subr.mxu0 0.0
        %956 = vmatpush1.msra.mxu0 0.0
        %957 = vmatprep.subr.mxu0 0.0
        %958 = vmatpush1.msra.mxu0 0.0
        %959 = vmatprep.subr.mxu0 0.0
        %960 = vmatpush1.msra.mxu0 0.0
        %961 = vmatprep.subr.mxu0 0.0
        %962 = vmatpush1.msra.mxu0 0.0
        %963 = vmatprep.subr.mxu0 0.0
        %964 = vmatpush1.msra.mxu0 0.0
        %965 = vmatprep.mubr.f32.mxu0 0.0
        %966 = vmatmul.mubr.f32.gmra.mrb[0].mxu0 %v899
        %v967 = vpop.f32.mrb[0].mxu0
        %v968 = vadd.f32 0.0, %v967
        %v969 = vpop.f32.mrb[0].mxu0
        %970 = vdwg.mxu0
        %971 = vrot.lane.b32.xlu0 %v802, 120
        %v972 = vpop.permute.xlu0 %971
        %973 = vrot.lane.b32.xlu0 %v802, 88
        %v974 = vpop.permute.xlu0 %973
        %v975 = vsel %vm808, %v972, 0
        %v977 = vsel %vm808, %v974, 0
        %979 = vmatprep.subr.mxu0 0.0
        %980 = vmatpush1.xpose.msra.mxu0 %v977
        %981 = vmatprep.subr.mxu0 0.0
        %982 = vmatpush1.xpose.msra.mxu0 0.0
        %983 = vmatprep.subr.mxu0 0.0
        %984 = vmatpush1.xpose.msra.mxu0 0.0
        %985 = vmatprep.subr.mxu0 0.0
        %986 = vmatpush1.xpose.msra.mxu0 0.0
        %987 = vmatprep.subr.mxu0 0.0
        %988 = vmatpush1.xpose.msra.mxu0 0.0
        %989 = vmatprep.subr.mxu0 0.0
        %990 = vmatpush1.xpose.msra.mxu0 0.0
        %991 = vmatprep.subr.mxu0 0.0
        %992 = vmatpush1.xpose.msra.mxu0 0.0
        %993 = vmatprep.subr.mxu0 0.0
        %994 = vmatpush1.xpose.msra.mxu0 0.0
        %995 = vmatprep.subr.mxu0 0.0
        %996 = vmatpush1.xpose.msra.mxu0 0.0
        %997 = vmatprep.subr.mxu0 0.0
        %998 = vmatpush1.xpose.msra.mxu0 0.0
        %999 = vmatprep.subr.mxu0 0.0
        %1000 = vmatpush1.xpose.msra.mxu0 0.0
        %1001 = vmatprep.subr.mxu0 0.0
        %1002 = vmatpush1.xpose.msra.mxu0 0.0
        %1003 = vmatprep.subr.mxu0 0.0
        %1004 = vmatpush1.xpose.msra.mxu0 0.0
        %1005 = vmatprep.subr.mxu0 0.0
        %1006 = vmatpush1.xpose.msra.mxu0 0.0
        %1007 = vmatprep.subr.mxu0 0.0
        %1008 = vmatpush1.xpose.msra.mxu0 0.0
        %1009 = vmatprep.subr.mxu0 0.0
        %1010 = vmatpush1.xpose.msra.mxu0 0.0
        %1011 = vmatprep.subr.mxu0 0.0
        %1012 = vmatpush1.xpose.msra.mxu0 0.0
        %1013 = vmatprep.subr.mxu0 0.0
        %1014 = vmatpush1.xpose.msra.mxu0 0.0
        %1015 = vmatprep.subr.mxu0 0.0
        %1016 = vmatpush1.xpose.msra.mxu0 0.0
        %1017 = vmatprep.subr.mxu0 0.0
        %1018 = vmatpush1.xpose.msra.mxu0 0.0
        %1019 = vmatprep.subr.mxu0 0.0
        %1020 = vmatpush1.xpose.msra.mxu0 0.0
        %1021 = vmatprep.subr.mxu0 0.0
        %1022 = vmatpush1.xpose.msra.mxu0 0.0
        %1023 = vmatprep.subr.mxu0 0.0
        %1024 = vmatpush1.xpose.msra.mxu0 0.0
        %1025 = vmatprep.subr.mxu0 0.0
        %1026 = vmatpush1.xpose.msra.mxu0 0.0
        %1027 = vmatprep.subr.mxu0 0.0
        %1028 = vmatpush1.xpose.msra.mxu0 0.0
        %1029 = vmatprep.subr.mxu0 0.0
        %1030 = vmatpush1.xpose.msra.mxu0 0.0
        %1031 = vmatprep.subr.mxu0 0.0
        %1032 = vmatpush1.xpose.msra.mxu0 0.0
        %1033 = vmatprep.subr.mxu0 0.0
        %1034 = vmatpush1.xpose.msra.mxu0 0.0
        %1035 = vmatprep.subr.mxu0 0.0
        %1036 = vmatpush1.xpose.msra.mxu0 0.0
        %1037 = vmatprep.subr.mxu0 0.0
        %1038 = vmatpush1.xpose.msra.mxu0 0.0
        %1039 = vmatprep.subr.mxu0 0.0
        %1040 = vmatpush1.xpose.msra.mxu0 0.0
        %1041 = vmatprep.subr.mxu0 0.0
        %1042 = vmatpush1.xpose.msra.mxu0 0.0
        %1043 = vmatprep.mubr.f32.mxu0 0.0
        %1044 = vmatmul.mubr.f32.gmra.mrb[0].mxu0 %v975
        %v1045 = vpop.f32.mrb[0].mxu0
        %v1046 = vadd.f32 0.0, %v1045
        %v1047 = vpop.f32.mrb[0].mxu0
        %1048 = vdwg.mxu0
        %v1049 = vmul.f32 %v1046, 0.35355338
        %v1050 = vsel %vm808, %v1049, -inf
        %1051 = vmax.xlane.f32.xlu0 %v1050
        %v1052 = vpop.xlane.xlu0 %1051
        %v1053 = vsub.f32 %v1049, %v1052
        %v1054 = vmul.f32 %v1053, 1.442695
        %v1055 = vpow.pop %v1054
        %v1056 = vsel %vm808, %v1055, 0.0
        %1057 = vadd.xlane.f32.xlu0 %v1056
        %v1058 = vpop.xlane.xlu0 %1057
        %v1059 = vrcp.pop %v1058
        %v1060 = vmul.f32 %v1055, %v1059
        %1061 = vrot.lane.b32.xlu0 %v802, 56
        %v1062 = vpop.permute.xlu0 %1061
        %v1065 = vsel %vm808, %v1060, 0
        %1067 = vmatprep.subr.mxu0 0.0
        %1068 = vmatpush1.msra.mxu0 %v1062
        %1069 = vmatprep.subr.mxu0 0.0
        %1070 = vmatpush1.msra.mxu0 0.0
        %1071 = vmatprep.subr.mxu0 0.0
        %1072 = vmatpush1.msra.mxu0 0.0
        %1073 = vmatprep.subr.mxu0 0.0
        %1074 = vmatpush1.msra.mxu0 0.0
        %1075 = vmatprep.subr.mxu0 0.0
        %1076 = vmatpush1.msra.mxu0 0.0
        %1077 = vmatprep.subr.mxu0 0.0
        %1078 = vmatpush1.msra.mxu0 0.0
        %1079 = vmatprep.subr.mxu0 0.0
        %1080 = vmatpush1.msra.mxu0 0.0
        %1081 = vmatprep.subr.mxu0 0.0
        %1082 = vmatpush1.msra.mxu0 0.0
        %1083 = vmatprep.subr.mxu0 0.0
        %1084 = vmatpush1.msra.mxu0 0.0
        %1085 = vmatprep.subr.mxu0 0.0
        %1086 = vmatpush1.msra.mxu0 0.0
        %1087 = vmatprep.subr.mxu0 0.0
        %1088 = vmatpush1.msra.mxu0 0.0
        %1089 = vmatprep.subr.mxu0 0.0
        %1090 = vmatpush1.msra.mxu0 0.0
        %1091 = vmatprep.subr.mxu0 0.0
        %1092 = vmatpush1.msra.mxu0 0.0
        %1093 = vmatprep.subr.mxu0 0.0
        %1094 = vmatpush1.msra.mxu0 0.0
        %1095 = vmatprep.subr.mxu0 0.0
        %1096 = vmatpush1.msra.mxu0 0.0
        %1097 = vmatprep.subr.mxu0 0.0
        %1098 = vmatpush1.msra.mxu0 0.0
        %1099 = vmatprep.subr.mxu0 0.0
        %1100 = vmatpush1.msra.mxu0 0.0
        %1101 = vmatprep.subr.mxu0 0.0
        %1102 = vmatpush1.msra.mxu0 0.0
        %1103 = vmatprep.subr.mxu0 0.0
        %1104 = vmatpush1.msra.mxu0 0.0
        %1105 = vmatprep.subr.mxu0 0.0
        %1106 = vmatpush1.msra.mxu0 0.0
        %1107 = vmatprep.subr.mxu0 0.0
        %1108 = vmatpush1.msra.mxu0 0.0
        %1109 = vmatprep.subr.mxu0 0.0
        %1110 = vmatpush1.msra.mxu0 0.0
        %1111 = vmatprep.subr.mxu0 0.0
        %1112 = vmatpush1.msra.mxu0 0.0
        %1113 = vmatprep.subr.mxu0 0.0
        %1114 = vmatpush1.msra.mxu0 0.0
        %1115 = vmatprep.subr.mxu0 0.0
        %1116 = vmatpush1.msra.mxu0 0.0
        %1117 = vmatprep.subr.mxu0 0.0
        %1118 = vmatpush1.msra.mxu0 0.0
        %1119 = vmatprep.subr.mxu0 0.0
        %1120 = vmatpush1.msra.mxu0 0.0
        %1121 = vmatprep.subr.mxu0 0.0
        %1122 = vmatpush1.msra.mxu0 0.0
        %1123 = vmatprep.subr.mxu0 0.0
        %1124 = vmatpush1.msra.mxu0 0.0
        %1125 = vmatprep.subr.mxu0 0.0
        %1126 = vmatpush1.msra.mxu0 0.0
        %1127 = vmatprep.subr.mxu0 0.0
        %1128 = vmatpush1.msra.mxu0 0.0
        %1129 = vmatprep.subr.mxu0 0.0
        %1130 = vmatpush1.msra.mxu0 0.0
        %1131 = vmatprep.mubr.f32.mxu0 0.0
        %1132 = vmatmul.mubr.f32.gmra.mrb[0].mxu0 %v1065
        %v1133 = vpop.f32.mrb[0].mxu0
        %v1134 = vadd.f32 0.0, %v1133
        %v1135 = vpop.f32.mrb[0].mxu0
        %1136 = vdwg.mxu0
        %1137 = vrot.lane.b32.xlu0 %v802, 112
        %v1138 = vpop.permute.xlu0 %1137
        %1139 = vrot.lane.b32.xlu0 %v802, 80
        %v1140 = vpop.permute.xlu0 %1139
        %v1141 = vsel %vm808, %v1138, 0
        %v1143 = vsel %vm808, %v1140, 0
        %1145 = vmatprep.subr.mxu0 0.0
        %1146 = vmatpush1.xpose.msra.mxu0 %v1143
        %1147 = vmatprep.subr.mxu0 0.0
        %1148 = vmatpush1.xpose.msra.mxu0 0.0
        %1149 = vmatprep.subr.mxu0 0.0
        %1150 = vmatpush1.xpose.msra.mxu0 0.0
        %1151 = vmatprep.subr.mxu0 0.0
        %1152 = vmatpush1.xpose.msra.mxu0 0.0
        %1153 = vmatprep.subr.mxu0 0.0
        %1154 = vmatpush1.xpose.msra.mxu0 0.0
        %1155 = vmatprep.subr.mxu0 0.0
        %1156 = vmatpush1.xpose.msra.mxu0 0.0
        %1157 = vmatprep.subr.mxu0 0.0
        %1158 = vmatpush1.xpose.msra.mxu0 0.0
        %1159 = vmatprep.subr.mxu0 0.0
        %1160 = vmatpush1.xpose.msra.mxu0 0.0
        %1161 = vmatprep.subr.mxu0 0.0
        %1162 = vmatpush1.xpose.msra.mxu0 0.0
        %1163 = vmatprep.subr.mxu0 0.0
        %1164 = vmatpush1.xpose.msra.mxu0 0.0
        %1165 = vmatprep.subr.mxu0 0.0
        %1166 = vmatpush1.xpose.msra.mxu0 0.0
        %1167 = vmatprep.subr.mxu0 0.0
        %1168 = vmatpush1.xpose.msra.mxu0 0.0
        %1169 = vmatprep.subr.mxu0 0.0
        %1170 = vmatpush1.xpose.msra.mxu0 0.0
        %1171 = vmatprep.subr.mxu0 0.0
        %1172 = vmatpush1.xpose.msra.mxu0 0.0
        %1173 = vmatprep.subr.mxu0 0.0
        %1174 = vmatpush1.xpose.msra.mxu0 0.0
        %1175 = vmatprep.subr.mxu0 0.0
        %1176 = vmatpush1.xpose.msra.mxu0 0.0
        %1177 = vmatprep.subr.mxu0 0.0
        %1178 = vmatpush1.xpose.msra.mxu0 0.0
        %1179 = vmatprep.subr.mxu0 0.0
        %1180 = vmatpush1.xpose.msra.mxu0 0.0
        %1181 = vmatprep.subr.mxu0 0.0
        %1182 = vmatpush1.xpose.msra.mxu0 0.0
        %1183 = vmatprep.subr.mxu0 0.0
        %1184 = vmatpush1.xpose.msra.mxu0 0.0
        %1185 = vmatprep.subr.mxu0 0.0
        %1186 = vmatpush1.xpose.msra.mxu0 0.0
        %1187 = vmatprep.subr.mxu0 0.0
        %1188 = vmatpush1.xpose.msra.mxu0 0.0
        %1189 = vmatprep.subr.mxu0 0.0
        %1190 = vmatpush1.xpose.msra.mxu0 0.0
        %1191 = vmatprep.subr.mxu0 0.0
        %1192 = vmatpush1.xpose.msra.mxu0 0.0
        %1193 = vmatprep.subr.mxu0 0.0
        %1194 = vmatpush1.xpose.msra.mxu0 0.0
        %1195 = vmatprep.subr.mxu0 0.0
        %1196 = vmatpush1.xpose.msra.mxu0 0.0
        %1197 = vmatprep.subr.mxu0 0.0
        %1198 = vmatpush1.xpose.msra.mxu0 0.0
        %1199 = vmatprep.subr.mxu0 0.0
        %1200 = vmatpush1.xpose.msra.mxu0 0.0
        %1201 = vmatprep.subr.mxu0 0.0
        %1202 = vmatpush1.xpose.msra.mxu0 0.0
        %1203 = vmatprep.subr.mxu0 0.0
        %1204 = vmatpush1.xpose.msra.mxu0 0.0
        %1205 = vmatprep.subr.mxu0 0.0
        %1206 = vmatpush1.xpose.msra.mxu0 0.0
        %1207 = vmatprep.subr.mxu0 0.0
        %1208 = vmatpush1.xpose.msra.mxu0 0.0
        %1209 = vmatprep.mubr.f32.mxu0 0.0
        %1210 = vmatmul.mubr.f32.gmra.mrb[0].mxu0 %v1141
        %v1211 = vpop.f32.mrb[0].mxu0
        %v1212 = vadd.f32 0.0, %v1211
        %v1213 = vpop.f32.mrb[0].mxu0
        %1214 = vdwg.mxu0
        %v1215 = vmul.f32 %v1212, 0.35355338
        %v1216 = vsel %vm808, %v1215, -inf
        %1217 = vmax.xlane.f32.xlu0 %v1216
        %v1218 = vpop.xlane.xlu0 %1217
        %v1219 = vsub.f32 %v1215, %v1218
        %v1220 = vmul.f32 %v1219, 1.442695
        %v1221 = vpow.pop %v1220
        %v1222 = vsel %vm808, %v1221, 0.0
        %1223 = vadd.xlane.f32.xlu0 %v1222
        %v1224 = vpop.xlane.xlu0 %1223
        %v1225 = vrcp.pop %v1224
        %v1226 = vmul.f32 %v1221, %v1225
        %1227 = vrot.lane.b32.xlu0 %v802, 48
        %v1228 = vpop.permute.xlu0 %1227
        %v1231 = vsel %vm808, %v1226, 0
        %1233 = vmatprep.subr.mxu0 0.0
        %1234 = vmatpush1.msra.mxu0 %v1228
        %1235 = vmatprep.subr.mxu0 0.0
        %1236 = vmatpush1.msra.mxu0 0.0
        %1237 = vmatprep.subr.mxu0 0.0
        %1238 = vmatpush1.msra.mxu0 0.0
        %1239 = vmatprep.subr.mxu0 0.0
        %1240 = vmatpush1.msra.mxu0 0.0
        %1241 = vmatprep.subr.mxu0 0.0
        %1242 = vmatpush1.msra.mxu0 0.0
        %1243 = vmatprep.subr.mxu0 0.0
        %1244 = vmatpush1.msra.mxu0 0.0
        %1245 = vmatprep.subr.mxu0 0.0
        %1246 = vmatpush1.msra.mxu0 0.0
        %1247 = vmatprep.subr.mxu0 0.0
        %1248 = vmatpush1.msra.mxu0 0.0
        %1249 = vmatprep.subr.mxu0 0.0
        %1250 = vmatpush1.msra.mxu0 0.0
        %1251 = vmatprep.subr.mxu0 0.0
        %1252 = vmatpush1.msra.mxu0 0.0
        %1253 = vmatprep.subr.mxu0 0.0
        %1254 = vmatpush1.msra.mxu0 0.0
        %1255 = vmatprep.subr.mxu0 0.0
        %1256 = vmatpush1.msra.mxu0 0.0
        %1257 = vmatprep.subr.mxu0 0.0
        %1258 = vmatpush1.msra.mxu0 0.0
        %1259 = vmatprep.subr.mxu0 0.0
        %1260 = vmatpush1.msra.mxu0 0.0
        %1261 = vmatprep.subr.mxu0 0.0
        %1262 = vmatpush1.msra.mxu0 0.0
        %1263 = vmatprep.subr.mxu0 0.0
        %1264 = vmatpush1.msra.mxu0 0.0
        %1265 = vmatprep.subr.mxu0 0.0
        %1266 = vmatpush1.msra.mxu0 0.0
        %1267 = vmatprep.subr.mxu0 0.0
        %1268 = vmatpush1.msra.mxu0 0.0
        %1269 = vmatprep.subr.mxu0 0.0
        %1270 = vmatpush1.msra.mxu0 0.0
        %1271 = vmatprep.subr.mxu0 0.0
        %1272 = vmatpush1.msra.mxu0 0.0
        %1273 = vmatprep.subr.mxu0 0.0
        %1274 = vmatpush1.msra.mxu0 0.0
        %1275 = vmatprep.subr.mxu0 0.0
        %1276 = vmatpush1.msra.mxu0 0.0
        %1277 = vmatprep.subr.mxu0 0.0
        %1278 = vmatpush1.msra.mxu0 0.0
        %1279 = vmatprep.subr.mxu0 0.0
        %1280 = vmatpush1.msra.mxu0 0.0
        %1281 = vmatprep.subr.mxu0 0.0
        %1282 = vmatpush1.msra.mxu0 0.0
        %1283 = vmatprep.subr.mxu0 0.0
        %1284 = vmatpush1.msra.mxu0 0.0
        %1285 = vmatprep.subr.mxu0 0.0
        %1286 = vmatpush1.msra.mxu0 0.0
        %1287 = vmatprep.subr.mxu0 0.0
        %1288 = vmatpush1.msra.mxu0 0.0
        %1289 = vmatprep.subr.mxu0 0.0
        %1290 = vmatpush1.msra.mxu0 0.0
        %1291 = vmatprep.subr.mxu0 0.0
        %1292 = vmatpush1.msra.mxu0 0.0
        %1293 = vmatprep.subr.mxu0 0.0
        %1294 = vmatpush1.msra.mxu0 0.0
        %1295 = vmatprep.subr.mxu0 0.0
        %1296 = vmatpush1.msra.mxu0 0.0
        %1297 = vmatprep.mubr.f32.mxu0 0.0
        %1298 = vmatmul.mubr.f32.gmra.mrb[0].mxu0 %v1231
        %v1299 = vpop.f32.mrb[0].mxu0
        %v1300 = vadd.f32 0.0, %v1299
        %v1301 = vpop.f32.mrb[0].mxu0
        %1302 = vdwg.mxu0
        %1303 = vrot.lane.b32.xlu0 %v802, 104
        %v1304 = vpop.permute.xlu0 %1303
        %1305 = vrot.lane.b32.xlu0 %v802, 72
        %v1306 = vpop.permute.xlu0 %1305
        %v1307 = vsel %vm808, %v1304, 0
        %v1309 = vsel %vm808, %v1306, 0
        %1311 = vmatprep.subr.mxu0 0.0
        %1312 = vmatpush1.xpose.msra.mxu0 %v1309
        %1313 = vmatprep.subr.mxu0 0.0
        %1314 = vmatpush1.xpose.msra.mxu0 0.0
        %1315 = vmatprep.subr.mxu0 0.0
        %1316 = vmatpush1.xpose.msra.mxu0 0.0
        %1317 = vmatprep.subr.mxu0 0.0
        %1318 = vmatpush1.xpose.msra.mxu0 0.0
        %1319 = vmatprep.subr.mxu0 0.0
        %1320 = vmatpush1.xpose.msra.mxu0 0.0
        %1321 = vmatprep.subr.mxu0 0.0
        %1322 = vmatpush1.xpose.msra.mxu0 0.0
        %1323 = vmatprep.subr.mxu0 0.0
        %1324 = vmatpush1.xpose.msra.mxu0 0.0
        %1325 = vmatprep.subr.mxu0 0.0
        %1326 = vmatpush1.xpose.msra.mxu0 0.0
        %1327 = vmatprep.subr.mxu0 0.0
        %1328 = vmatpush1.xpose.msra.mxu0 0.0
        %1329 = vmatprep.subr.mxu0 0.0
        %1330 = vmatpush1.xpose.msra.mxu0 0.0
        %1331 = vmatprep.subr.mxu0 0.0
        %1332 = vmatpush1.xpose.msra.mxu0 0.0
        %1333 = vmatprep.subr.mxu0 0.0
        %1334 = vmatpush1.xpose.msra.mxu0 0.0
        %1335 = vmatprep.subr.mxu0 0.0
        %1336 = vmatpush1.xpose.msra.mxu0 0.0
        %1337 = vmatprep.subr.mxu0 0.0
        %1338 = vmatpush1.xpose.msra.mxu0 0.0
        %1339 = vmatprep.subr.mxu0 0.0
        %1340 = vmatpush1.xpose.msra.mxu0 0.0
        %1341 = vmatprep.subr.mxu0 0.0
        %1342 = vmatpush1.xpose.msra.mxu0 0.0
        %1343 = vmatprep.subr.mxu0 0.0
        %1344 = vmatpush1.xpose.msra.mxu0 0.0
        %1345 = vmatprep.subr.mxu0 0.0
        %1346 = vmatpush1.xpose.msra.mxu0 0.0
        %1347 = vmatprep.subr.mxu0 0.0
        %1348 = vmatpush1.xpose.msra.mxu0 0.0
        %1349 = vmatprep.subr.mxu0 0.0
        %1350 = vmatpush1.xpose.msra.mxu0 0.0
        %1351 = vmatprep.subr.mxu0 0.0
        %1352 = vmatpush1.xpose.msra.mxu0 0.0
        %1353 = vmatprep.subr.mxu0 0.0
        %1354 = vmatpush1.xpose.msra.mxu0 0.0
        %1355 = vmatprep.subr.mxu0 0.0
        %1356 = vmatpush1.xpose.msra.mxu0 0.0
        %1357 = vmatprep.subr.mxu0 0.0
        %1358 = vmatpush1.xpose.msra.mxu0 0.0
        %1359 = vmatprep.subr.mxu0 0.0
        %1360 = vmatpush1.xpose.msra.mxu0 0.0
        %1361 = vmatprep.subr.mxu0 0.0
        %1362 = vmatpush1.xpose.msra.mxu0 0.0
        %1363 = vmatprep.subr.mxu0 0.0
        %1364 = vmatpush1.xpose.msra.mxu0 0.0
        %1365 = vmatprep.subr.mxu0 0.0
        %1366 = vmatpush1.xpose.msra.mxu0 0.0
        %1367 = vmatprep.subr.mxu0 0.0
        %1368 = vmatpush1.xpose.msra.mxu0 0.0
        %1369 = vmatprep.subr.mxu0 0.0
        %1370 = vmatpush1.xpose.msra.mxu0 0.0
        %1371 = vmatprep.subr.mxu0 0.0
        %1372 = vmatpush1.xpose.msra.mxu0 0.0
        %1373 = vmatprep.subr.mxu0 0.0
        %1374 = vmatpush1.xpose.msra.mxu0 0.0
        %1375 = vmatprep.mubr.f32.mxu0 0.0
        %1376 = vmatmul.mubr.f32.gmra.mrb[0].mxu0 %v1307
        %v1377 = vpop.f32.mrb[0].mxu0
        %v1378 = vadd.f32 0.0, %v1377
        %v1379 = vpop.f32.mrb[0].mxu0
        %1380 = vdwg.mxu0
        %v1381 = vmul.f32 %v1378, 0.35355338
        %v1382 = vsel %vm808, %v1381, -inf
        %1383 = vmax.xlane.f32.xlu0 %v1382
        %v1384 = vpop.xlane.xlu0 %1383
        %v1385 = vsub.f32 %v1381, %v1384
        %v1386 = vmul.f32 %v1385, 1.442695
        %v1387 = vpow.pop %v1386
        %v1388 = vsel %vm808, %v1387, 0.0
        %1389 = vadd.xlane.f32.xlu0 %v1388
        %v1390 = vpop.xlane.xlu0 %1389
        %v1391 = vrcp.pop %v1390
        %v1392 = vmul.f32 %v1387, %v1391
        %1393 = vrot.lane.b32.xlu0 %v802, 40
        %v1394 = vpop.permute.xlu0 %1393
        %v1397 = vsel %vm808, %v1392, 0
        %1399 = vmatprep.subr.mxu0 0.0
        %1400 = vmatpush1.msra.mxu0 %v1394
        %1401 = vmatprep.subr.mxu0 0.0
        %1402 = vmatpush1.msra.mxu0 0.0
        %1403 = vmatprep.subr.mxu0 0.0
        %1404 = vmatpush1.msra.mxu0 0.0
        %1405 = vmatprep.subr.mxu0 0.0
        %1406 = vmatpush1.msra.mxu0 0.0
        %1407 = vmatprep.subr.mxu0 0.0
        %1408 = vmatpush1.msra.mxu0 0.0
        %1409 = vmatprep.subr.mxu0 0.0
        %1410 = vmatpush1.msra.mxu0 0.0
        %1411 = vmatprep.subr.mxu0 0.0
        %1412 = vmatpush1.msra.mxu0 0.0
        %1413 = vmatprep.subr.mxu0 0.0
        %1414 = vmatpush1.msra.mxu0 0.0
        %1415 = vmatprep.subr.mxu0 0.0
        %1416 = vmatpush1.msra.mxu0 0.0
        %1417 = vmatprep.subr.mxu0 0.0
        %1418 = vmatpush1.msra.mxu0 0.0
        %1419 = vmatprep.subr.mxu0 0.0
        %1420 = vmatpush1.msra.mxu0 0.0
        %1421 = vmatprep.subr.mxu0 0.0
        %1422 = vmatpush1.msra.mxu0 0.0
        %1423 = vmatprep.subr.mxu0 0.0
        %1424 = vmatpush1.msra.mxu0 0.0
        %1425 = vmatprep.subr.mxu0 0.0
        %1426 = vmatpush1.msra.mxu0 0.0
        %1427 = vmatprep.subr.mxu0 0.0
        %1428 = vmatpush1.msra.mxu0 0.0
        %1429 = vmatprep.subr.mxu0 0.0
        %1430 = vmatpush1.msra.mxu0 0.0
        %1431 = vmatprep.subr.mxu0 0.0
        %1432 = vmatpush1.msra.mxu0 0.0
        %1433 = vmatprep.subr.mxu0 0.0
        %1434 = vmatpush1.msra.mxu0 0.0
        %1435 = vmatprep.subr.mxu0 0.0
        %1436 = vmatpush1.msra.mxu0 0.0
        %1437 = vmatprep.subr.mxu0 0.0
        %1438 = vmatpush1.msra.mxu0 0.0
        %1439 = vmatprep.subr.mxu0 0.0
        %1440 = vmatpush1.msra.mxu0 0.0
        %1441 = vmatprep.subr.mxu0 0.0
        %1442 = vmatpush1.msra.mxu0 0.0
        %1443 = vmatprep.subr.mxu0 0.0
        %1444 = vmatpush1.msra.mxu0 0.0
        %1445 = vmatprep.subr.mxu0 0.0
        %1446 = vmatpush1.msra.mxu0 0.0
        %1447 = vmatprep.subr.mxu0 0.0
        %1448 = vmatpush1.msra.mxu0 0.0
        %1449 = vmatprep.subr.mxu0 0.0
        %1450 = vmatpush1.msra.mxu0 0.0
        %1451 = vmatprep.subr.mxu0 0.0
        %1452 = vmatpush1.msra.mxu0 0.0
        %1453 = vmatprep.subr.mxu0 0.0
        %1454 = vmatpush1.msra.mxu0 0.0
        %1455 = vmatprep.subr.mxu0 0.0
        %1456 = vmatpush1.msra.mxu0 0.0
        %1457 = vmatprep.subr.mxu0 0.0
        %1458 = vmatpush1.msra.mxu0 0.0
        %1459 = vmatprep.subr.mxu0 0.0
        %1460 = vmatpush1.msra.mxu0 0.0
        %1461 = vmatprep.subr.mxu0 0.0
        %1462 = vmatpush1.msra.mxu0 0.0
        %1463 = vmatprep.mubr.f32.mxu0 0.0
        %1464 = vmatmul.mubr.f32.gmra.mrb[0].mxu0 %v1397
        %v1465 = vpop.f32.mrb[0].mxu0
        %v1466 = vadd.f32 0.0, %v1465
        %v1467 = vpop.f32.mrb[0].mxu0
        %1468 = vdwg.mxu0
        %1470 = vrot.lane.b32.xlu0 %v1134, 8
        %v1471 = vpop.permute.xlu0 %1470
        %1474 = vrot.lane.b32.xlu0 %v1300, 16
        %v1475 = vpop.permute.xlu0 %1474
        %1478 = vrot.lane.b32.xlu0 %v1466, 24
        %v1479 = vpop.permute.xlu0 %1478
        %v1481 = vsel %vm808, %v968, %v1471
        %vm1482 = vcmask 130048
        %v1483 = vsel %vm1482, %v1481, %v1475
        %vm1484 = vcmask 195584
        %v1485 = vsel %vm1484, %v1483, %v1479
        %v1486 = vld [vmem:[%s6] sm:$0xff]
        %v1487 = vld [vmem:[%s6 + $0x8] sm:$0xff]
        %v1488 = vld [vmem:[%s6 + $0x10] sm:$0xff]
        %v1489 = vld [vmem:[%s6 + $0x18] sm:$0xff]
        %v1490 = vld [vmem:[#allocation7] sm:$0x1]
        %v1492 = vlaneseq
        %v1493 = vshrl.u32 %v1492, 7
        %v1494 = vsub.s32 0, %v1493
        %v1495 = vrot.slane %v1490, %v1494
        %v1498 = vsel %vm731, %v1485, 0
        %1500 = vmatprep.subr.mxu0 0.0
        %1501 = vmatpush1.msra.mxu0 %v1486
        %1502 = vmatprep.subr.mxu0 0.0
        %1503 = vmatpush1.msra.mxu0 %v1487
        %1504 = vmatprep.subr.mxu0 0.0
        %1505 = vmatpush1.msra.mxu0 %v1488
        %1506 = vmatprep.subr.mxu0 0.0
        %1507 = vmatpush1.msra.mxu0 %v1489
        %1508 = vmatprep.subr.mxu0 0.0
        %1509 = vmatpush1.msra.mxu0 0.0
        %1510 = vmatprep.subr.mxu0 0.0
        %1511 = vmatpush1.msra.mxu0 0.0
        %1512 = vmatprep.subr.mxu0 0.0
        %1513 = vmatpush1.msra.mxu0 0.0
        %1514 = vmatprep.subr.mxu0 0.0
        %1515 = vmatpush1.msra.mxu0 0.0
        %1516 = vmatprep.subr.mxu0 0.0
        %1517 = vmatpush1.msra.mxu0 0.0
        %1518 = vmatprep.subr.mxu0 0.0
        %1519 = vmatpush1.msra.mxu0 0.0
        %1520 = vmatprep.subr.mxu0 0.0
        %1521 = vmatpush1.msra.mxu0 0.0
        %1522 = vmatprep.subr.mxu0 0.0
        %1523 = vmatpush1.msra.mxu0 0.0
        %1524 = vmatprep.subr.mxu0 0.0
        %1525 = vmatpush1.msra.mxu0 0.0
        %1526 = vmatprep.subr.mxu0 0.0
        %1527 = vmatpush1.msra.mxu0 0.0
        %1528 = vmatprep.subr.mxu0 0.0
        %1529 = vmatpush1.msra.mxu0 0.0
        %1530 = vmatprep.subr.mxu0 0.0
        %1531 = vmatpush1.msra.mxu0 0.0
        %1532 = vmatprep.subr.mxu0 0.0
        %1533 = vmatpush1.msra.mxu0 0.0
        %1534 = vmatprep.subr.mxu0 0.0
        %1535 = vmatpush1.msra.mxu0 0.0
        %1536 = vmatprep.subr.mxu0 0.0
        %1537 = vmatpush1.msra.mxu0 0.0
        %1538 = vmatprep.subr.mxu0 0.0
        %1539 = vmatpush1.msra.mxu0 0.0
        %1540 = vmatprep.subr.mxu0 0.0
        %1541 = vmatpush1.msra.mxu0 0.0
        %1542 = vmatprep.subr.mxu0 0.0
        %1543 = vmatpush1.msra.mxu0 0.0
        %1544 = vmatprep.subr.mxu0 0.0
        %1545 = vmatpush1.msra.mxu0 0.0
        %1546 = vmatprep.subr.mxu0 0.0
        %1547 = vmatpush1.msra.mxu0 0.0
        %1548 = vmatprep.subr.mxu0 0.0
        %1549 = vmatpush1.msra.mxu0 0.0
        %1550 = vmatprep.subr.mxu0 0.0
        %1551 = vmatpush1.msra.mxu0 0.0
        %1552 = vmatprep.subr.mxu0 0.0
        %1553 = vmatpush1.msra.mxu0 0.0
        %1554 = vmatprep.subr.mxu0 0.0
        %1555 = vmatpush1.msra.mxu0 0.0
        %1556 = vmatprep.subr.mxu0 0.0
        %1557 = vmatpush1.msra.mxu0 0.0
        %1558 = vmatprep.subr.mxu0 0.0
        %1559 = vmatpush1.msra.mxu0 0.0
        %1560 = vmatprep.subr.mxu0 0.0
        %1561 = vmatpush1.msra.mxu0 0.0
        %1562 = vmatprep.subr.mxu0 0.0
        %1563 = vmatpush1.msra.mxu0 0.0
        %1564 = vmatprep.mubr.f32.mxu0 0.0
        %1565 = vmatmul.mubr.f32.gmra.mrb[0].mxu0 %v1498
        %v1566 = vpop.f32.mrb[0].mxu0
        %v1567 = vadd.f32 %v1495, %v1566
        %v1568 = vpop.f32.mrb[0].mxu0
        %1569 = vdwg.mxu0
        %v1570 = vadd.f32 %v716, %v1567
        %v1571 = vld [vmem:[%s12] sm:$0x1]
        %v1572 = vld [vmem:[%s13] sm:$0x1]
        %v1573 = vsel %vm731, %v1570, 0.0
        %1574 = vadd.xlane.f32.xlu0 %v1573
        %v1575 = vpop.xlane.xlu0 %1574
        %v1576 = vrcp.pop 32.0
        %v1577 = vmul.f32 %v1575, %v1576
        %v1578 = vsub.f32 %v1570, %v1577
        %v1579 = vmul.f32 %v1578, %v1578
        %v1580 = vsel %vm731, %v1579, 0.0
        %1581 = vadd.xlane.f32.xlu0 %v1580
        %v1582 = vpop.xlane.xlu0 %1581
        %v1583 = vmul.f32 %v1582, %v1576
        %v1584 = vadd.f32 %v1583, 1e-05
        %v1585 = vrsqrt.pop %v1584
        %v1586 = vmul.f32 %v1578, %v1585
        %v1588 = vlaneseq
        %v1589 = vshrl.u32 %v1588, 7
        %v1590 = vsub.s32 0, %v1589
        %v1591 = vrot.slane %v1571, %v1590
        %v1593 = vmul.f32 %v1586, %v1591
        %v1595 = vlaneseq
        %v1596 = vshrl.u32 %v1595, 7
        %v1597 = vsub.s32 0, %v1596
        %v1598 = vrot.slane %v1572, %v1597
        %v1600 = vadd.f32 %v1593, %v1598
        %s1601 = scalar_lea.vmem %s4, 32
        %v1602 = vld [vmem:[%s1601] sm:$0xff]
        %v1603 = vld [vmem:[%s1601 + $0x8] sm:$0xff]
        %v1604 = vld [vmem:[%s1601 + $0x10] sm:$0xff]
        %v1605 = vld [vmem:[%s1601 + $0x18] sm:$0xff]
        %s1606 = scalar_lea.vmem [#allocation5], 1
        %v1607 = vld [vmem:[%s1606] sm:$0x1]
        %v1609 = vlaneseq
        %v1610 = vshrl.u32 %v1609, 7
        %v1611 = vsub.s32 0, %v1610
        %v1612 = vrot.slane %v1607, %v1611
        %v1615 = vsel %vm731, %v1600, 0
        %1617 = vmatprep.subr.mxu0 0.0
        %1618 = vmatpush1.msra.mxu0 %v1602
        %1619 = vmatprep.subr.mxu0 0.0
        %1620 = vmatpush1.msra.mxu0 %v1603
        %1621 = vmatprep.subr.mxu0 0.0
        %1622 = vmatpush1.msra.mxu0 %v1604
        %1623 = vmatprep.subr.mxu0 0.0
        %1624 = vmatpush1.msra.mxu0 %v1605
        %1625 = vmatprep.subr.mxu0 0.0
        %1626 = vmatpush1.msra.mxu0 0.0
        %1627 = vmatprep.subr.mxu0 0.0
        %1628 = vmatpush1.msra.mxu0 0.0
        %1629 = vmatprep.subr.mxu0 0.0
        %1630 = vmatpush1.msra.mxu0 0.0
        %1631 = vmatprep.subr.mxu0 0.0
        %1632 = vmatpush1.msra.mxu0 0.0
        %1633 = vmatprep.subr.mxu0 0.0
        %1634 = vmatpush1.msra.mxu0 0.0
        %1635 = vmatprep.subr.mxu0 0.0
        %1636 = vmatpush1.msra.mxu0 0.0
        %1637 = vmatprep.subr.mxu0 0.0
        %1638 = vmatpush1.msra.mxu0 0.0
        %1639 = vmatprep.subr.mxu0 0.0
        %1640 = vmatpush1.msra.mxu0 0.0
        %1641 = vmatprep.subr.mxu0 0.0
        %1642 = vmatpush1.msra.mxu0 0.0
        %1643 = vmatprep.subr.mxu0 0.0
        %1644 = vmatpush1.msra.mxu0 0.0
        %1645 = vmatprep.subr.mxu0 0.0
        %1646 = vmatpush1.msra.mxu0 0.0
        %1647 = vmatprep.subr.mxu0 0.0
        %1648 = vmatpush1.msra.mxu0 0.0
        %1649 = vmatprep.subr.mxu0 0.0
        %1650 = vmatpush1.msra.mxu0 0.0
        %1651 = vmatprep.subr.mxu0 0.0
        %1652 = vmatpush1.msra.mxu0 0.0
        %1653 = vmatprep.subr.mxu0 0.0
        %1654 = vmatpush1.msra.mxu0 0.0
        %1655 = vmatprep.subr.mxu0 0.0
        %1656 = vmatpush1.msra.mxu0 0.0
        %1657 = vmatprep.subr.mxu0 0.0
        %1658 = vmatpush1.msra.mxu0 0.0
        %1659 = vmatprep.subr.mxu0 0.0
        %1660 = vmatpush1.msra.mxu0 0.0
        %1661 = vmatprep.subr.mxu0 0.0
        %1662 = vmatpush1.msra.mxu0 0.0
        %1663 = vmatprep.subr.mxu0 0.0
        %1664 = vmatpush1.msra.mxu0 0.0
        %1665 = vmatprep.subr.mxu0 0.0
        %1666 = vmatpush1.msra.mxu0 0.0
        %1667 = vmatprep.subr.mxu0 0.0
        %1668 = vmatpush1.msra.mxu0 0.0
        %1669 = vmatprep.subr.mxu0 0.0
        %1670 = vmatpush1.msra.mxu0 0.0
        %1671 = vmatprep.subr.mxu0 0.0
        %1672 = vmatpush1.msra.mxu0 0.0
        %1673 = vmatprep.subr.mxu0 0.0
        %1674 = vmatpush1.msra.mxu0 0.0
        %1675 = vmatprep.subr.mxu0 0.0
        %1676 = vmatpush1.msra.mxu0 0.0
        %1677 = vmatprep.subr.mxu0 0.0
        %1678 = vmatpush1.msra.mxu0 0.0
        %1679 = vmatprep.subr.mxu0 0.0
        %1680 = vmatpush1.msra.mxu0 0.0
        %1681 = vmatprep.mubr.f32.mxu0 0.0
        %1682 = vmatmul.mubr.f32.gmra.mrb[0].mxu0 %v1615
        %v1683 = vpop.f32.mrb[0].mxu0
        %v1684 = vadd.f32 %v1612, %v1683
        %v1685 = vpop.f32.mrb[0].mxu0
        %1686 = vdwg.mxu0
        %1691 = vrot.lane.b32.xlu0 %v1602, 96
        %v1692 = vpop.permute.xlu0 %1691
        %1693 = vrot.lane.b32.xlu0 %v1603, 96
        %v1694 = vpop.permute.xlu0 %1693
        %1695 = vrot.lane.b32.xlu0 %v1604, 96
        %v1696 = vpop.permute.xlu0 %1695
        %1697 = vrot.lane.b32.xlu0 %v1605, 96
        %v1698 = vpop.permute.xlu0 %1697
        %1703 = vrot.lane.b32.xlu0 %v1612, 96
        %v1704 = vpop.permute.xlu0 %1703
        %v1707 = vsel %vm731, %v719, 0
        %1709 = vmatprep.subr.mxu0 0.0
        %1710 = vmatpush1.msra.mxu0 %v1692
        %1711 = vmatprep.subr.mxu0 0.0
        %1712 = vmatpush1.msra.mxu0 %v1694
        %1713 = vmatprep.subr.mxu0 0.0
        %1714 = vmatpush1.msra.mxu0 %v1696
        %1715 = vmatprep.subr.mxu0 0.0
        %1716 = vmatpush1.msra.mxu0 %v1698
        %1717 = vmatprep.subr.mxu0 0.0
        %1718 = vmatpush1.msra.mxu0 0.0
        %1719 = vmatprep.subr.mxu0 0.0
        %1720 = vmatpush1.msra.mxu0 0.0
        %1721 = vmatprep.subr.mxu0 0.0
        %1722 = vmatpush1.msra.mxu0 0.0
        %1723 = vmatprep.subr.mxu0 0.0
        %1724 = vmatpush1.msra.mxu0 0.0
        %1725 = vmatprep.subr.mxu0 0.0
        %1726 = vmatpush1.msra.mxu0 0.0
        %1727 = vmatprep.subr.mxu0 0.0
        %1728 = vmatpush1.msra.mxu0 0.0
        %1729 = vmatprep.subr.mxu0 0.0
        %1730 = vmatpush1.msra.mxu0 0.0
        %1731 = vmatprep.subr.mxu0 0.0
        %1732 = vmatpush1.msra.mxu0 0.0
        %1733 = vmatprep.subr.mxu0 0.0
        %1734 = vmatpush1.msra.mxu0 0.0
        %1735 = vmatprep.subr.mxu0 0.0
        %1736 = vmatpush1.msra.mxu0 0.0
        %1737 = vmatprep.subr.mxu0 0.0
        %1738 = vmatpush1.msra.mxu0 0.0
        %1739 = vmatprep.subr.mxu0 0.0
        %1740 = vmatpush1.msra.mxu0 0.0
        %1741 = vmatprep.subr.mxu0 0.0
        %1742 = vmatpush1.msra.mxu0 0.0
        %1743 = vmatprep.subr.mxu0 0.0
        %1744 = vmatpush1.msra.mxu0 0.0
        %1745 = vmatprep.subr.mxu0 0.0
        %1746 = vmatpush1.msra.mxu0 0.0
        %1747 = vmatprep.subr.mxu0 0.0
        %1748 = vmatpush1.msra.mxu0 0.0
        %1749 = vmatprep.subr.mxu0 0.0
        %1750 = vmatpush1.msra.mxu0 0.0
        %1751 = vmatprep.subr.mxu0 0.0
        %1752 = vmatpush1.msra.mxu0 0.0
        %1753 = vmatprep.subr.mxu0 0.0
        %1754 = vmatpush1.msra.mxu0 0.0
        %1755 = vmatprep.subr.mxu0 0.0
        %1756 = vmatpush1.msra.mxu0 0.0
        %1757 = vmatprep.subr.mxu0 0.0
        %1758 = vmatpush1.msra.mxu0 0.0
        %1759 = vmatprep.subr.mxu0 0.0
        %1760 = vmatpush1.msra.mxu0 0.0
        %1761 = vmatprep.subr.mxu0 0.0
        %1762 = vmatpush1.msra.mxu0 0.0
        %1763 = vmatprep.subr.mxu0 0.0
        %1764 = vmatpush1.msra.mxu0 0.0
        %1765 = vmatprep.subr.mxu0 0.0
        %1766 = vmatpush1.msra.mxu0 0.0
        %1767 = vmatprep.subr.mxu0 0.0
        %1768 = vmatpush1.msra.mxu0 0.0
        %1769 = vmatprep.subr.mxu0 0.0
        %1770 = vmatpush1.msra.mxu0 0.0
        %1771 = vmatprep.subr.mxu0 0.0
        %1772 = vmatpush1.msra.mxu0 0.0
        %1773 = vmatprep.mubr.f32.mxu0 0.0
        %1774 = vmatmul.mubr.f32.gmra.mrb[0].mxu0 %v1707
        %v1775 = vpop.f32.mrb[0].mxu0
        %v1776 = vadd.f32 %v1704, %v1775
        %v1777 = vpop.f32.mrb[0].mxu0
        %1778 = vdwg.mxu0
        %v1780 = vsel %vm808, %v1684, 0
        %v1783 = vsel %vm808, %v1776, 0
        %1785 = vmatprep.subr.mxu0 0.0
        %1786 = vmatpush1.xpose.msra.mxu0 %v1783
        %1787 = vmatprep.subr.mxu0 0.0
        %1788 = vmatpush1.xpose.msra.mxu0 0.0
        %1789 = vmatprep.subr.mxu0 0.0
        %1790 = vmatpush1.xpose.msra.mxu0 0.0
        %1791 = vmatprep.subr.mxu0 0.0
        %1792 = vmatpush1.xpose.msra.mxu0 0.0
        %1793 = vmatprep.subr.mxu0 0.0
        %1794 = vmatpush1.xpose.msra.mxu0 0.0
        %1795 = vmatprep.subr.mxu0 0.0
        %1796 = vmatpush1.xpose.msra.mxu0 0.0
        %1797 = vmatprep.subr.mxu0 0.0
        %1798 = vmatpush1.xpose.msra.mxu0 0.0
        %1799 = vmatprep.subr.mxu0 0.0
        %1800 = vmatpush1.xpose.msra.mxu0 0.0
        %1801 = vmatprep.subr.mxu0 0.0
        %1802 = vmatpush1.xpose.msra.mxu0 0.0
        %1803 = vmatprep.subr.mxu0 0.0
        %1804 = vmatpush1.xpose.msra.mxu0 0.0
        %1805 = vmatprep.subr.mxu0 0.0
        %1806 = vmatpush1.xpose.msra.mxu0 0.0
        %1807 = vmatprep.subr.mxu0 0.0
        %1808 = vmatpush1.xpose.msra.mxu0 0.0
        %1809 = vmatprep.subr.mxu0 0.0
        %1810 = vmatpush1.xpose.msra.mxu0 0.0
        %1811 = vmatprep.subr.mxu0 0.0
        %1812 = vmatpush1.xpose.msra.mxu0 0.0
        %1813 = vmatprep.subr.mxu0 0.0
        %1814 = vmatpush1.xpose.msra.mxu0 0.0
        %1815 = vmatprep.subr.mxu0 0.0
        %1816 = vmatpush1.xpose.msra.mxu0 0.0
        %1817 = vmatprep.subr.mxu0 0.0
        %1818 = vmatpush1.xpose.msra.mxu0 0.0
        %1819 = vmatprep.subr.mxu0 0.0
        %1820 = vmatpush1.xpose.msra.mxu0 0.0
        %1821 = vmatprep.subr.mxu0 0.0
        %1822 = vmatpush1.xpose.msra.mxu0 0.0
        %1823 = vmatprep.subr.mxu0 0.0
        %1824 = vmatpush1.xpose.msra.mxu0 0.0
        %1825 = vmatprep.subr.mxu0 0.0
        %1826 = vmatpush1.xpose.msra.mxu0 0.0
        %1827 = vmatprep.subr.mxu0 0.0
        %1828 = vmatpush1.xpose.msra.mxu0 0.0
        %1829 = vmatprep.subr.mxu0 0.0
        %1830 = vmatpush1.xpose.msra.mxu0 0.0
        %1831 = vmatprep.subr.mxu0 0.0
        %1832 = vmatpush1.xpose.msra.mxu0 0.0
        %1833 = vmatprep.subr.mxu0 0.0
        %1834 = vmatpush1.xpose.msra.mxu0 0.0
        %1835 = vmatprep.subr.mxu0 0.0
        %1836 = vmatpush1.xpose.msra.mxu0 0.0
        %1837 = vmatprep.subr.mxu0 0.0
        %1838 = vmatpush1.xpose.msra.mxu0 0.0
        %1839 = vmatprep.subr.mxu0 0.0
        %1840 = vmatpush1.xpose.msra.mxu0 0.0
        %1841 = vmatprep.subr.mxu0 0.0
        %1842 = vmatpush1.xpose.msra.mxu0 0.0
        %1843 = vmatprep.subr.mxu0 0.0
        %1844 = vmatpush1.xpose.msra.mxu0 0.0
        %1845 = vmatprep.subr.mxu0 0.0
        %1846 = vmatpush1.xpose.msra.mxu0 0.0
        %1847 = vmatprep.subr.mxu0 0.0
        %1848 = vmatpush1.xpose.msra.mxu0 0.0
        %1849 = vmatprep.mubr.f32.mxu0 0.0
        %1850 = vmatmul.mubr.f32.gmra.mrb[0].mxu0 %v1780
        %v1851 = vpop.f32.mrb[0].mxu0
        %v1852 = vadd.f32 0.0, %v1851
        %v1853 = vpop.f32.mrb[0].mxu0
        %1854 = vdwg.mxu0
        %v1855 = vmul.f32 %v1852, 0.35355338
        %v1856 = vsel %vm808, %v1855, -inf
        %1857 = vmax.xlane.f32.xlu0 %v1856
        %v1858 = vpop.xlane.xlu0 %1857
        %v1859 = vsub.f32 %v1855, %v1858
        %v1860 = vmul.f32 %v1859, 1.442695
        %v1861 = vpow.pop %v1860
        %v1862 = vsel %vm808, %v1861, 0.0
        %1863 = vadd.xlane.f32.xlu0 %v1862
        %v1864 = vpop.xlane.xlu0 %1863
        %v1865 = vrcp.pop %v1864
        %v1866 = vmul.f32 %v1861, %v1865
        %1867 = vrot.lane.b32.xlu0 %v1776, 96
        %v1868 = vpop.permute.xlu0 %1867
        %v1871 = vsel %vm808, %v1866, 0
        %1873 = vmatprep.subr.mxu0 0.0
        %1874 = vmatpush1.msra.mxu0 %v1868
        %1875 = vmatprep.subr.mxu0 0.0
        %1876 = vmatpush1.msra.mxu0 0.0
        %1877 = vmatprep.subr.mxu0 0.0
        %1878 = vmatpush1.msra.mxu0 0.0
        %1879 = vmatprep.subr.mxu0 0.0
        %1880 = vmatpush1.msra.mxu0 0.0
        %1881 = vmatprep.subr.mxu0 0.0
        %1882 = vmatpush1.msra.mxu0 0.0
        %1883 = vmatprep.subr.mxu0 0.0
        %1884 = vmatpush1.msra.mxu0 0.0
        %1885 = vmatprep.subr.mxu0 0.0
        %1886 = vmatpush1.msra.mxu0 0.0
        %1887 = vmatprep.subr.mxu0 0.0
        %1888 = vmatpush1.msra.mxu0 0.0
        %1889 = vmatprep.subr.mxu0 0.0
        %1890 = vmatpush1.msra.mxu0 0.0
        %1891 = vmatprep.subr.mxu0 0.0
        %1892 = vmatpush1.msra.mxu0 0.0
        %1893 = vmatprep.subr.mxu0 0.0
        %1894 = vmatpush1.msra.mxu0 0.0
        %1895 = vmatprep.subr.mxu0 0.0
        %1896 = vmatpush1.msra.mxu0 0.0
        %1897 = vmatprep.subr.mxu0 0.0
        %1898 = vmatpush1.msra.mxu0 0.0
        %1899 = vmatprep.subr.mxu0 0.0
        %1900 = vmatpush1.msra.mxu0 0.0
        %1901 = vmatprep.subr.mxu0 0.0
        %1902 = vmatpush1.msra.mxu0 0.0
        %1903 = vmatprep.subr.mxu0 0.0
        %1904 = vmatpush1.msra.mxu0 0.0
        %1905 = vmatprep.subr.mxu0 0.0
        %1906 = vmatpush1.msra.mxu0 0.0
        %1907 = vmatprep.subr.mxu0 0.0
        %1908 = vmatpush1.msra.mxu0 0.0
        %1909 = vmatprep.subr.mxu0 0.0
        %1910 = vmatpush1.msra.mxu0 0.0
        %1911 = vmatprep.subr.mxu0 0.0
        %1912 = vmatpush1.msra.mxu0 0.0
        %1913 = vmatprep.subr.mxu0 0.0
        %1914 = vmatpush1.msra.mxu0 0.0
        %1915 = vmatprep.subr.mxu0 0.0
        %1916 = vmatpush1.msra.mxu0 0.0
        %1917 = vmatprep.subr.mxu0 0.0
        %1918 = vmatpush1.msra.mxu0 0.0
        %1919 = vmatprep.subr.mxu0 0.0
        %1920 = vmatpush1.msra.mxu0 0.0
        %1921 = vmatprep.subr.mxu0 0.0
        %1922 = vmatpush1.msra.mxu0 0.0
        %1923 = vmatprep.subr.mxu0 0.0
        %1924 = vmatpush1.msra.mxu0 0.0
        %1925 = vmatprep.subr.mxu0 0.0
        %1926 = vmatpush1.msra.mxu0 0.0
        %1927 = vmatprep.subr.mxu0 0.0
        %1928 = vmatpush1.msra.mxu0 0.0
        %1929 = vmatprep.subr.mxu0 0.0
        %1930 = vmatpush1.msra.mxu0 0.0
        %1931 = vmatprep.subr.mxu0 0.0
        %1932 = vmatpush1.msra.mxu0 0.0
        %1933 = vmatprep.subr.mxu0 0.0
        %1934 = vmatpush1.msra.mxu0 0.0
        %1935 = vmatprep.subr.mxu0 0.0
        %1936 = vmatpush1.msra.mxu0 0.0
        %1937 = vmatprep.mubr.f32.mxu0 0.0
        %1938 = vmatmul.mubr.f32.gmra.mrb[0].mxu0 %v1871
        %v1939 = vpop.f32.mrb[0].mxu0
        %v1940 = vadd.f32 0.0, %v1939
        %v1941 = vpop.f32.mrb[0].mxu0
        %1942 = vdwg.mxu0
        %1943 = vrot.lane.b32.xlu0 %v1684, 120
        %v1944 = vpop.permute.xlu0 %1943
        %1945 = vrot.lane.b32.xlu0 %v1776, 120
        %v1946 = vpop.permute.xlu0 %1945
        %v1947 = vsel %vm808, %v1944, 0
        %v1949 = vsel %vm808, %v1946, 0
        %1951 = vmatprep.subr.mxu0 0.0
        %1952 = vmatpush1.xpose.msra.mxu0 %v1949
        %1953 = vmatprep.subr.mxu0 0.0
        %1954 = vmatpush1.xpose.msra.mxu0 0.0
        %1955 = vmatprep.subr.mxu0 0.0
        %1956 = vmatpush1.xpose.msra.mxu0 0.0
        %1957 = vmatprep.subr.mxu0 0.0
        %1958 = vmatpush1.xpose.msra.mxu0 0.0
        %1959 = vmatprep.subr.mxu0 0.0
        %1960 = vmatpush1.xpose.msra.mxu0 0.0
        %1961 = vmatprep.subr.mxu0 0.0
        %1962 = vmatpush1.xpose.msra.mxu0 0.0
        %1963 = vmatprep.subr.mxu0 0.0
        %1964 = vmatpush1.xpose.msra.mxu0 0.0
        %1965 = vmatprep.subr.mxu0 0.0
        %1966 = vmatpush1.xpose.msra.mxu0 0.0
        %1967 = vmatprep.subr.mxu0 0.0
        %1968 = vmatpush1.xpose.msra.mxu0 0.0
        %1969 = vmatprep.subr.mxu0 0.0
        %1970 = vmatpush1.xpose.msra.mxu0 0.0
        %1971 = vmatprep.subr.mxu0 0.0
        %1972 = vmatpush1.xpose.msra.mxu0 0.0
        %1973 = vmatprep.subr.mxu0 0.0
        %1974 = vmatpush1.xpose.msra.mxu0 0.0
        %1975 = vmatprep.subr.mxu0 0.0
        %1976 = vmatpush1.xpose.msra.mxu0 0.0
        %1977 = vmatprep.subr.mxu0 0.0
        %1978 = vmatpush1.xpose.msra.mxu0 0.0
        %1979 = vmatprep.subr.mxu0 0.0
        %1980 = vmatpush1.xpose.msra.mxu0 0.0
        %1981 = vmatprep.subr.mxu0 0.0
        %1982 = vmatpush1.xpose.msra.mxu0 0.0
        %1983 = vmatprep.subr.mxu0 0.0
        %1984 = vmatpush1.xpose.msra.mxu0 0.0
        %1985 = vmatprep.subr.mxu0 0.0
        %1986 = vmatpush1.xpose.msra.mxu0 0.0
        %1987 = vmatprep.subr.mxu0 0.0
        %1988 = vmatpush1.xpose.msra.mxu0 0.0
        %1989 = vmatprep.subr.mxu0 0.0
        %1990 = vmatpush1.xpose.msra.mxu0 0.0
        %1991 = vmatprep.subr.mxu0 0.0
        %1992 = vmatpush1.xpose.msra.mxu0 0.0
        %1993 = vmatprep.subr.mxu0 0.0
        %1994 = vmatpush1.xpose.msra.mxu0 0.0
        %1995 = vmatprep.subr.mxu0 0.0
        %1996 = vmatpush1.xpose.msra.mxu0 0.0
        %1997 = vmatprep.subr.mxu0 0.0
        %1998 = vmatpush1.xpose.msra.mxu0 0.0
        %1999 = vmatprep.subr.mxu0 0.0
        %2000 = vmatpush1.xpose.msra.mxu0 0.0
        %2001 = vmatprep.subr.mxu0 0.0
        %2002 = vmatpush1.xpose.msra.mxu0 0.0
        %2003 = vmatprep.subr.mxu0 0.0
        %2004 = vmatpush1.xpose.msra.mxu0 0.0
        %2005 = vmatprep.subr.mxu0 0.0
        %2006 = vmatpush1.xpose.msra.mxu0 0.0
        %2007 = vmatprep.subr.mxu0 0.0
        %2008 = vmatpush1.xpose.msra.mxu0 0.0
        %2009 = vmatprep.subr.mxu0 0.0
        %2010 = vmatpush1.xpose.msra.mxu0 0.0
        %2011 = vmatprep.subr.mxu0 0.0
        %2012 = vmatpush1.xpose.msra.mxu0 0.0
        %2013 = vmatprep.subr.mxu0 0.0
        %2014 = vmatpush1.xpose.msra.mxu0 0.0
        %2015 = vmatprep.mubr.f32.mxu0 0.0
        %2016 = vmatmul.mubr.f32.gmra.mrb[0].mxu0 %v1947
        %v2017 = vpop.f32.mrb[0].mxu0
        %v2018 = vadd.f32 0.0, %v2017
        %v2019 = vpop.f32.mrb[0].mxu0
        %2020 = vdwg.mxu0
        %v2021 = vmul.f32 %v2018, 0.35355338
        %v2022 = vsel %vm808, %v2021, -inf
        %2023 = vmax.xlane.f32.xlu0 %v2022
        %v2024 = vpop.xlane.xlu0 %2023
        %v2025 = vsub.f32 %v2021, %v2024
        %v2026 = vmul.f32 %v2025, 1.442695
        %v2027 = vpow.pop %v2026
        %v2028 = vsel %vm808, %v2027, 0.0
        %2029 = vadd.xlane.f32.xlu0 %v2028
        %v2030 = vpop.xlane.xlu0 %2029
        %v2031 = vrcp.pop %v2030
        %v2032 = vmul.f32 %v2027, %v2031
        %2033 = vrot.lane.b32.xlu0 %v1776, 88
        %v2034 = vpop.permute.xlu0 %2033
        %v2037 = vsel %vm808, %v2032, 0
        %2039 = vmatprep.subr.mxu0 0.0
        %2040 = vmatpush1.msra.mxu0 %v2034
        %2041 = vmatprep.subr.mxu0 0.0
        %2042 = vmatpush1.msra.mxu0 0.0
        %2043 = vmatprep.subr.mxu0 0.0
        %2044 = vmatpush1.msra.mxu0 0.0
        %2045 = vmatprep.subr.mxu0 0.0
        %2046 = vmatpush1.msra.mxu0 0.0
        %2047 = vmatprep.subr.mxu0 0.0
        %2048 = vmatpush1.msra.mxu0 0.0
        %2049 = vmatprep.subr.mxu0 0.0
        %2050 = vmatpush1.msra.mxu0 0.0
        %2051 = vmatprep.subr.mxu0 0.0
        %2052 = vmatpush1.msra.mxu0 0.0
        %2053 = vmatprep.subr.mxu0 0.0
        %2054 = vmatpush1.msra.mxu0 0.0
        %2055 = vmatprep.subr.mxu0 0.0
        %2056 = vmatpush1.msra.mxu0 0.0
        %2057 = vmatprep.subr.mxu0 0.0
        %2058 = vmatpush1.msra.mxu0 0.0
        %2059 = vmatprep.subr.mxu0 0.0
        %2060 = vmatpush1.msra.mxu0 0.0
        %2061 = vmatprep.subr.mxu0 0.0
        %2062 = vmatpush1.msra.mxu0 0.0
        %2063 = vmatprep.subr.mxu0 0.0
        %2064 = vmatpush1.msra.mxu0 0.0
        %2065 = vmatprep.subr.mxu0 0.0
        %2066 = vmatpush1.msra.mxu0 0.0
        %2067 = vmatprep.subr.mxu0 0.0
        %2068 = vmatpush1.msra.mxu0 0.0
        %2069 = vmatprep.subr.mxu0 0.0
        %2070 = vmatpush1.msra.mxu0 0.0
        %2071 = vmatprep.subr.mxu0 0.0
        %2072 = vmatpush1.msra.mxu0 0.0
        %2073 = vmatprep.subr.mxu0 0.0
        %2074 = vmatpush1.msra.mxu0 0.0
        %2075 = vmatprep.subr.mxu0 0.0
        %2076 = vmatpush1.msra.mxu0 0.0
        %2077 = vmatprep.subr.mxu0 0.0
        %2078 = vmatpush1.msra.mxu0 0.0
        %2079 = vmatprep.subr.mxu0 0.0
        %2080 = vmatpush1.msra.mxu0 0.0
        %2081 = vmatprep.subr.mxu0 0.0
        %2082 = vmatpush1.msra.mxu0 0.0
        %2083 = vmatprep.subr.mxu0 0.0
        %2084 = vmatpush1.msra.mxu0 0.0
        %2085 = vmatprep.subr.mxu0 0.0
        %2086 = vmatpush1.msra.mxu0 0.0
        %2087 = vmatprep.subr.mxu0 0.0
        %2088 = vmatpush1.msra.mxu0 0.0
        %2089 = vmatprep.subr.mxu0 0.0
        %2090 = vmatpush1.msra.mxu0 0.0
        %2091 = vmatprep.subr.mxu0 0.0
        %2092 = vmatpush1.msra.mxu0 0.0
        %2093 = vmatprep.subr.mxu0 0.0
        %2094 = vmatpush1.msra.mxu0 0.0
        %2095 = vmatprep.subr.mxu0 0.0
        %2096 = vmatpush1.msra.mxu0 0.0
        %2097 = vmatprep.subr.mxu0 0.0
        %2098 = vmatpush1.msra.mxu0 0.0
        %2099 = vmatprep.subr.mxu0 0.0
        %2100 = vmatpush1.msra.mxu0 0.0
        %2101 = vmatprep.subr.mxu0 0.0
        %2102 = vmatpush1.msra.mxu0 0.0
        %2103 = vmatprep.mubr.f32.mxu0 0.0
        %2104 = vmatmul.mubr.f32.gmra.mrb[0].mxu0 %v2037
        %v2105 = vpop.f32.mrb[0].mxu0
        %v2106 = vadd.f32 0.0, %v2105
        %v2107 = vpop.f32.mrb[0].mxu0
        %2108 = vdwg.mxu0
        %2109 = vrot.lane.b32.xlu0 %v1684, 112
        %v2110 = vpop.permute.xlu0 %2109
        %2111 = vrot.lane.b32.xlu0 %v1776, 112
        %v2112 = vpop.permute.xlu0 %2111
        %v2113 = vsel %vm808, %v2110, 0
        %v2115 = vsel %vm808, %v2112, 0
        %2117 = vmatprep.subr.mxu0 0.0
        %2118 = vmatpush1.xpose.msra.mxu0 %v2115
        %2119 = vmatprep.subr.mxu0 0.0
        %2120 = vmatpush1.xpose.msra.mxu0 0.0
        %2121 = vmatprep.subr.mxu0 0.0
        %2122 = vmatpush1.xpose.msra.mxu0 0.0
        %2123 = vmatprep.subr.mxu0 0.0
        %2124 = vmatpush1.xpose.msra.mxu0 0.0
        %2125 = vmatprep.subr.mxu0 0.0
        %2126 = vmatpush1.xpose.msra.mxu0 0.0
        %2127 = vmatprep.subr.mxu0 0.0
        %2128 = vmatpush1.xpose.msra.mxu0 0.0
        %2129 = vmatprep.subr.mxu0 0.0
        %2130 = vmatpush1.xpose.msra.mxu0 0.0
        %2131 = vmatprep.subr.mxu0 0.0
        %2132 = vmatpush1.xpose.msra.mxu0 0.0
        %2133 = vmatprep.subr.mxu0 0.0
        %2134 = vmatpush1.xpose.msra.mxu0 0.0
        %2135 = vmatprep.subr.mxu0 0.0
        %2136 = vmatpush1.xpose.msra.mxu0 0.0
        %2137 = vmatprep.subr.mxu0 0.0
        %2138 = vmatpush1.xpose.msra.mxu0 0.0
        %2139 = vmatprep.subr.mxu0 0.0
        %2140 = vmatpush1.xpose.msra.mxu0 0.0
        %2141 = vmatprep.subr.mxu0 0.0
        %2142 = vmatpush1.xpose.msra.mxu0 0.0
        %2143 = vmatprep.subr.mxu0 0.0
        %2144 = vmatpush1.xpose.msra.mxu0 0.0
        %2145 = vmatprep.subr.mxu0 0.0
        %2146 = vmatpush1.xpose.msra.mxu0 0.0
        %2147 = vmatprep.subr.mxu0 0.0
        %2148 = vmatpush1.xpose.msra.mxu0 0.0
        %2149 = vmatprep.subr.mxu0 0.0
        %2150 = vmatpush1.xpose.msra.mxu0 0.0
        %2151 = vmatprep.subr.mxu0 0.0
        %2152 = vmatpush1.xpose.msra.mxu0 0.0
        %2153 = vmatprep.subr.mxu0 0.0
        %2154 = vmatpush1.xpose.msra.mxu0 0.0
        %2155 = vmatprep.subr.mxu0 0.0
        %2156 = vmatpush1.xpose.msra.mxu0 0.0
        %2157 = vmatprep.subr.mxu0 0.0
        %2158 = vmatpush1.xpose.msra.mxu0 0.0
        %2159 = vmatprep.subr.mxu0 0.0
        %2160 = vmatpush1.xpose.msra.mxu0 0.0
        %2161 = vmatprep.subr.mxu0 0.0
        %2162 = vmatpush1.xpose.msra.mxu0 0.0
        %2163 = vmatprep.subr.mxu0 0.0
        %2164 = vmatpush1.xpose.msra.mxu0 0.0
        %2165 = vmatprep.subr.mxu0 0.0
        %2166 = vmatpush1.xpose.msra.mxu0 0.0
        %2167 = vmatprep.subr.mxu0 0.0
        %2168 = vmatpush1.xpose.msra.mxu0 0.0
        %2169 = vmatprep.subr.mxu0 0.0
        %2170 = vmatpush1.xpose.msra.mxu0 0.0
        %2171 = vmatprep.subr.mxu0 0.0
        %2172 = vmatpush1.xpose.msra.mxu0 0.0
        %2173 = vmatprep.subr.mxu0 0.0
        %2174 = vmatpush1.xpose.msra.mxu0 0.0
        %2175 = vmatprep.subr.mxu0 0.0
        %2176 = vmatpush1.xpose.msra.mxu0 0.0
        %2177 = vmatprep.subr.mxu0 0.0
        %2178 = vmatpush1.xpose.msra.mxu0 0.0
        %2179 = vmatprep.subr.mxu0 0.0
        %2180 = vmatpush1.xpose.msra.mxu0 0.0
        %2181 = vmatprep.mubr.f32.mxu0 0.0
        %2182 = vmatmul.mubr.f32.gmra.mrb[0].mxu0 %v2113
        %v2183 = vpop.f32.mrb[0].mxu0
        %v2184 = vadd.f32 0.0, %v2183
        %v2185 = vpop.f32.mrb[0].mxu0
        %2186 = vdwg.mxu0
        %v2187 = vmul.f32 %v2184, 0.35355338
        %v2188 = vsel %vm808, %v2187, -inf
        %2189 = vmax.xlane.f32.xlu0 %v2188
        %v2190 = vpop.xlane.xlu0 %2189
        %v2191 = vsub.f32 %v2187, %v2190
        %v2192 = vmul.f32 %v2191, 1.442695
        %v2193 = vpow.pop %v2192
        %v2194 = vsel %vm808, %v2193, 0.0
        %2195 = vadd.xlane.f32.xlu0 %v2194
        %v2196 = vpop.xlane.xlu0 %2195
        %v2197 = vrcp.pop %v2196
        %v2198 = vmul.f32 %v2193, %v2197
        %2199 = vrot.lane.b32.xlu0 %v1776, 80
        %v2200 = vpop.permute.xlu0 %2199
        %v2203 = vsel %vm808, %v2198, 0
        %2205 = vmatprep.subr.mxu0 0.0
        %2206 = vmatpush1.msra.mxu0 %v2200
        %2207 = vmatprep.subr.mxu0 0.0
        %2208 = vmatpush1.msra.mxu0 0.0
        %2209 = vmatprep.subr.mxu0 0.0
        %2210 = vmatpush1.msra.mxu0 0.0
        %2211 = vmatprep.subr.mxu0 0.0
        %2212 = vmatpush1.msra.mxu0 0.0
        %2213 = vmatprep.subr.mxu0 0.0
        %2214 = vmatpush1.msra.mxu0 0.0
        %2215 = vmatprep.subr.mxu0 0.0
        %2216 = vmatpush1.msra.mxu0 0.0
        %2217 = vmatprep.subr.mxu0 0.0
        %2218 = vmatpush1.msra.mxu0 0.0
        %2219 = vmatprep.subr.mxu0 0.0
        %2220 = vmatpush1.msra.mxu0 0.0
        %2221 = vmatprep.subr.mxu0 0.0
        %2222 = vmatpush1.msra.mxu0 0.0
        %2223 = vmatprep.subr.mxu0 0.0
        %2224 = vmatpush1.msra.mxu0 0.0
        %2225 = vmatprep.subr.mxu0 0.0
        %2226 = vmatpush1.msra.mxu0 0.0
        %2227 = vmatprep.subr.mxu0 0.0
        %2228 = vmatpush1.msra.mxu0 0.0
        %2229 = vmatprep.subr.mxu0 0.0
        %2230 = vmatpush1.msra.mxu0 0.0
        %2231 = vmatprep.subr.mxu0 0.0
        %2232 = vmatpush1.msra.mxu0 0.0
        %2233 = vmatprep.subr.mxu0 0.0
        %2234 = vmatpush1.msra.mxu0 0.0
        %2235 = vmatprep.subr.mxu0 0.0
        %2236 = vmatpush1.msra.mxu0 0.0
        %2237 = vmatprep.subr.mxu0 0.0
        %2238 = vmatpush1.msra.mxu0 0.0
        %2239 = vmatprep.subr.mxu0 0.0
        %2240 = vmatpush1.msra.mxu0 0.0
        %2241 = vmatprep.subr.mxu0 0.0
        %2242 = vmatpush1.msra.mxu0 0.0
        %2243 = vmatprep.subr.mxu0 0.0
        %2244 = vmatpush1.msra.mxu0 0.0
        %2245 = vmatprep.subr.mxu0 0.0
        %2246 = vmatpush1.msra.mxu0 0.0
        %2247 = vmatprep.subr.mxu0 0.0
        %2248 = vmatpush1.msra.mxu0 0.0
        %2249 = vmatprep.subr.mxu0 0.0
        %2250 = vmatpush1.msra.mxu0 0.0
        %2251 = vmatprep.subr.mxu0 0.0
        %2252 = vmatpush1.msra.mxu0 0.0
        %2253 = vmatprep.subr.mxu0 0.0
        %2254 = vmatpush1.msra.mxu0 0.0
        %2255 = vmatprep.subr.mxu0 0.0
        %2256 = vmatpush1.msra.mxu0 0.0
        %2257 = vmatprep.subr.mxu0 0.0
        %2258 = vmatpush1.msra.mxu0 0.0
        %2259 = vmatprep.subr.mxu0 0.0
        %2260 = vmatpush1.msra.mxu0 0.0
        %2261 = vmatprep.subr.mxu0 0.0
        %2262 = vmatpush1.msra.mxu0 0.0
        %2263 = vmatprep.subr.mxu0 0.0
        %2264 = vmatpush1.msra.mxu0 0.0
        %2265 = vmatprep.subr.mxu0 0.0
        %2266 = vmatpush1.msra.mxu0 0.0
        %2267 = vmatprep.subr.mxu0 0.0
        %2268 = vmatpush1.msra.mxu0 0.0
        %2269 = vmatprep.mubr.f32.mxu0 0.0
        %2270 = vmatmul.mubr.f32.gmra.mrb[0].mxu0 %v2203
        %v2271 = vpop.f32.mrb[0].mxu0
        %v2272 = vadd.f32 0.0, %v2271
        %v2273 = vpop.f32.mrb[0].mxu0
        %2274 = vdwg.mxu0
        %2275 = vrot.lane.b32.xlu0 %v1684, 104
        %v2276 = vpop.permute.xlu0 %2275
        %2277 = vrot.lane.b32.xlu0 %v1776, 104
        %v2278 = vpop.permute.xlu0 %2277
        %v2279 = vsel %vm808, %v2276, 0
        %v2281 = vsel %vm808, %v2278, 0
        %2283 = vmatprep.subr.mxu0 0.0
        %2284 = vmatpush1.xpose.msra.mxu0 %v2281
        %2285 = vmatprep.subr.mxu0 0.0
        %2286 = vmatpush1.xpose.msra.mxu0 0.0
        %2287 = vmatprep.subr.mxu0 0.0
        %2288 = vmatpush1.xpose.msra.mxu0 0.0
        %2289 = vmatprep.subr.mxu0 0.0
        %2290 = vmatpush1.xpose.msra.mxu0 0.0
        %2291 = vmatprep.subr.mxu0 0.0
        %2292 = vmatpush1.xpose.msra.mxu0 0.0
        %2293 = vmatprep.subr.mxu0 0.0
        %2294 = vmatpush1.xpose.msra.mxu0 0.0
        %2295 = vmatprep.subr.mxu0 0.0
        %2296 = vmatpush1.xpose.msra.mxu0 0.0
        %2297 = vmatprep.subr.mxu0 0.0
        %2298 = vmatpush1.xpose.msra.mxu0 0.0
        %2299 = vmatprep.subr.mxu0 0.0
        %2300 = vmatpush1.xpose.msra.mxu0 0.0
        %2301 = vmatprep.subr.mxu0 0.0
        %2302 = vmatpush1.xpose.msra.mxu0 0.0
        %2303 = vmatprep.subr.mxu0 0.0
        %2304 = vmatpush1.xpose.msra.mxu0 0.0
        %2305 = vmatprep.subr.mxu0 0.0
        %2306 = vmatpush1.xpose.msra.mxu0 0.0
        %2307 = vmatprep.subr.mxu0 0.0
        %2308 = vmatpush1.xpose.msra.mxu0 0.0
        %2309 = vmatprep.subr.mxu0 0.0
        %2310 = vmatpush1.xpose.msra.mxu0 0.0
        %2311 = vmatprep.subr.mxu0 0.0
        %2312 = vmatpush1.xpose.msra.mxu0 0.0
        %2313 = vmatprep.subr.mxu0 0.0
        %2314 = vmatpush1.xpose.msra.mxu0 0.0
        %2315 = vmatprep.subr.mxu0 0.0
        %2316 = vmatpush1.xpose.msra.mxu0 0.0
        %2317 = vmatprep.subr.mxu0 0.0
        %2318 = vmatpush1.xpose.msra.mxu0 0.0
        %2319 = vmatprep.subr.mxu0 0.0
        %2320 = vmatpush1.xpose.msra.mxu0 0.0
        %2321 = vmatprep.subr.mxu0 0.0
        %2322 = vmatpush1.xpose.msra.mxu0 0.0
        %2323 = vmatprep.subr.mxu0 0.0
        %2324 = vmatpush1.xpose.msra.mxu0 0.0
        %2325 = vmatprep.subr.mxu0 0.0
        %2326 = vmatpush1.xpose.msra.mxu0 0.0
        %2327 = vmatprep.subr.mxu0 0.0
        %2328 = vmatpush1.xpose.msra.mxu0 0.0
        %2329 = vmatprep.subr.mxu0 0.0
        %2330 = vmatpush1.xpose.msra.mxu0 0.0
        %2331 = vmatprep.subr.mxu0 0.0
        %2332 = vmatpush1.xpose.msra.mxu0 0.0
        %2333 = vmatprep.subr.mxu0 0.0
        %2334 = vmatpush1.xpose.msra.mxu0 0.0
        %2335 = vmatprep.subr.mxu0 0.0
        %2336 = vmatpush1.xpose.msra.mxu0 0.0
        %2337 = vmatprep.subr.mxu0 0.0
        %2338 = vmatpush1.xpose.msra.mxu0 0.0
        %2339 = vmatprep.subr.mxu0 0.0
        %2340 = vmatpush1.xpose.msra.mxu0 0.0
        %2341 = vmatprep.subr.mxu0 0.0
        %2342 = vmatpush1.xpose.msra.mxu0 0.0
        %2343 = vmatprep.subr.mxu0 0.0
        %2344 = vmatpush1.xpose.msra.mxu0 0.0
        %2345 = vmatprep.subr.mxu0 0.0
        %2346 = vmatpush1.xpose.msra.mxu0 0.0
        %2347 = vmatprep.mubr.f32.mxu0 0.0
        %2348 = vmatmul.mubr.f32.gmra.mrb[0].mxu0 %v2279
        %v2349 = vpop.f32.mrb[0].mxu0
        %v2350 = vadd.f32 0.0, %v2349
        %v2351 = vpop.f32.mrb[0].mxu0
        %2352 = vdwg.mxu0
        %v2353 = vmul.f32 %v2350, 0.35355338
        %v2354 = vsel %vm808, %v2353, -inf
        %2355 = vmax.xlane.f32.xlu0 %v2354
        %v2356 = vpop.xlane.xlu0 %2355
        %v2357 = vsub.f32 %v2353, %v2356
        %v2358 = vmul.f32 %v2357, 1.442695
        %v2359 = vpow.pop %v2358
        %v2360 = vsel %vm808, %v2359, 0.0
        %2361 = vadd.xlane.f32.xlu0 %v2360
        %v2362 = vpop.xlane.xlu0 %2361
        %v2363 = vrcp.pop %v2362
        %v2364 = vmul.f32 %v2359, %v2363
        %2365 = vrot.lane.b32.xlu0 %v1776, 72
        %v2366 = vpop.permute.xlu0 %2365
        %v2369 = vsel %vm808, %v2364, 0
        %2371 = vmatprep.subr.mxu0 0.0
        %2372 = vmatpush1.msra.mxu0 %v2366
        %2373 = vmatprep.subr.mxu0 0.0
        %2374 = vmatpush1.msra.mxu0 0.0
        %2375 = vmatprep.subr.mxu0 0.0
        %2376 = vmatpush1.msra.mxu0 0.0
        %2377 = vmatprep.subr.mxu0 0.0
        %2378 = vmatpush1.msra.mxu0 0.0
        %2379 = vmatprep.subr.mxu0 0.0
        %2380 = vmatpush1.msra.mxu0 0.0
        %2381 = vmatprep.subr.mxu0 0.0
        %2382 = vmatpush1.msra.mxu0 0.0
        %2383 = vmatprep.subr.mxu0 0.0
        %2384 = vmatpush1.msra.mxu0 0.0
        %2385 = vmatprep.subr.mxu0 0.0
        %2386 = vmatpush1.msra.mxu0 0.0
        %2387 = vmatprep.subr.mxu0 0.0
        %2388 = vmatpush1.msra.mxu0 0.0
        %2389 = vmatprep.subr.mxu0 0.0
        %2390 = vmatpush1.msra.mxu0 0.0
        %2391 = vmatprep.subr.mxu0 0.0
        %2392 = vmatpush1.msra.mxu0 0.0
        %2393 = vmatprep.subr.mxu0 0.0
        %2394 = vmatpush1.msra.mxu0 0.0
        %2395 = vmatprep.subr.mxu0 0.0
        %2396 = vmatpush1.msra.mxu0 0.0
        %2397 = vmatprep.subr.mxu0 0.0
        %2398 = vmatpush1.msra.mxu0 0.0
        %2399 = vmatprep.subr.mxu0 0.0
        %2400 = vmatpush1.msra.mxu0 0.0
        %2401 = vmatprep.subr.mxu0 0.0
        %2402 = vmatpush1.msra.mxu0 0.0
        %2403 = vmatprep.subr.mxu0 0.0
        %2404 = vmatpush1.msra.mxu0 0.0
        %2405 = vmatprep.subr.mxu0 0.0
        %2406 = vmatpush1.msra.mxu0 0.0
        %2407 = vmatprep.subr.mxu0 0.0
        %2408 = vmatpush1.msra.mxu0 0.0
        %2409 = vmatprep.subr.mxu0 0.0
        %2410 = vmatpush1.msra.mxu0 0.0
        %2411 = vmatprep.subr.mxu0 0.0
        %2412 = vmatpush1.msra.mxu0 0.0
        %2413 = vmatprep.subr.mxu0 0.0
        %2414 = vmatpush1.msra.mxu0 0.0
        %2415 = vmatprep.subr.mxu0 0.0
        %2416 = vmatpush1.msra.mxu0 0.0
        %2417 = vmatprep.subr.mxu0 0.0
        %2418 = vmatpush1.msra.mxu0 0.0
        %2419 = vmatprep.subr.mxu0 0.0
        %2420 = vmatpush1.msra.mxu0 0.0
        %2421 = vmatprep.subr.mxu0 0.0
        %2422 = vmatpush1.msra.mxu0 0.0
        %2423 = vmatprep.subr.mxu0 0.0
        %2424 = vmatpush1.msra.mxu0 0.0
        %2425 = vmatprep.subr.mxu0 0.0
        %2426 = vmatpush1.msra.mxu0 0.0
        %2427 = vmatprep.subr.mxu0 0.0
        %2428 = vmatpush1.msra.mxu0 0.0
        %2429 = vmatprep.subr.mxu0 0.0
        %2430 = vmatpush1.msra.mxu0 0.0
        %2431 = vmatprep.subr.mxu0 0.0
        %2432 = vmatpush1.msra.mxu0 0.0
        %2433 = vmatprep.subr.mxu0 0.0
        %2434 = vmatpush1.msra.mxu0 0.0
        %2435 = vmatprep.mubr.f32.mxu0 0.0
        %2436 = vmatmul.mubr.f32.gmra.mrb[0].mxu0 %v2369
        %v2437 = vpop.f32.mrb[0].mxu0
        %v2438 = vadd.f32 0.0, %v2437
        %v2439 = vpop.f32.mrb[0].mxu0
        %2440 = vdwg.mxu0
        %2442 = vrot.lane.b32.xlu0 %v2106, 8
        %v2443 = vpop.permute.xlu0 %2442
        %2446 = vrot.lane.b32.xlu0 %v2272, 16
        %v2447 = vpop.permute.xlu0 %2446
        %2450 = vrot.lane.b32.xlu0 %v2438, 24
        %v2451 = vpop.permute.xlu0 %2450
        %v2453 = vsel %vm808, %v1940, %v2443
        %v2454 = vsel %vm1482, %v2453, %v2447
        %v2455 = vsel %vm1484, %v2454, %v2451
        %s2456 = scalar_lea.vmem %s6, 32
        %v2457 = vld [vmem:[%s2456] sm:$0xff]
        %v2458 = vld [vmem:[%s2456 + $0x8] sm:$0xff]
        %v2459 = vld [vmem:[%s2456 + $0x10] sm:$0xff]
        %v2460 = vld [vmem:[%s2456 + $0x18] sm:$0xff]
        %s2461 = scalar_lea.vmem [#allocation7], 1
        %v2462 = vld [vmem:[%s2461] sm:$0x1]
        %v2464 = vlaneseq
        %v2465 = vshrl.u32 %v2464, 7
        %v2466 = vsub.s32 0, %v2465
        %v2467 = vrot.slane %v2462, %v2466
        %v2470 = vsel %vm731, %v2455, 0
        %2472 = vmatprep.subr.mxu0 0.0
        %2473 = vmatpush1.msra.mxu0 %v2457
        %2474 = vmatprep.subr.mxu0 0.0
        %2475 = vmatpush1.msra.mxu0 %v2458
        %2476 = vmatprep.subr.mxu0 0.0
        %2477 = vmatpush1.msra.mxu0 %v2459
        %2478 = vmatprep.subr.mxu0 0.0
        %2479 = vmatpush1.msra.mxu0 %v2460
        %2480 = vmatprep.subr.mxu0 0.0
        %2481 = vmatpush1.msra.mxu0 0.0
        %2482 = vmatprep.subr.mxu0 0.0
        %2483 = vmatpush1.msra.mxu0 0.0
        %2484 = vmatprep.subr.mxu0 0.0
        %2485 = vmatpush1.msra.mxu0 0.0
        %2486 = vmatprep.subr.mxu0 0.0
        %2487 = vmatpush1.msra.mxu0 0.0
        %2488 = vmatprep.subr.mxu0 0.0
        %2489 = vmatpush1.msra.mxu0 0.0
        %2490 = vmatprep.subr.mxu0 0.0
        %2491 = vmatpush1.msra.mxu0 0.0
        %2492 = vmatprep.subr.mxu0 0.0
        %2493 = vmatpush1.msra.mxu0 0.0
        %2494 = vmatprep.subr.mxu0 0.0
        %2495 = vmatpush1.msra.mxu0 0.0
        %2496 = vmatprep.subr.mxu0 0.0
        %2497 = vmatpush1.msra.mxu0 0.0
        %2498 = vmatprep.subr.mxu0 0.0
        %2499 = vmatpush1.msra.mxu0 0.0
        %2500 = vmatprep.subr.mxu0 0.0
        %2501 = vmatpush1.msra.mxu0 0.0
        %2502 = vmatprep.subr.mxu0 0.0
        %2503 = vmatpush1.msra.mxu0 0.0
        %2504 = vmatprep.subr.mxu0 0.0
        %2505 = vmatpush1.msra.mxu0 0.0
        %2506 = vmatprep.subr.mxu0 0.0
        %2507 = vmatpush1.msra.mxu0 0.0
        %2508 = vmatprep.subr.mxu0 0.0
        %2509 = vmatpush1.msra.mxu0 0.0
        %2510 = vmatprep.subr.mxu0 0.0
        %2511 = vmatpush1.msra.mxu0 0.0
        %2512 = vmatprep.subr.mxu0 0.0
        %2513 = vmatpush1.msra.mxu0 0.0
        %2514 = vmatprep.subr.mxu0 0.0
        %2515 = vmatpush1.msra.mxu0 0.0
        %2516 = vmatprep.subr.mxu0 0.0
        %2517 = vmatpush1.msra.mxu0 0.0
        %2518 = vmatprep.subr.mxu0 0.0
        %2519 = vmatpush1.msra.mxu0 0.0
        %2520 = vmatprep.subr.mxu0 0.0
        %2521 = vmatpush1.msra.mxu0 0.0
        %2522 = vmatprep.subr.mxu0 0.0
        %2523 = vmatpush1.msra.mxu0 0.0
        %2524 = vmatprep.subr.mxu0 0.0
        %2525 = vmatpush1.msra.mxu0 0.0
        %2526 = vmatprep.subr.mxu0 0.0
        %2527 = vmatpush1.msra.mxu0 0.0
        %2528 = vmatprep.subr.mxu0 0.0
        %2529 = vmatpush1.msra.mxu0 0.0
        %2530 = vmatprep.subr.mxu0 0.0
        %2531 = vmatpush1.msra.mxu0 0.0
        %2532 = vmatprep.subr.mxu0 0.0
        %2533 = vmatpush1.msra.mxu0 0.0
        %2534 = vmatprep.subr.mxu0 0.0
        %2535 = vmatpush1.msra.mxu0 0.0
        %2536 = vmatprep.mubr.f32.mxu0 0.0
        %2537 = vmatmul.mubr.f32.gmra.mrb[0].mxu0 %v2470
        %v2538 = vpop.f32.mrb[0].mxu0
        %v2539 = vadd.f32 %v2467, %v2538
        %v2540 = vpop.f32.mrb[0].mxu0
        %2541 = vdwg.mxu0
        %v2542 = vadd.f32 %v1600, %v2539
        %s2543 = scalar_lea.vmem %s12, 1
        %v2544 = vld [vmem:[%s2543] sm:$0x1]
        %s2545 = scalar_lea.vmem %s13, 1
        %v2546 = vld [vmem:[%s2545] sm:$0x1]
        %v2547 = vsel %vm731, %v2542, 0.0
        %2548 = vadd.xlane.f32.xlu0 %v2547
        %v2549 = vpop.xlane.xlu0 %2548
        %v2550 = vmul.f32 %v2549, %v1576
        %v2551 = vsub.f32 %v2542, %v2550
        %v2552 = vmul.f32 %v2551, %v2551
        %v2553 = vsel %vm731, %v2552, 0.0
        %2554 = vadd.xlane.f32.xlu0 %v2553
        %v2555 = vpop.xlane.xlu0 %2554
        %v2556 = vmul.f32 %v2555, %v1576
        %v2557 = vadd.f32 %v2556, 1e-05
        %v2558 = vrsqrt.pop %v2557
        %v2559 = vmul.f32 %v2551, %v2558
        %v2561 = vlaneseq
        %v2562 = vshrl.u32 %v2561, 7
        %v2563 = vsub.s32 0, %v2562
        %v2564 = vrot.slane %v2544, %v2563
        %v2566 = vmul.f32 %v2559, %v2564
        %v2568 = vlaneseq
        %v2569 = vshrl.u32 %v2568, 7
        %v2570 = vsub.s32 0, %v2569
        %v2571 = vrot.slane %v2546, %v2570
        %v2573 = vadd.f32 %v2566, %v2571
        %v2574 = vld [vmem:[%s8] sm:$0xff]
        %v2575 = vld [vmem:[%s8 + $0x8] sm:$0xff]
        %v2576 = vld [vmem:[%s8 + $0x10] sm:$0xff]
        %v2577 = vld [vmem:[%s8 + $0x18] sm:$0xff]
        %v2578 = vld [vmem:[#allocation8] sm:$0x1]
        %v2580 = vlaneseq
        %v2581 = vshrl.u32 %v2580, 7
        %v2582 = vsub.s32 0, %v2581
        %v2583 = vrot.slane %v2578, %v2582
        %v2586 = vsel %vm731, %v2573, 0
        %2588 = vmatprep.subr.mxu0 0.0
        %2589 = vmatpush1.msra.mxu0 %v2574
        %2590 = vmatprep.subr.mxu0 0.0
        %2591 = vmatpush1.msra.mxu0 %v2575
        %2592 = vmatprep.subr.mxu0 0.0
        %2593 = vmatpush1.msra.mxu0 %v2576
        %2594 = vmatprep.subr.mxu0 0.0
        %2595 = vmatpush1.msra.mxu0 %v2577
        %2596 = vmatprep.subr.mxu0 0.0
        %2597 = vmatpush1.msra.mxu0 0.0
        %2598 = vmatprep.subr.mxu0 0.0
        %2599 = vmatpush1.msra.mxu0 0.0
        %2600 = vmatprep.subr.mxu0 0.0
        %2601 = vmatpush1.msra.mxu0 0.0
        %2602 = vmatprep.subr.mxu0 0.0
        %2603 = vmatpush1.msra.mxu0 0.0
        %2604 = vmatprep.subr.mxu0 0.0
        %2605 = vmatpush1.msra.mxu0 0.0
        %2606 = vmatprep.subr.mxu0 0.0
        %2607 = vmatpush1.msra.mxu0 0.0
        %2608 = vmatprep.subr.mxu0 0.0
        %2609 = vmatpush1.msra.mxu0 0.0
        %2610 = vmatprep.subr.mxu0 0.0
        %2611 = vmatpush1.msra.mxu0 0.0
        %2612 = vmatprep.subr.mxu0 0.0
        %2613 = vmatpush1.msra.mxu0 0.0
        %2614 = vmatprep.subr.mxu0 0.0
        %2615 = vmatpush1.msra.mxu0 0.0
        %2616 = vmatprep.subr.mxu0 0.0
        %2617 = vmatpush1.msra.mxu0 0.0
        %2618 = vmatprep.subr.mxu0 0.0
        %2619 = vmatpush1.msra.mxu0 0.0
        %2620 = vmatprep.subr.mxu0 0.0
        %2621 = vmatpush1.msra.mxu0 0.0
        %2622 = vmatprep.subr.mxu0 0.0
        %2623 = vmatpush1.msra.mxu0 0.0
        %2624 = vmatprep.subr.mxu0 0.0
        %2625 = vmatpush1.msra.mxu0 0.0
        %2626 = vmatprep.subr.mxu0 0.0
        %2627 = vmatpush1.msra.mxu0 0.0
        %2628 = vmatprep.subr.mxu0 0.0
        %2629 = vmatpush1.msra.mxu0 0.0
        %2630 = vmatprep.subr.mxu0 0.0
        %2631 = vmatpush1.msra.mxu0 0.0
        %2632 = vmatprep.subr.mxu0 0.0
        %2633 = vmatpush1.msra.mxu0 0.0
        %2634 = vmatprep.subr.mxu0 0.0
        %2635 = vmatpush1.msra.mxu0 0.0
        %2636 = vmatprep.subr.mxu0 0.0
        %2637 = vmatpush1.msra.mxu0 0.0
        %2638 = vmatprep.subr.mxu0 0.0
        %2639 = vmatpush1.msra.mxu0 0.0
        %2640 = vmatprep.subr.mxu0 0.0
        %2641 = vmatpush1.msra.mxu0 0.0
        %2642 = vmatprep.subr.mxu0 0.0
        %2643 = vmatpush1.msra.mxu0 0.0
        %2644 = vmatprep.subr.mxu0 0.0
        %2645 = vmatpush1.msra.mxu0 0.0
        %2646 = vmatprep.subr.mxu0 0.0
        %2647 = vmatpush1.msra.mxu0 0.0
        %2648 = vmatprep.subr.mxu0 0.0
        %2649 = vmatpush1.msra.mxu0 0.0
        %2650 = vmatprep.subr.mxu0 0.0
        %2651 = vmatpush1.msra.mxu0 0.0
        %2652 = vmatprep.mubr.f32.mxu0 0.0
        %2653 = vmatmul.mubr.f32.gmra.mrb[0].mxu0 %v2586
        %v2654 = vpop.f32.mrb[0].mxu0
        %v2655 = vadd.f32 %v2583, %v2654
        %v2656 = vpop.f32.mrb[0].mxu0
        %2657 = vdwg.mxu0
        %v2658 = vmax.f32 %v2655, 0.0
        %v2659 = vld [vmem:[%s10] sm:$0xff]
        %v2660 = vld [vmem:[%s10 + $0x8] sm:$0xff]
        %v2661 = vld [vmem:[%s10 + $0x10] sm:$0xff]
        %v2662 = vld [vmem:[%s10 + $0x18] sm:$0xff]
        %v2663 = vld [vmem:[%s10 + $0x20] sm:$0xff]
        %v2664 = vld [vmem:[%s10 + $0x28] sm:$0xff]
        %v2665 = vld [vmem:[%s10 + $0x30] sm:$0xff]
        %v2666 = vld [vmem:[%s10 + $0x38] sm:$0xff]
        %v2667 = vld [vmem:[#allocation10] sm:$0x1]
        %v2669 = vlaneseq
        %v2670 = vshrl.u32 %v2669, 7
        %v2671 = vsub.s32 0, %v2670
        %v2672 = vrot.slane %v2667, %v2671
        %v2675 = vsel %vm645, %v2658, 0
        %2677 = vmatprep.subr.mxu0 0.0
        %2678 = vmatpush1.msra.mxu0 %v2659
        %2679 = vmatprep.subr.mxu0 0.0
        %2680 = vmatpush1.msra.mxu0 %v2660
        %2681 = vmatprep.subr.mxu0 0.0
        %2682 = vmatpush1.msra.mxu0 %v2661
        %2683 = vmatprep.subr.mxu0 0.0
        %2684 = vmatpush1.msra.mxu0 %v2662
        %2685 = vmatprep.subr.mxu0 0.0
        %2686 = vmatpush1.msra.mxu0 %v2663
        %2687 = vmatprep.subr.mxu0 0.0
        %2688 = vmatpush1.msra.mxu0 %v2664
        %2689 = vmatprep.subr.mxu0 0.0
        %2690 = vmatpush1.msra.mxu0 %v2665
        %2691 = vmatprep.subr.mxu0 0.0
        %2692 = vmatpush1.msra.mxu0 %v2666
        %2693 = vmatprep.subr.mxu0 0.0
        %2694 = vmatpush1.msra.mxu0 0.0
        %2695 = vmatprep.subr.mxu0 0.0
        %2696 = vmatpush1.msra.mxu0 0.0
        %2697 = vmatprep.subr.mxu0 0.0
        %2698 = vmatpush1.msra.mxu0 0.0
        %2699 = vmatprep.subr.mxu0 0.0
        %2700 = vmatpush1.msra.mxu0 0.0
        %2701 = vmatprep.subr.mxu0 0.0
        %2702 = vmatpush1.msra.mxu0 0.0
        %2703 = vmatprep.subr.mxu0 0.0
        %2704 = vmatpush1.msra.mxu0 0.0
        %2705 = vmatprep.subr.mxu0 0.0
        %2706 = vmatpush1.msra.mxu0 0.0
        %2707 = vmatprep.subr.mxu0 0.0
        %2708 = vmatpush1.msra.mxu0 0.0
        %2709 = vmatprep.subr.mxu0 0.0
        %2710 = vmatpush1.msra.mxu0 0.0
        %2711 = vmatprep.subr.mxu0 0.0
        %2712 = vmatpush1.msra.mxu0 0.0
        %2713 = vmatprep.subr.mxu0 0.0
        %2714 = vmatpush1.msra.mxu0 0.0
        %2715 = vmatprep.subr.mxu0 0.0
        %2716 = vmatpush1.msra.mxu0 0.0
        %2717 = vmatprep.subr.mxu0 0.0
        %2718 = vmatpush1.msra.mxu0 0.0
        %2719 = vmatprep.subr.mxu0 0.0
        %2720 = vmatpush1.msra.mxu0 0.0
        %2721 = vmatprep.subr.mxu0 0.0
        %2722 = vmatpush1.msra.mxu0 0.0
        %2723 = vmatprep.subr.mxu0 0.0
        %2724 = vmatpush1.msra.mxu0 0.0
        %2725 = vmatprep.subr.mxu0 0.0
        %2726 = vmatpush1.msra.mxu0 0.0
        %2727 = vmatprep.subr.mxu0 0.0
        %2728 = vmatpush1.msra.mxu0 0.0
        %2729 = vmatprep.subr.mxu0 0.0
        %2730 = vmatpush1.msra.mxu0 0.0
        %2731 = vmatprep.subr.mxu0 0.0
        %2732 = vmatpush1.msra.mxu0 0.0
        %2733 = vmatprep.subr.mxu0 0.0
        %2734 = vmatpush1.msra.mxu0 0.0
        %2735 = vmatprep.subr.mxu0 0.0
        %2736 = vmatpush1.msra.mxu0 0.0
        %2737 = vmatprep.subr.mxu0 0.0
        %2738 = vmatpush1.msra.mxu0 0.0
        %2739 = vmatprep.subr.mxu0 0.0
        %2740 = vmatpush1.msra.mxu0 0.0
        %2741 = vmatprep.mubr.f32.mxu0 0.0
        %2742 = vmatmul.mubr.f32.gmra.mrb[0].mxu0 %v2675
        %v2743 = vpop.f32.mrb[0].mxu0
        %v2744 = vadd.f32 %v2672, %v2743
        %v2745 = vpop.f32.mrb[0].mxu0
        %2746 = vdwg.mxu0
        %v2747 = vadd.f32 %v2573, %v2744
        %s2748 = scalar_lea.vmem %s12, 2
        %v2749 = vld [vmem:[%s2748] sm:$0x1]
        %s2750 = scalar_lea.vmem %s13, 2
        %v2751 = vld [vmem:[%s2750] sm:$0x1]
        %v2752 = vsel %vm731, %v2747, 0.0
        %2753 = vadd.xlane.f32.xlu0 %v2752
        %v2754 = vpop.xlane.xlu0 %2753
        %v2755 = vmul.f32 %v2754, %v1576
        %v2756 = vsub.f32 %v2747, %v2755
        %v2757 = vmul.f32 %v2756, %v2756
        %v2758 = vsel %vm731, %v2757, 0.0
        %2759 = vadd.xlane.f32.xlu0 %v2758
        %v2760 = vpop.xlane.xlu0 %2759
        %v2761 = vmul.f32 %v2760, %v1576
        %v2762 = vadd.f32 %v2761, 1e-05
        %v2763 = vrsqrt.pop %v2762
        %v2764 = vmul.f32 %v2756, %v2763
        %v2766 = vlaneseq
        %v2767 = vshrl.u32 %v2766, 7
        %v2768 = vsub.s32 0, %v2767
        %v2769 = vrot.slane %v2749, %v2768
        %v2771 = vmul.f32 %v2764, %v2769
        %v2773 = vlaneseq
        %v2774 = vshrl.u32 %v2773, 7
        %v2775 = vsub.s32 0, %v2774
        %v2776 = vrot.slane %v2751, %v2775
        %v2778 = vadd.f32 %v2771, %v2776
        %s2779 = scalar_lea.vmem %s4, 64
        %v2780 = vld [vmem:[%s2779] sm:$0xff]
        %v2781 = vld [vmem:[%s2779 + $0x8] sm:$0xff]
        %v2782 = vld [vmem:[%s2779 + $0x10] sm:$0xff]
        %v2783 = vld [vmem:[%s2779 + $0x18] sm:$0xff]
        %s2784 = scalar_lea.vmem [#allocation5], 2
        %v2785 = vld [vmem:[%s2784] sm:$0x1]
        %v2787 = vlaneseq
        %v2788 = vshrl.u32 %v2787, 7
        %v2789 = vsub.s32 0, %v2788
        %v2790 = vrot.slane %v2785, %v2789
        %v2793 = vsel %vm731, %v2778, 0
        %2795 = vmatprep.subr.mxu0 0.0
        %2796 = vmatpush1.msra.mxu0 %v2780
        %2797 = vmatprep.subr.mxu0 0.0
        %2798 = vmatpush1.msra.mxu0 %v2781
        %2799 = vmatprep.subr.mxu0 0.0
        %2800 = vmatpush1.msra.mxu0 %v2782
        %2801 = vmatprep.subr.mxu0 0.0
        %2802 = vmatpush1.msra.mxu0 %v2783
        %2803 = vmatprep.subr.mxu0 0.0
        %2804 = vmatpush1.msra.mxu0 0.0
        %2805 = vmatprep.subr.mxu0 0.0
        %2806 = vmatpush1.msra.mxu0 0.0
        %2807 = vmatprep.subr.mxu0 0.0
        %2808 = vmatpush1.msra.mxu0 0.0
        %2809 = vmatprep.subr.mxu0 0.0
        %2810 = vmatpush1.msra.mxu0 0.0
        %2811 = vmatprep.subr.mxu0 0.0
        %2812 = vmatpush1.msra.mxu0 0.0
        %2813 = vmatprep.subr.mxu0 0.0
        %2814 = vmatpush1.msra.mxu0 0.0
        %2815 = vmatprep.subr.mxu0 0.0
        %2816 = vmatpush1.msra.mxu0 0.0
        %2817 = vmatprep.subr.mxu0 0.0
        %2818 = vmatpush1.msra.mxu0 0.0
        %2819 = vmatprep.subr.mxu0 0.0
        %2820 = vmatpush1.msra.mxu0 0.0
        %2821 = vmatprep.subr.mxu0 0.0
        %2822 = vmatpush1.msra.mxu0 0.0
        %2823 = vmatprep.subr.mxu0 0.0
        %2824 = vmatpush1.msra.mxu0 0.0
        %2825 = vmatprep.subr.mxu0 0.0
        %2826 = vmatpush1.msra.mxu0 0.0
        %2827 = vmatprep.subr.mxu0 0.0
        %2828 = vmatpush1.msra.mxu0 0.0
        %2829 = vmatprep.subr.mxu0 0.0
        %2830 = vmatpush1.msra.mxu0 0.0
        %2831 = vmatprep.subr.mxu0 0.0
        %2832 = vmatpush1.msra.mxu0 0.0
        %2833 = vmatprep.subr.mxu0 0.0
        %2834 = vmatpush1.msra.mxu0 0.0
        %2835 = vmatprep.subr.mxu0 0.0
        %2836 = vmatpush1.msra.mxu0 0.0
        %2837 = vmatprep.subr.mxu0 0.0
        %2838 = vmatpush1.msra.mxu0 0.0
        %2839 = vmatprep.subr.mxu0 0.0
        %2840 = vmatpush1.msra.mxu0 0.0
        %2841 = vmatprep.subr.mxu0 0.0
        %2842 = vmatpush1.msra.mxu0 0.0
        %2843 = vmatprep.subr.mxu0 0.0
        %2844 = vmatpush1.msra.mxu0 0.0
        %2845 = vmatprep.subr.mxu0 0.0
        %2846 = vmatpush1.msra.mxu0 0.0
        %2847 = vmatprep.subr.mxu0 0.0
        %2848 = vmatpush1.msra.mxu0 0.0
        %2849 = vmatprep.subr.mxu0 0.0
        %2850 = vmatpush1.msra.mxu0 0.0
        %2851 = vmatprep.subr.mxu0 0.0
        %2852 = vmatpush1.msra.mxu0 0.0
        %2853 = vmatprep.subr.mxu0 0.0
        %2854 = vmatpush1.msra.mxu0 0.0
        %2855 = vmatprep.subr.mxu0 0.0
        %2856 = vmatpush1.msra.mxu0 0.0
        %2857 = vmatprep.subr.mxu0 0.0
        %2858 = vmatpush1.msra.mxu0 0.0
        %2859 = vmatprep.mubr.f32.mxu0 0.0
        %2860 = vmatmul.mubr.f32.gmra.mrb[0].mxu0 %v2793
        %v2861 = vpop.f32.mrb[0].mxu0
        %v2862 = vadd.f32 %v2790, %v2861
        %v2863 = vpop.f32.mrb[0].mxu0
        %2864 = vdwg.mxu0
        %2866 = vrot.lane.b32.xlu0 %v2862, 96
        %v2867 = vpop.permute.xlu0 %2866
        %v2868 = vsel %vm808, %v2862, 0
        %v2870 = vsel %vm808, %v2867, 0
        %2872 = vmatprep.subr.mxu0 0.0
        %2873 = vmatpush1.xpose.msra.mxu0 %v2870
        %2874 = vmatprep.subr.mxu0 0.0
        %2875 = vmatpush1.xpose.msra.mxu0 0.0
        %2876 = vmatprep.subr.mxu0 0.0
        %2877 = vmatpush1.xpose.msra.mxu0 0.0
        %2878 = vmatprep.subr.mxu0 0.0
        %2879 = vmatpush1.xpose.msra.mxu0 0.0
        %2880 = vmatprep.subr.mxu0 0.0
        %2881 = vmatpush1.xpose.msra.mxu0 0.0
        %2882 = vmatprep.subr.mxu0 0.0
        %2883 = vmatpush1.xpose.msra.mxu0 0.0
        %2884 = vmatprep.subr.mxu0 0.0
        %2885 = vmatpush1.xpose.msra.mxu0 0.0
        %2886 = vmatprep.subr.mxu0 0.0
        %2887 = vmatpush1.xpose.msra.mxu0 0.0
        %2888 = vmatprep.subr.mxu0 0.0
        %2889 = vmatpush1.xpose.msra.mxu0 0.0
        %2890 = vmatprep.subr.mxu0 0.0
        %2891 = vmatpush1.xpose.msra.mxu0 0.0
        %2892 = vmatprep.subr.mxu0 0.0
        %2893 = vmatpush1.xpose.msra.mxu0 0.0
        %2894 = vmatprep.subr.mxu0 0.0
        %2895 = vmatpush1.xpose.msra.mxu0 0.0
        %2896 = vmatprep.subr.mxu0 0.0
        %2897 = vmatpush1.xpose.msra.mxu0 0.0
        %2898 = vmatprep.subr.mxu0 0.0
        %2899 = vmatpush1.xpose.msra.mxu0 0.0
        %2900 = vmatprep.subr.mxu0 0.0
        %2901 = vmatpush1.xpose.msra.mxu0 0.0
        %2902 = vmatprep.subr.mxu0 0.0
        %2903 = vmatpush1.xpose.msra.mxu0 0.0
        %2904 = vmatprep.subr.mxu0 0.0
        %2905 = vmatpush1.xpose.msra.mxu0 0.0
        %2906 = vmatprep.subr.mxu0 0.0
        %2907 = vmatpush1.xpose.msra.mxu0 0.0
        %2908 = vmatprep.subr.mxu0 0.0
        %2909 = vmatpush1.xpose.msra.mxu0 0.0
        %2910 = vmatprep.subr.mxu0 0.0
        %2911 = vmatpush1.xpose.msra.mxu0 0.0
        %2912 = vmatprep.subr.mxu0 0.0
        %2913 = vmatpush1.xpose.msra.mxu0 0.0
        %2914 = vmatprep.subr.mxu0 0.0
        %2915 = vmatpush1.xpose.msra.mxu0 0.0
        %2916 = vmatprep.subr.mxu0 0.0
        %2917 = vmatpush1.xpose.msra.mxu0 0.0
        %2918 = vmatprep.subr.mxu0 0.0
        %2919 = vmatpush1.xpose.msra.mxu0 0.0
        %2920 = vmatprep.subr.mxu0 0.0
        %2921 = vmatpush1.xpose.msra.mxu0 0.0
        %2922 = vmatprep.subr.mxu0 0.0
        %2923 = vmatpush1.xpose.msra.mxu0 0.0
        %2924 = vmatprep.subr.mxu0 0.0
        %2925 = vmatpush1.xpose.msra.mxu0 0.0
        %2926 = vmatprep.subr.mxu0 0.0
        %2927 = vmatpush1.xpose.msra.mxu0 0.0
        %2928 = vmatprep.subr.mxu0 0.0
        %2929 = vmatpush1.xpose.msra.mxu0 0.0
        %2930 = vmatprep.subr.mxu0 0.0
        %2931 = vmatpush1.xpose.msra.mxu0 0.0
        %2932 = vmatprep.subr.mxu0 0.0
        %2933 = vmatpush1.xpose.msra.mxu0 0.0
        %2934 = vmatprep.subr.mxu0 0.0
        %2935 = vmatpush1.xpose.msra.mxu0 0.0
        %2936 = vmatprep.mubr.f32.mxu0 0.0
        %2937 = vmatmul.mubr.f32.gmra.mrb[0].mxu0 %v2868
        %v2938 = vpop.f32.mrb[0].mxu0
        %v2939 = vadd.f32 0.0, %v2938
        %v2940 = vpop.f32.mrb[0].mxu0
        %2941 = vdwg.mxu0
        %v2942 = vmul.f32 %v2939, 0.35355338
        %v2943 = vsel %vm808, %v2942, -inf
        %2944 = vmax.xlane.f32.xlu0 %v2943
        %v2945 = vpop.xlane.xlu0 %2944
        %v2946 = vsub.f32 %v2942, %v2945
        %v2947 = vmul.f32 %v2946, 1.442695
        %v2948 = vpow.pop %v2947
        %v2949 = vsel %vm808, %v2948, 0.0
        %2950 = vadd.xlane.f32.xlu0 %v2949
        %v2951 = vpop.xlane.xlu0 %2950
        %v2952 = vrcp.pop %v2951
        %v2953 = vmul.f32 %v2948, %v2952
        %2954 = vrot.lane.b32.xlu0 %v2862, 64
        %v2955 = vpop.permute.xlu0 %2954
        %v2958 = vsel %vm808, %v2953, 0
        %2960 = vmatprep.subr.mxu0 0.0
        %2961 = vmatpush1.msra.mxu0 %v2955
        %2962 = vmatprep.subr.mxu0 0.0
        %2963 = vmatpush1.msra.mxu0 0.0
        %2964 = vmatprep.subr.mxu0 0.0
        %2965 = vmatpush1.msra.mxu0 0.0
        %2966 = vmatprep.subr.mxu0 0.0
        %2967 = vmatpush1.msra.mxu0 0.0
        %2968 = vmatprep.subr.mxu0 0.0
        %2969 = vmatpush1.msra.mxu0 0.0
        %2970 = vmatprep.subr.mxu0 0.0
        %2971 = vmatpush1.msra.mxu0 0.0
        %2972 = vmatprep.subr.mxu0 0.0
        %2973 = vmatpush1.msra.mxu0 0.0
        %2974 = vmatprep.subr.mxu0 0.0
        %2975 = vmatpush1.msra.mxu0 0.0
        %2976 = vmatprep.subr.mxu0 0.0
        %2977 = vmatpush1.msra.mxu0 0.0
        %2978 = vmatprep.subr.mxu0 0.0
        %2979 = vmatpush1.msra.mxu0 0.0
        %2980 = vmatprep.subr.mxu0 0.0
        %2981 = vmatpush1.msra.mxu0 0.0
        %2982 = vmatprep.subr.mxu0 0.0
        %2983 = vmatpush1.msra.mxu0 0.0
        %2984 = vmatprep.subr.mxu0 0.0
        %2985 = vmatpush1.msra.mxu0 0.0
        %2986 = vmatprep.subr.mxu0 0.0
        %2987 = vmatpush1.msra.mxu0 0.0
        %2988 = vmatprep.subr.mxu0 0.0
        %2989 = vmatpush1.msra.mxu0 0.0
        %2990 = vmatprep.subr.mxu0 0.0
        %2991 = vmatpush1.msra.mxu0 0.0
        %2992 = vmatprep.subr.mxu0 0.0
        %2993 = vmatpush1.msra.mxu0 0.0
        %2994 = vmatprep.subr.mxu0 0.0
        %2995 = vmatpush1.msra.mxu0 0.0
        %2996 = vmatprep.subr.mxu0 0.0
        %2997 = vmatpush1.msra.mxu0 0.0
        %2998 = vmatprep.subr.mxu0 0.0
        %2999 = vmatpush1.msra.mxu0 0.0
        %3000 = vmatprep.subr.mxu0 0.0
        %3001 = vmatpush1.msra.mxu0 0.0
        %3002 = vmatprep.subr.mxu0 0.0
        %3003 = vmatpush1.msra.mxu0 0.0
        %3004 = vmatprep.subr.mxu0 0.0
        %3005 = vmatpush1.msra.mxu0 0.0
        %3006 = vmatprep.subr.mxu0 0.0
        %3007 = vmatpush1.msra.mxu0 0.0
        %3008 = vmatprep.subr.mxu0 0.0
        %3009 = vmatpush1.msra.mxu0 0.0
        %3010 = vmatprep.subr.mxu0 0.0
        %3011 = vmatpush1.msra.mxu0 0.0
        %3012 = vmatprep.subr.mxu0 0.0
        %3013 = vmatpush1.msra.mxu0 0.0
        %3014 = vmatprep.subr.mxu0 0.0
        %3015 = vmatpush1.msra.mxu0 0.0
        %3016 = vmatprep.subr.mxu0 0.0
        %3017 = vmatpush1.msra.mxu0 0.0
        %3018 = vmatprep.subr.mxu0 0.0
        %3019 = vmatpush1.msra.mxu0 0.0
        %3020 = vmatprep.subr.mxu0 0.0
        %3021 = vmatpush1.msra.mxu0 0.0
        %3022 = vmatprep.subr.mxu0 0.0
        %3023 = vmatpush1.msra.mxu0 0.0
        %3024 = vmatprep.mubr.f32.mxu0 0.0
        %3025 = vmatmul.mubr.f32.gmra.mrb[0].mxu0 %v2958
        %v3026 = vpop.f32.mrb[0].mxu0
        %v3027 = vadd.f32 0.0, %v3026
        %v3028 = vpop.f32.mrb[0].mxu0
        %3029 = vdwg.mxu0
        %3030 = vrot.lane.b32.xlu0 %v2862, 120
        %v3031 = vpop.permute.xlu0 %3030
        %3032 = vrot.lane.b32.xlu0 %v2862, 88
        %v3033 = vpop.permute.xlu0 %3032
        %v3034 = vsel %vm808, %v3031, 0
        %v3036 = vsel %vm808, %v3033, 0
        %3038 = vmatprep.subr.mxu0 0.0
        %3039 = vmatpush1.xpose.msra.mxu0 %v3036
        %3040 = vmatprep.subr.mxu0 0.0
        %3041 = vmatpush1.xpose.msra.mxu0 0.0
        %3042 = vmatprep.subr.mxu0 0.0
        %3043 = vmatpush1.xpose.msra.mxu0 0.0
        %3044 = vmatprep.subr.mxu0 0.0
        %3045 = vmatpush1.xpose.msra.mxu0 0.0
        %3046 = vmatprep.subr.mxu0 0.0
        %3047 = vmatpush1.xpose.msra.mxu0 0.0
        %3048 = vmatprep.subr.mxu0 0.0
        %3049 = vmatpush1.xpose.msra.mxu0 0.0
        %3050 = vmatprep.subr.mxu0 0.0
        %3051 = vmatpush1.xpose.msra.mxu0 0.0
        %3052 = vmatprep.subr.mxu0 0.0
        %3053 = vmatpush1.xpose.msra.mxu0 0.0
        %3054 = vmatprep.subr.mxu0 0.0
        %3055 = vmatpush1.xpose.msra.mxu0 0.0
        %3056 = vmatprep.subr.mxu0 0.0
        %3057 = vmatpush1.xpose.msra.mxu0 0.0
        %3058 = vmatprep.subr.mxu0 0.0
        %3059 = vmatpush1.xpose.msra.mxu0 0.0
        %3060 = vmatprep.subr.mxu0 0.0
        %3061 = vmatpush1.xpose.msra.mxu0 0.0
        %3062 = vmatprep.subr.mxu0 0.0
        %3063 = vmatpush1.xpose.msra.mxu0 0.0
        %3064 = vmatprep.subr.mxu0 0.0
        %3065 = vmatpush1.xpose.msra.mxu0 0.0
        %3066 = vmatprep.subr.mxu0 0.0
        %3067 = vmatpush1.xpose.msra.mxu0 0.0
        %3068 = vmatprep.subr.mxu0 0.0
        %3069 = vmatpush1.xpose.msra.mxu0 0.0
        %3070 = vmatprep.subr.mxu0 0.0
        %3071 = vmatpush1.xpose.msra.mxu0 0.0
        %3072 = vmatprep.subr.mxu0 0.0
        %3073 = vmatpush1.xpose.msra.mxu0 0.0
        %3074 = vmatprep.subr.mxu0 0.0
        %3075 = vmatpush1.xpose.msra.mxu0 0.0
        %3076 = vmatprep.subr.mxu0 0.0
        %3077 = vmatpush1.xpose.msra.mxu0 0.0
        %3078 = vmatprep.subr.mxu0 0.0
        %3079 = vmatpush1.xpose.msra.mxu0 0.0
        %3080 = vmatprep.subr.mxu0 0.0
        %3081 = vmatpush1.xpose.msra.mxu0 0.0
        %3082 = vmatprep.subr.mxu0 0.0
        %3083 = vmatpush1.xpose.msra.mxu0 0.0
        %3084 = vmatprep.subr.mxu0 0.0
        %3085 = vmatpush1.xpose.msra.mxu0 0.0
        %3086 = vmatprep.subr.mxu0 0.0
        %3087 = vmatpush1.xpose.msra.mxu0 0.0
        %3088 = vmatprep.subr.mxu0 0.0
        %3089 = vmatpush1.xpose.msra.mxu0 0.0
        %3090 = vmatprep.subr.mxu0 0.0
        %3091 = vmatpush1.xpose.msra.mxu0 0.0
        %3092 = vmatprep.subr.mxu0 0.0
        %3093 = vmatpush1.xpose.msra.mxu0 0.0
        %3094 = vmatprep.subr.mxu0 0.0
        %3095 = vmatpush1.xpose.msra.mxu0 0.0
        %3096 = vmatprep.subr.mxu0 0.0
        %3097 = vmatpush1.xpose.msra.mxu0 0.0
        %3098 = vmatprep.subr.mxu0 0.0
        %3099 = vmatpush1.xpose.msra.mxu0 0.0
        %3100 = vmatprep.subr.mxu0 0.0
        %3101 = vmatpush1.xpose.msra.mxu0 0.0
        %3102 = vmatprep.mubr.f32.mxu0 0.0
        %3103 = vmatmul.mubr.f32.gmra.mrb[0].mxu0 %v3034
        %v3104 = vpop.f32.mrb[0].mxu0
        %v3105 = vadd.f32 0.0, %v3104
        %v3106 = vpop.f32.mrb[0].mxu0
        %3107 = vdwg.mxu0
        %v3108 = vmul.f32 %v3105, 0.35355338
        %v3109 = vsel %vm808, %v3108, -inf
        %3110 = vmax.xlane.f32.xlu0 %v3109
        %v3111 = vpop.xlane.xlu0 %3110
        %v3112 = vsub.f32 %v3108, %v3111
        %v3113 = vmul.f32 %v3112, 1.442695
        %v3114 = vpow.pop %v3113
        %v3115 = vsel %vm808, %v3114, 0.0
        %3116 = vadd.xlane.f32.xlu0 %v3115
        %v3117 = vpop.xlane.xlu0 %3116
        %v3118 = vrcp.pop %v3117
        %v3119 = vmul.f32 %v3114, %v3118
        %3120 = vrot.lane.b32.xlu0 %v2862, 56
        %v3121 = vpop.permute.xlu0 %3120
        %v3124 = vsel %vm808, %v3119, 0
        %3126 = vmatprep.subr.mxu0 0.0
        %3127 = vmatpush1.msra.mxu0 %v3121
        %3128 = vmatprep.subr.mxu0 0.0
        %3129 = vmatpush1.msra.mxu0 0.0
        %3130 = vmatprep.subr.mxu0 0.0
        %3131 = vmatpush1.msra.mxu0 0.0
        %3132 = vmatprep.subr.mxu0 0.0
        %3133 = vmatpush1.msra.mxu0 0.0
        %3134 = vmatprep.subr.mxu0 0.0
        %3135 = vmatpush1.msra.mxu0 0.0
        %3136 = vmatprep.subr.mxu0 0.0
        %3137 = vmatpush1.msra.mxu0 0.0
        %3138 = vmatprep.subr.mxu0 0.0
        %3139 = vmatpush1.msra.mxu0 0.0
        %3140 = vmatprep.subr.mxu0 0.0
        %3141 = vmatpush1.msra.mxu0 0.0
        %3142 = vmatprep.subr.mxu0 0.0
        %3143 = vmatpush1.msra.mxu0 0.0
        %3144 = vmatprep.subr.mxu0 0.0
        %3145 = vmatpush1.msra.mxu0 0.0
        %3146 = vmatprep.subr.mxu0 0.0
        %3147 = vmatpush1.msra.mxu0 0.0
        %3148 = vmatprep.subr.mxu0 0.0
        %3149 = vmatpush1.msra.mxu0 0.0
        %3150 = vmatprep.subr.mxu0 0.0
        %3151 = vmatpush1.msra.mxu0 0.0
        %3152 = vmatprep.subr.mxu0 0.0
        %3153 = vmatpush1.msra.mxu0 0.0
        %3154 = vmatprep.subr.mxu0 0.0
        %3155 = vmatpush1.msra.mxu0 0.0
        %3156 = vmatprep.subr.mxu0 0.0
        %3157 = vmatpush1.msra.mxu0 0.0
        %3158 = vmatprep.subr.mxu0 0.0
        %3159 = vmatpush1.msra.mxu0 0.0
        %3160 = vmatprep.subr.mxu0 0.0
        %3161 = vmatpush1.msra.mxu0 0.0
        %3162 = vmatprep.subr.mxu0 0.0
        %3163 = vmatpush1.msra.mxu0 0.0
        %3164 = vmatprep.subr.mxu0 0.0
        %3165 = vmatpush1.msra.mxu0 0.0
        %3166 = vmatprep.subr.mxu0 0.0
        %3167 = vmatpush1.msra.mxu0 0.0
        %3168 = vmatprep.subr.mxu0 0.0
        %3169 = vmatpush1.msra.mxu0 0.0
        %3170 = vmatprep.subr.mxu0 0.0
        %3171 = vmatpush1.msra.mxu0 0.0
        %3172 = vmatprep.subr.mxu0 0.0
        %3173 = vmatpush1.msra.mxu0 0.0
        %3174 = vmatprep.subr.mxu0 0.0
        %3175 = vmatpush1.msra.mxu0 0.0
        %3176 = vmatprep.subr.mxu0 0.0
        %3177 = vmatpush1.msra.mxu0 0.0
        %3178 = vmatprep.subr.mxu0 0.0
        %3179 = vmatpush1.msra.mxu0 0.0
        %3180 = vmatprep.subr.mxu0 0.0
        %3181 = vmatpush1.msra.mxu0 0.0
        %3182 = vmatprep.subr.mxu0 0.0
        %3183 = vmatpush1.msra.mxu0 0.0
        %3184 = vmatprep.subr.mxu0 0.0
        %3185 = vmatpush1.msra.mxu0 0.0
        %3186 = vmatprep.subr.mxu0 0.0
        %3187 = vmatpush1.msra.mxu0 0.0
        %3188 = vmatprep.subr.mxu0 0.0
        %3189 = vmatpush1.msra.mxu0 0.0
        %3190 = vmatprep.mubr.f32.mxu0 0.0
        %3191 = vmatmul.mubr.f32.gmra.mrb[0].mxu0 %v3124
        %v3192 = vpop.f32.mrb[0].mxu0
        %v3193 = vadd.f32 0.0, %v3192
        %v3194 = vpop.f32.mrb[0].mxu0
        %3195 = vdwg.mxu0
        %3196 = vrot.lane.b32.xlu0 %v2862, 112
        %v3197 = vpop.permute.xlu0 %3196
        %3198 = vrot.lane.b32.xlu0 %v2862, 80
        %v3199 = vpop.permute.xlu0 %3198
        %v3200 = vsel %vm808, %v3197, 0
        %v3202 = vsel %vm808, %v3199, 0
        %3204 = vmatprep.subr.mxu0 0.0
        %3205 = vmatpush1.xpose.msra.mxu0 %v3202
        %3206 = vmatprep.subr.mxu0 0.0
        %3207 = vmatpush1.xpose.msra.mxu0 0.0
        %3208 = vmatprep.subr.mxu0 0.0
        %3209 = vmatpush1.xpose.msra.mxu0 0.0
        %3210 = vmatprep.subr.mxu0 0.0
        %3211 = vmatpush1.xpose.msra.mxu0 0.0
        %3212 = vmatprep.subr.mxu0 0.0
        %3213 = vmatpush1.xpose.msra.mxu0 0.0
        %3214 = vmatprep.subr.mxu0 0.0
        %3215 = vmatpush1.xpose.msra.mxu0 0.0
        %3216 = vmatprep.subr.mxu0 0.0
        %3217 = vmatpush1.xpose.msra.mxu0 0.0
        %3218 = vmatprep.subr.mxu0 0.0
        %3219 = vmatpush1.xpose.msra.mxu0 0.0
        %3220 = vmatprep.subr.mxu0 0.0
        %3221 = vmatpush1.xpose.msra.mxu0 0.0
        %3222 = vmatprep.subr.mxu0 0.0
        %3223 = vmatpush1.xpose.msra.mxu0 0.0
        %3224 = vmatprep.subr.mxu0 0.0
        %3225 = vmatpush1.xpose.msra.mxu0 0.0
        %3226 = vmatprep.subr.mxu0 0.0
        %3227 = vmatpush1.xpose.msra.mxu0 0.0
        %3228 = vmatprep.subr.mxu0 0.0
        %3229 = vmatpush1.xpose.msra.mxu0 0.0
        %3230 = vmatprep.subr.mxu0 0.0
        %3231 = vmatpush1.xpose.msra.mxu0 0.0
        %3232 = vmatprep.subr.mxu0 0.0
        %3233 = vmatpush1.xpose.msra.mxu0 0.0
        %3234 = vmatprep.subr.mxu0 0.0
        %3235 = vmatpush1.xpose.msra.mxu0 0.0
        %3236 = vmatprep.subr.mxu0 0.0
        %3237 = vmatpush1.xpose.msra.mxu0 0.0
        %3238 = vmatprep.subr.mxu0 0.0
        %3239 = vmatpush1.xpose.msra.mxu0 0.0
        %3240 = vmatprep.subr.mxu0 0.0
        %3241 = vmatpush1.xpose.msra.mxu0 0.0
        %3242 = vmatprep.subr.mxu0 0.0
        %3243 = vmatpush1.xpose.msra.mxu0 0.0
        %3244 = vmatprep.subr.mxu0 0.0
        %3245 = vmatpush1.xpose.msra.mxu0 0.0
        %3246 = vmatprep.subr.mxu0 0.0
        %3247 = vmatpush1.xpose.msra.mxu0 0.0
        %3248 = vmatprep.subr.mxu0 0.0
        %3249 = vmatpush1.xpose.msra.mxu0 0.0
        %3250 = vmatprep.subr.mxu0 0.0
        %3251 = vmatpush1.xpose.msra.mxu0 0.0
        %3252 = vmatprep.subr.mxu0 0.0
        %3253 = vmatpush1.xpose.msra.mxu0 0.0
        %3254 = vmatprep.subr.mxu0 0.0
        %3255 = vmatpush1.xpose.msra.mxu0 0.0
        %3256 = vmatprep.subr.mxu0 0.0
        %3257 = vmatpush1.xpose.msra.mxu0 0.0
        %3258 = vmatprep.subr.mxu0 0.0
        %3259 = vmatpush1.xpose.msra.mxu0 0.0
        %3260 = vmatprep.subr.mxu0 0.0
        %3261 = vmatpush1.xpose.msra.mxu0 0.0
        %3262 = vmatprep.subr.mxu0 0.0
        %3263 = vmatpush1.xpose.msra.mxu0 0.0
        %3264 = vmatprep.subr.mxu0 0.0
        %3265 = vmatpush1.xpose.msra.mxu0 0.0
        %3266 = vmatprep.subr.mxu0 0.0
        %3267 = vmatpush1.xpose.msra.mxu0 0.0
        %3268 = vmatprep.mubr.f32.mxu0 0.0
        %3269 = vmatmul.mubr.f32.gmra.mrb[0].mxu0 %v3200
        %v3270 = vpop.f32.mrb[0].mxu0
        %v3271 = vadd.f32 0.0, %v3270
        %v3272 = vpop.f32.mrb[0].mxu0
        %3273 = vdwg.mxu0
        %v3274 = vmul.f32 %v3271, 0.35355338
        %v3275 = vsel %vm808, %v3274, -inf
        %3276 = vmax.xlane.f32.xlu0 %v3275
        %v3277 = vpop.xlane.xlu0 %3276
        %v3278 = vsub.f32 %v3274, %v3277
        %v3279 = vmul.f32 %v3278, 1.442695
        %v3280 = vpow.pop %v3279
        %v3281 = vsel %vm808, %v3280, 0.0
        %3282 = vadd.xlane.f32.xlu0 %v3281
        %v3283 = vpop.xlane.xlu0 %3282
        %v3284 = vrcp.pop %v3283
        %v3285 = vmul.f32 %v3280, %v3284
        %3286 = vrot.lane.b32.xlu0 %v2862, 48
        %v3287 = vpop.permute.xlu0 %3286
        %v3290 = vsel %vm808, %v3285, 0
        %3292 = vmatprep.subr.mxu0 0.0
        %3293 = vmatpush1.msra.mxu0 %v3287
        %3294 = vmatprep.subr.mxu0 0.0
        %3295 = vmatpush1.msra.mxu0 0.0
        %3296 = vmatprep.subr.mxu0 0.0
        %3297 = vmatpush1.msra.mxu0 0.0
        %3298 = vmatprep.subr.mxu0 0.0
        %3299 = vmatpush1.msra.mxu0 0.0
        %3300 = vmatprep.subr.mxu0 0.0
        %3301 = vmatpush1.msra.mxu0 0.0
        %3302 = vmatprep.subr.mxu0 0.0
        %3303 = vmatpush1.msra.mxu0 0.0
        %3304 = vmatprep.subr.mxu0 0.0
        %3305 = vmatpush1.msra.mxu0 0.0
        %3306 = vmatprep.subr.mxu0 0.0
        %3307 = vmatpush1.msra.mxu0 0.0
        %3308 = vmatprep.subr.mxu0 0.0
        %3309 = vmatpush1.msra.mxu0 0.0
        %3310 = vmatprep.subr.mxu0 0.0
        %3311 = vmatpush1.msra.mxu0 0.0
        %3312 = vmatprep.subr.mxu0 0.0
        %3313 = vmatpush1.msra.mxu0 0.0
        %3314 = vmatprep.subr.mxu0 0.0
        %3315 = vmatpush1.msra.mxu0 0.0
        %3316 = vmatprep.subr.mxu0 0.0
        %3317 = vmatpush1.msra.mxu0 0.0
        %3318 = vmatprep.subr.mxu0 0.0
        %3319 = vmatpush1.msra.mxu0 0.0
        %3320 = vmatprep.subr.mxu0 0.0
        %3321 = vmatpush1.msra.mxu0 0.0
        %3322 = vmatprep.subr.mxu0 0.0
        %3323 = vmatpush1.msra.mxu0 0.0
        %3324 = vmatprep.subr.mxu0 0.0
        %3325 = vmatpush1.msra.mxu0 0.0
        %3326 = vmatprep.subr.mxu0 0.0
        %3327 = vmatpush1.msra.mxu0 0.0
        %3328 = vmatprep.subr.mxu0 0.0
        %3329 = vmatpush1.msra.mxu0 0.0
        %3330 = vmatprep.subr.mxu0 0.0
        %3331 = vmatpush1.msra.mxu0 0.0
        %3332 = vmatprep.subr.mxu0 0.0
        %3333 = vmatpush1.msra.mxu0 0.0
        %3334 = vmatprep.subr.mxu0 0.0
        %3335 = vmatpush1.msra.mxu0 0.0
        %3336 = vmatprep.subr.mxu0 0.0
        %3337 = vmatpush1.msra.mxu0 0.0
        %3338 = vmatprep.subr.mxu0 0.0
        %3339 = vmatpush1.msra.mxu0 0.0
        %3340 = vmatprep.subr.mxu0 0.0
        %3341 = vmatpush1.msra.mxu0 0.0
        %3342 = vmatprep.subr.mxu0 0.0
        %3343 = vmatpush1.msra.mxu0 0.0
        %3344 = vmatprep.subr.mxu0 0.0
        %3345 = vmatpush1.msra.mxu0 0.0
        %3346 = vmatprep.subr.mxu0 0.0
        %3347 = vmatpush1.msra.mxu0 0.0
        %3348 = vmatprep.subr.mxu0 0.0
        %3349 = vmatpush1.msra.mxu0 0.0
        %3350 = vmatprep.subr.mxu0 0.0
        %3351 = vmatpush1.msra.mxu0 0.0
        %3352 = vmatprep.subr.mxu0 0.0
        %3353 = vmatpush1.msra.mxu0 0.0
        %3354 = vmatprep.subr.mxu0 0.0
        %3355 = vmatpush1.msra.mxu0 0.0
        %3356 = vmatprep.mubr.f32.mxu0 0.0
        %3357 = vmatmul.mubr.f32.gmra.mrb[0].mxu0 %v3290
        %v3358 = vpop.f32.mrb[0].mxu0
        %v3359 = vadd.f32 0.0, %v3358
        %v3360 = vpop.f32.mrb[0].mxu0
        %3361 = vdwg.mxu0
        %3362 = vrot.lane.b32.xlu0 %v2862, 104
        %v3363 = vpop.permute.xlu0 %3362
        %3364 = vrot.lane.b32.xlu0 %v2862, 72
        %v3365 = vpop.permute.xlu0 %3364
        %v3366 = vsel %vm808, %v3363, 0
        %v3368 = vsel %vm808, %v3365, 0
        %3370 = vmatprep.subr.mxu0 0.0
        %3371 = vmatpush1.xpose.msra.mxu0 %v3368
        %3372 = vmatprep.subr.mxu0 0.0
        %3373 = vmatpush1.xpose.msra.mxu0 0.0
        %3374 = vmatprep.subr.mxu0 0.0
        %3375 = vmatpush1.xpose.msra.mxu0 0.0
        %3376 = vmatprep.subr.mxu0 0.0
        %3377 = vmatpush1.xpose.msra.mxu0 0.0
        %3378 = vmatprep.subr.mxu0 0.0
        %3379 = vmatpush1.xpose.msra.mxu0 0.0
        %3380 = vmatprep.subr.mxu0 0.0
        %3381 = vmatpush1.xpose.msra.mxu0 0.0
        %3382 = vmatprep.subr.mxu0 0.0
        %3383 = vmatpush1.xpose.msra.mxu0 0.0
        %3384 = vmatprep.subr.mxu0 0.0
        %3385 = vmatpush1.xpose.msra.mxu0 0.0
        %3386 = vmatprep.subr.mxu0 0.0
        %3387 = vmatpush1.xpose.msra.mxu0 0.0
        %3388 = vmatprep.subr.mxu0 0.0
        %3389 = vmatpush1.xpose.msra.mxu0 0.0
        %3390 = vmatprep.subr.mxu0 0.0
        %3391 = vmatpush1.xpose.msra.mxu0 0.0
        %3392 = vmatprep.subr.mxu0 0.0
        %3393 = vmatpush1.xpose.msra.mxu0 0.0
        %3394 = vmatprep.subr.mxu0 0.0
        %3395 = vmatpush1.xpose.msra.mxu0 0.0
        %3396 = vmatprep.subr.mxu0 0.0
        %3397 = vmatpush1.xpose.msra.mxu0 0.0
        %3398 = vmatprep.subr.mxu0 0.0
        %3399 = vmatpush1.xpose.msra.mxu0 0.0
        %3400 = vmatprep.subr.mxu0 0.0
        %3401 = vmatpush1.xpose.msra.mxu0 0.0
        %3402 = vmatprep.subr.mxu0 0.0
        %3403 = vmatpush1.xpose.msra.mxu0 0.0
        %3404 = vmatprep.subr.mxu0 0.0
        %3405 = vmatpush1.xpose.msra.mxu0 0.0
        %3406 = vmatprep.subr.mxu0 0.0
        %3407 = vmatpush1.xpose.msra.mxu0 0.0
        %3408 = vmatprep.subr.mxu0 0.0
        %3409 = vmatpush1.xpose.msra.mxu0 0.0
        %3410 = vmatprep.subr.mxu0 0.0
        %3411 = vmatpush1.xpose.msra.mxu0 0.0
        %3412 = vmatprep.subr.mxu0 0.0
        %3413 = vmatpush1.xpose.msra.mxu0 0.0
        %3414 = vmatprep.subr.mxu0 0.0
        %3415 = vmatpush1.xpose.msra.mxu0 0.0
        %3416 = vmatprep.subr.mxu0 0.0
        %3417 = vmatpush1.xpose.msra.mxu0 0.0
        %3418 = vmatprep.subr.mxu0 0.0
        %3419 = vmatpush1.xpose.msra.mxu0 0.0
        %3420 = vmatprep.subr.mxu0 0.0
        %3421 = vmatpush1.xpose.msra.mxu0 0.0
        %3422 = vmatprep.subr.mxu0 0.0
        %3423 = vmatpush1.xpose.msra.mxu0 0.0
        %3424 = vmatprep.subr.mxu0 0.0
        %3425 = vmatpush1.xpose.msra.mxu0 0.0
        %3426 = vmatprep.subr.mxu0 0.0
        %3427 = vmatpush1.xpose.msra.mxu0 0.0
        %3428 = vmatprep.subr.mxu0 0.0
        %3429 = vmatpush1.xpose.msra.mxu0 0.0
        %3430 = vmatprep.subr.mxu0 0.0
        %3431 = vmatpush1.xpose.msra.mxu0 0.0
        %3432 = vmatprep.subr.mxu0 0.0
        %3433 = vmatpush1.xpose.msra.mxu0 0.0
        %3434 = vmatprep.mubr.f32.mxu0 0.0
        %3435 = vmatmul.mubr.f32.gmra.mrb[0].mxu0 %v3366
        %v3436 = vpop.f32.mrb[0].mxu0
        %v3437 = vadd.f32 0.0, %v3436
        %v3438 = vpop.f32.mrb[0].mxu0
        %3439 = vdwg.mxu0
        %v3440 = vmul.f32 %v3437, 0.35355338
        %v3441 = vsel %vm808, %v3440, -inf
        %3442 = vmax.xlane.f32.xlu0 %v3441
        %v3443 = vpop.xlane.xlu0 %3442
        %v3444 = vsub.f32 %v3440, %v3443
        %v3445 = vmul.f32 %v3444, 1.442695
        %v3446 = vpow.pop %v3445
        %v3447 = vsel %vm808, %v3446, 0.0
        %3448 = vadd.xlane.f32.xlu0 %v3447
        %v3449 = vpop.xlane.xlu0 %3448
        %v3450 = vrcp.pop %v3449
        %v3451 = vmul.f32 %v3446, %v3450
        %3452 = vrot.lane.b32.xlu0 %v2862, 40
        %v3453 = vpop.permute.xlu0 %3452
        %v3456 = vsel %vm808, %v3451, 0
        %3458 = vmatprep.subr.mxu0 0.0
        %3459 = vmatpush1.msra.mxu0 %v3453
        %3460 = vmatprep.subr.mxu0 0.0
        %3461 = vmatpush1.msra.mxu0 0.0
        %3462 = vmatprep.subr.mxu0 0.0
        %3463 = vmatpush1.msra.mxu0 0.0
        %3464 = vmatprep.subr.mxu0 0.0
        %3465 = vmatpush1.msra.mxu0 0.0
        %3466 = vmatprep.subr.mxu0 0.0
        %3467 = vmatpush1.msra.mxu0 0.0
        %3468 = vmatprep.subr.mxu0 0.0
        %3469 = vmatpush1.msra.mxu0 0.0
        %3470 = vmatprep.subr.mxu0 0.0
        %3471 = vmatpush1.msra.mxu0 0.0
        %3472 = vmatprep.subr.mxu0 0.0
        %3473 = vmatpush1.msra.mxu0 0.0
        %3474 = vmatprep.subr.mxu0 0.0
        %3475 = vmatpush1.msra.mxu0 0.0
        %3476 = vmatprep.subr.mxu0 0.0
        %3477 = vmatpush1.msra.mxu0 0.0
        %3478 = vmatprep.subr.mxu0 0.0
        %3479 = vmatpush1.msra.mxu0 0.0
        %3480 = vmatprep.subr.mxu0 0.0
        %3481 = vmatpush1.msra.mxu0 0.0
        %3482 = vmatprep.subr.mxu0 0.0
        %3483 = vmatpush1.msra.mxu0 0.0
        %3484 = vmatprep.subr.mxu0 0.0
        %3485 = vmatpush1.msra.mxu0 0.0
        %3486 = vmatprep.subr.mxu0 0.0
        %3487 = vmatpush1.msra.mxu0 0.0
        %3488 = vmatprep.subr.mxu0 0.0
        %3489 = vmatpush1.msra.mxu0 0.0
        %3490 = vmatprep.subr.mxu0 0.0
        %3491 = vmatpush1.msra.mxu0 0.0
        %3492 = vmatprep.subr.mxu0 0.0
        %3493 = vmatpush1.msra.mxu0 0.0
        %3494 = vmatprep.subr.mxu0 0.0
        %3495 = vmatpush1.msra.mxu0 0.0
        %3496 = vmatprep.subr.mxu0 0.0
        %3497 = vmatpush1.msra.mxu0 0.0
        %3498 = vmatprep.subr.mxu0 0.0
        %3499 = vmatpush1.msra.mxu0 0.0
        %3500 = vmatprep.subr.mxu0 0.0
        %3501 = vmatpush1.msra.mxu0 0.0
        %3502 = vmatprep.subr.mxu0 0.0
        %3503 = vmatpush1.msra.mxu0 0.0
        %3504 = vmatprep.subr.mxu0 0.0
        %3505 = vmatpush1.msra.mxu0 0.0
        %3506 = vmatprep.subr.mxu0 0.0
        %3507 = vmatpush1.msra.mxu0 0.0
        %3508 = vmatprep.subr.mxu0 0.0
        %3509 = vmatpush1.msra.mxu0 0.0
        %3510 = vmatprep.subr.mxu0 0.0
        %3511 = vmatpush1.msra.mxu0 0.0
        %3512 = vmatprep.subr.mxu0 0.0
        %3513 = vmatpush1.msra.mxu0 0.0
        %3514 = vmatprep.subr.mxu0 0.0
        %3515 = vmatpush1.msra.mxu0 0.0
        %3516 = vmatprep.subr.mxu0 0.0
        %3517 = vmatpush1.msra.mxu0 0.0
        %3518 = vmatprep.subr.mxu0 0.0
        %3519 = vmatpush1.msra.mxu0 0.0
        %3520 = vmatprep.subr.mxu0 0.0
        %3521 = vmatpush1.msra.mxu0 0.0
        %3522 = vmatprep.mubr.f32.mxu0 0.0
        %3523 = vmatmul.mubr.f32.gmra.mrb[0].mxu0 %v3456
        %v3524 = vpop.f32.mrb[0].mxu0
        %v3525 = vadd.f32 0.0, %v3524
        %v3526 = vpop.f32.mrb[0].mxu0
        %3527 = vdwg.mxu0
        %3529 = vrot.lane.b32.xlu0 %v3193, 8
        %v3530 = vpop.permute.xlu0 %3529
        %3533 = vrot.lane.b32.xlu0 %v3359, 16
        %v3534 = vpop.permute.xlu0 %3533
        %3537 = vrot.lane.b32.xlu0 %v3525, 24
        %v3538 = vpop.permute.xlu0 %3537
        %v3540 = vsel %vm808, %v3027, %v3530
        %v3541 = vsel %vm1482, %v3540, %v3534
        %v3542 = vsel %vm1484, %v3541, %v3538
        %s3543 = scalar_lea.vmem %s6, 64
        %v3544 = vld [vmem:[%s3543] sm:$0xff]
        %v3545 = vld [vmem:[%s3543 + $0x8] sm:$0xff]
        %v3546 = vld [vmem:[%s3543 + $0x10] sm:$0xff]
        %v3547 = vld [vmem:[%s3543 + $0x18] sm:$0xff]
        %s3548 = scalar_lea.vmem [#allocation7], 2
        %v3549 = vld [vmem:[%s3548] sm:$0x1]
        %v3551 = vlaneseq
        %v3552 = vshrl.u32 %v3551, 7
        %v3553 = vsub.s32 0, %v3552
        %v3554 = vrot.slane %v3549, %v3553
        %v3557 = vsel %vm731, %v3542, 0
        %3559 = vmatprep.subr.mxu0 0.0
        %3560 = vmatpush1.msra.mxu0 %v3544
        %3561 = vmatprep.subr.mxu0 0.0
        %3562 = vmatpush1.msra.mxu0 %v3545
        %3563 = vmatprep.subr.mxu0 0.0
        %3564 = vmatpush1.msra.mxu0 %v3546
        %3565 = vmatprep.subr.mxu0 0.0
        %3566 = vmatpush1.msra.mxu0 %v3547
        %3567 = vmatprep.subr.mxu0 0.0
        %3568 = vmatpush1.msra.mxu0 0.0
        %3569 = vmatprep.subr.mxu0 0.0
        %3570 = vmatpush1.msra.mxu0 0.0
        %3571 = vmatprep.subr.mxu0 0.0
        %3572 = vmatpush1.msra.mxu0 0.0
        %3573 = vmatprep.subr.mxu0 0.0
        %3574 = vmatpush1.msra.mxu0 0.0
        %3575 = vmatprep.subr.mxu0 0.0
        %3576 = vmatpush1.msra.mxu0 0.0
        %3577 = vmatprep.subr.mxu0 0.0
        %3578 = vmatpush1.msra.mxu0 0.0
        %3579 = vmatprep.subr.mxu0 0.0
        %3580 = vmatpush1.msra.mxu0 0.0
        %3581 = vmatprep.subr.mxu0 0.0
        %3582 = vmatpush1.msra.mxu0 0.0
        %3583 = vmatprep.subr.mxu0 0.0
        %3584 = vmatpush1.msra.mxu0 0.0
        %3585 = vmatprep.subr.mxu0 0.0
        %3586 = vmatpush1.msra.mxu0 0.0
        %3587 = vmatprep.subr.mxu0 0.0
        %3588 = vmatpush1.msra.mxu0 0.0
        %3589 = vmatprep.subr.mxu0 0.0
        %3590 = vmatpush1.msra.mxu0 0.0
        %3591 = vmatprep.subr.mxu0 0.0
        %3592 = vmatpush1.msra.mxu0 0.0
        %3593 = vmatprep.subr.mxu0 0.0
        %3594 = vmatpush1.msra.mxu0 0.0
        %3595 = vmatprep.subr.mxu0 0.0
        %3596 = vmatpush1.msra.mxu0 0.0
        %3597 = vmatprep.subr.mxu0 0.0
        %3598 = vmatpush1.msra.mxu0 0.0
        %3599 = vmatprep.subr.mxu0 0.0
        %3600 = vmatpush1.msra.mxu0 0.0
        %3601 = vmatprep.subr.mxu0 0.0
        %3602 = vmatpush1.msra.mxu0 0.0
        %3603 = vmatprep.subr.mxu0 0.0
        %3604 = vmatpush1.msra.mxu0 0.0
        %3605 = vmatprep.subr.mxu0 0.0
        %3606 = vmatpush1.msra.mxu0 0.0
        %3607 = vmatprep.subr.mxu0 0.0
        %3608 = vmatpush1.msra.mxu0 0.0
        %3609 = vmatprep.subr.mxu0 0.0
        %3610 = vmatpush1.msra.mxu0 0.0
        %3611 = vmatprep.subr.mxu0 0.0
        %3612 = vmatpush1.msra.mxu0 0.0
        %3613 = vmatprep.subr.mxu0 0.0
        %3614 = vmatpush1.msra.mxu0 0.0
        %3615 = vmatprep.subr.mxu0 0.0
        %3616 = vmatpush1.msra.mxu0 0.0
        %3617 = vmatprep.subr.mxu0 0.0
        %3618 = vmatpush1.msra.mxu0 0.0
        %3619 = vmatprep.subr.mxu0 0.0
        %3620 = vmatpush1.msra.mxu0 0.0
        %3621 = vmatprep.subr.mxu0 0.0
        %3622 = vmatpush1.msra.mxu0 0.0
        %3623 = vmatprep.mubr.f32.mxu0 0.0
        %3624 = vmatmul.mubr.f32.gmra.mrb[0].mxu0 %v3557
        %v3625 = vpop.f32.mrb[0].mxu0
        %v3626 = vadd.f32 %v3554, %v3625
        %v3627 = vpop.f32.mrb[0].mxu0
        %3628 = vdwg.mxu0
        %v3629 = vadd.f32 %v2778, %v3626
        %s3630 = scalar_lea.vmem %s12, 3
        %v3631 = vld [vmem:[%s3630] sm:$0x1]
        %s3632 = scalar_lea.vmem %s13, 3
        %v3633 = vld [vmem:[%s3632] sm:$0x1]
        %v3634 = vsel %vm731, %v3629, 0.0
        %3635 = vadd.xlane.f32.xlu0 %v3634
        %v3636 = vpop.xlane.xlu0 %3635
        %v3637 = vmul.f32 %v3636, %v1576
        %v3638 = vsub.f32 %v3629, %v3637
        %v3639 = vmul.f32 %v3638, %v3638
        %v3640 = vsel %vm731, %v3639, 0.0
        %3641 = vadd.xlane.f32.xlu0 %v3640
        %v3642 = vpop.xlane.xlu0 %3641
        %v3643 = vmul.f32 %v3642, %v1576
        %v3644 = vadd.f32 %v3643, 1e-05
        %v3645 = vrsqrt.pop %v3644
        %v3646 = vmul.f32 %v3638, %v3645
        %v3648 = vlaneseq
        %v3649 = vshrl.u32 %v3648, 7
        %v3650 = vsub.s32 0, %v3649
        %v3651 = vrot.slane %v3631, %v3650
        %v3653 = vmul.f32 %v3646, %v3651
        %v3655 = vlaneseq
        %v3656 = vshrl.u32 %v3655, 7
        %v3657 = vsub.s32 0, %v3656
        %v3658 = vrot.slane %v3633, %v3657
        %v3660 = vadd.f32 %v3653, %v3658
        %s3661 = scalar_lea.vmem %s4, 96
        %v3662 = vld [vmem:[%s3661] sm:$0xff]
        %v3663 = vld [vmem:[%s3661 + $0x8] sm:$0xff]
        %v3664 = vld [vmem:[%s3661 + $0x10] sm:$0xff]
        %v3665 = vld [vmem:[%s3661 + $0x18] sm:$0xff]
        %s3666 = scalar_lea.vmem [#allocation5], 3
        %v3667 = vld [vmem:[%s3666] sm:$0x1]
        %v3669 = vlaneseq
        %v3670 = vshrl.u32 %v3669, 7
        %v3671 = vsub.s32 0, %v3670
        %v3672 = vrot.slane %v3667, %v3671
        %v3675 = vsel %vm731, %v3660, 0
        %3677 = vmatprep.subr.mxu0 0.0
        %3678 = vmatpush1.msra.mxu0 %v3662
        %3679 = vmatprep.subr.mxu0 0.0
        %3680 = vmatpush1.msra.mxu0 %v3663
        %3681 = vmatprep.subr.mxu0 0.0
        %3682 = vmatpush1.msra.mxu0 %v3664
        %3683 = vmatprep.subr.mxu0 0.0
        %3684 = vmatpush1.msra.mxu0 %v3665
        %3685 = vmatprep.subr.mxu0 0.0
        %3686 = vmatpush1.msra.mxu0 0.0
        %3687 = vmatprep.subr.mxu0 0.0
        %3688 = vmatpush1.msra.mxu0 0.0
        %3689 = vmatprep.subr.mxu0 0.0
        %3690 = vmatpush1.msra.mxu0 0.0
        %3691 = vmatprep.subr.mxu0 0.0
        %3692 = vmatpush1.msra.mxu0 0.0
        %3693 = vmatprep.subr.mxu0 0.0
        %3694 = vmatpush1.msra.mxu0 0.0
        %3695 = vmatprep.subr.mxu0 0.0
        %3696 = vmatpush1.msra.mxu0 0.0
        %3697 = vmatprep.subr.mxu0 0.0
        %3698 = vmatpush1.msra.mxu0 0.0
        %3699 = vmatprep.subr.mxu0 0.0
        %3700 = vmatpush1.msra.mxu0 0.0
        %3701 = vmatprep.subr.mxu0 0.0
        %3702 = vmatpush1.msra.mxu0 0.0
        %3703 = vmatprep.subr.mxu0 0.0
        %3704 = vmatpush1.msra.mxu0 0.0
        %3705 = vmatprep.subr.mxu0 0.0
        %3706 = vmatpush1.msra.mxu0 0.0
        %3707 = vmatprep.subr.mxu0 0.0
        %3708 = vmatpush1.msra.mxu0 0.0
        %3709 = vmatprep.subr.mxu0 0.0
        %3710 = vmatpush1.msra.mxu0 0.0
        %3711 = vmatprep.subr.mxu0 0.0
        %3712 = vmatpush1.msra.mxu0 0.0
        %3713 = vmatprep.subr.mxu0 0.0
        %3714 = vmatpush1.msra.mxu0 0.0
        %3715 = vmatprep.subr.mxu0 0.0
        %3716 = vmatpush1.msra.mxu0 0.0
        %3717 = vmatprep.subr.mxu0 0.0
        %3718 = vmatpush1.msra.mxu0 0.0
        %3719 = vmatprep.subr.mxu0 0.0
        %3720 = vmatpush1.msra.mxu0 0.0
        %3721 = vmatprep.subr.mxu0 0.0
        %3722 = vmatpush1.msra.mxu0 0.0
        %3723 = vmatprep.subr.mxu0 0.0
        %3724 = vmatpush1.msra.mxu0 0.0
        %3725 = vmatprep.subr.mxu0 0.0
        %3726 = vmatpush1.msra.mxu0 0.0
        %3727 = vmatprep.subr.mxu0 0.0
        %3728 = vmatpush1.msra.mxu0 0.0
        %3729 = vmatprep.subr.mxu0 0.0
        %3730 = vmatpush1.msra.mxu0 0.0
        %3731 = vmatprep.subr.mxu0 0.0
        %3732 = vmatpush1.msra.mxu0 0.0
        %3733 = vmatprep.subr.mxu0 0.0
        %3734 = vmatpush1.msra.mxu0 0.0
        %3735 = vmatprep.subr.mxu0 0.0
        %3736 = vmatpush1.msra.mxu0 0.0
        %3737 = vmatprep.subr.mxu0 0.0
        %3738 = vmatpush1.msra.mxu0 0.0
        %3739 = vmatprep.subr.mxu0 0.0
        %3740 = vmatpush1.msra.mxu0 0.0
        %3741 = vmatprep.mubr.f32.mxu0 0.0
        %3742 = vmatmul.mubr.f32.gmra.mrb[0].mxu0 %v3675
        %v3743 = vpop.f32.mrb[0].mxu0
        %v3744 = vadd.f32 %v3672, %v3743
        %v3745 = vpop.f32.mrb[0].mxu0
        %3746 = vdwg.mxu0
        %3751 = vrot.lane.b32.xlu0 %v3662, 96
        %v3752 = vpop.permute.xlu0 %3751
        %3753 = vrot.lane.b32.xlu0 %v3663, 96
        %v3754 = vpop.permute.xlu0 %3753
        %3755 = vrot.lane.b32.xlu0 %v3664, 96
        %v3756 = vpop.permute.xlu0 %3755
        %3757 = vrot.lane.b32.xlu0 %v3665, 96
        %v3758 = vpop.permute.xlu0 %3757
        %3763 = vrot.lane.b32.xlu0 %v3672, 96
        %v3764 = vpop.permute.xlu0 %3763
        %3766 = vmatprep.subr.mxu0 0.0
        %3767 = vmatpush1.msra.mxu0 %v3752
        %3768 = vmatprep.subr.mxu0 0.0
        %3769 = vmatpush1.msra.mxu0 %v3754
        %3770 = vmatprep.subr.mxu0 0.0
        %3771 = vmatpush1.msra.mxu0 %v3756
        %3772 = vmatprep.subr.mxu0 0.0
        %3773 = vmatpush1.msra.mxu0 %v3758
        %3774 = vmatprep.subr.mxu0 0.0
        %3775 = vmatpush1.msra.mxu0 0.0
        %3776 = vmatprep.subr.mxu0 0.0
        %3777 = vmatpush1.msra.mxu0 0.0
        %3778 = vmatprep.subr.mxu0 0.0
        %3779 = vmatpush1.msra.mxu0 0.0
        %3780 = vmatprep.subr.mxu0 0.0
        %3781 = vmatpush1.msra.mxu0 0.0
        %3782 = vmatprep.subr.mxu0 0.0
        %3783 = vmatpush1.msra.mxu0 0.0
        %3784 = vmatprep.subr.mxu0 0.0
        %3785 = vmatpush1.msra.mxu0 0.0
        %3786 = vmatprep.subr.mxu0 0.0
        %3787 = vmatpush1.msra.mxu0 0.0
        %3788 = vmatprep.subr.mxu0 0.0
        %3789 = vmatpush1.msra.mxu0 0.0
        %3790 = vmatprep.subr.mxu0 0.0
        %3791 = vmatpush1.msra.mxu0 0.0
        %3792 = vmatprep.subr.mxu0 0.0
        %3793 = vmatpush1.msra.mxu0 0.0
        %3794 = vmatprep.subr.mxu0 0.0
        %3795 = vmatpush1.msra.mxu0 0.0
        %3796 = vmatprep.subr.mxu0 0.0
        %3797 = vmatpush1.msra.mxu0 0.0
        %3798 = vmatprep.subr.mxu0 0.0
        %3799 = vmatpush1.msra.mxu0 0.0
        %3800 = vmatprep.subr.mxu0 0.0
        %3801 = vmatpush1.msra.mxu0 0.0
        %3802 = vmatprep.subr.mxu0 0.0
        %3803 = vmatpush1.msra.mxu0 0.0
        %3804 = vmatprep.subr.mxu0 0.0
        %3805 = vmatpush1.msra.mxu0 0.0
        %3806 = vmatprep.subr.mxu0 0.0
        %3807 = vmatpush1.msra.mxu0 0.0
        %3808 = vmatprep.subr.mxu0 0.0
        %3809 = vmatpush1.msra.mxu0 0.0
        %3810 = vmatprep.subr.mxu0 0.0
        %3811 = vmatpush1.msra.mxu0 0.0
        %3812 = vmatprep.subr.mxu0 0.0
        %3813 = vmatpush1.msra.mxu0 0.0
        %3814 = vmatprep.subr.mxu0 0.0
        %3815 = vmatpush1.msra.mxu0 0.0
        %3816 = vmatprep.subr.mxu0 0.0
        %3817 = vmatpush1.msra.mxu0 0.0
        %3818 = vmatprep.subr.mxu0 0.0
        %3819 = vmatpush1.msra.mxu0 0.0
        %3820 = vmatprep.subr.mxu0 0.0
        %3821 = vmatpush1.msra.mxu0 0.0
        %3822 = vmatprep.subr.mxu0 0.0
        %3823 = vmatpush1.msra.mxu0 0.0
        %3824 = vmatprep.subr.mxu0 0.0
        %3825 = vmatpush1.msra.mxu0 0.0
        %3826 = vmatprep.subr.mxu0 0.0
        %3827 = vmatpush1.msra.mxu0 0.0
        %3828 = vmatprep.subr.mxu0 0.0
        %3829 = vmatpush1.msra.mxu0 0.0
        %3830 = vmatprep.mubr.f32.mxu0 0.0
        %3831 = vmatmul.mubr.f32.gmra.mrb[0].mxu0 %v1707
        %v3832 = vpop.f32.mrb[0].mxu0
        %v3833 = vadd.f32 %v3764, %v3832
        %v3834 = vpop.f32.mrb[0].mxu0
        %3835 = vdwg.mxu0
        %v3837 = vsel %vm808, %v3744, 0
        %v3840 = vsel %vm808, %v3833, 0
        %3842 = vmatprep.subr.mxu0 0.0
        %3843 = vmatpush1.xpose.msra.mxu0 %v3840
        %3844 = vmatprep.subr.mxu0 0.0
        %3845 = vmatpush1.xpose.msra.mxu0 0.0
        %3846 = vmatprep.subr.mxu0 0.0
        %3847 = vmatpush1.xpose.msra.mxu0 0.0
        %3848 = vmatprep.subr.mxu0 0.0
        %3849 = vmatpush1.xpose.msra.mxu0 0.0
        %3850 = vmatprep.subr.mxu0 0.0
        %3851 = vmatpush1.xpose.msra.mxu0 0.0
        %3852 = vmatprep.subr.mxu0 0.0
        %3853 = vmatpush1.xpose.msra.mxu0 0.0
        %3854 = vmatprep.subr.mxu0 0.0
        %3855 = vmatpush1.xpose.msra.mxu0 0.0
        %3856 = vmatprep.subr.mxu0 0.0
        %3857 = vmatpush1.xpose.msra.mxu0 0.0
        %3858 = vmatprep.subr.mxu0 0.0
        %3859 = vmatpush1.xpose.msra.mxu0 0.0
        %3860 = vmatprep.subr.mxu0 0.0
        %3861 = vmatpush1.xpose.msra.mxu0 0.0
        %3862 = vmatprep.subr.mxu0 0.0
        %3863 = vmatpush1.xpose.msra.mxu0 0.0
        %3864 = vmatprep.subr.mxu0 0.0
        %3865 = vmatpush1.xpose.msra.mxu0 0.0
        %3866 = vmatprep.subr.mxu0 0.0
        %3867 = vmatpush1.xpose.msra.mxu0 0.0
        %3868 = vmatprep.subr.mxu0 0.0
        %3869 = vmatpush1.xpose.msra.mxu0 0.0
        %3870 = vmatprep.subr.mxu0 0.0
        %3871 = vmatpush1.xpose.msra.mxu0 0.0
        %3872 = vmatprep.subr.mxu0 0.0
        %3873 = vmatpush1.xpose.msra.mxu0 0.0
        %3874 = vmatprep.subr.mxu0 0.0
        %3875 = vmatpush1.xpose.msra.mxu0 0.0
        %3876 = vmatprep.subr.mxu0 0.0
        %3877 = vmatpush1.xpose.msra.mxu0 0.0
        %3878 = vmatprep.subr.mxu0 0.0
        %3879 = vmatpush1.xpose.msra.mxu0 0.0
        %3880 = vmatprep.subr.mxu0 0.0
        %3881 = vmatpush1.xpose.msra.mxu0 0.0
        %3882 = vmatprep.subr.mxu0 0.0
        %3883 = vmatpush1.xpose.msra.mxu0 0.0
        %3884 = vmatprep.subr.mxu0 0.0
        %3885 = vmatpush1.xpose.msra.mxu0 0.0
        %3886 = vmatprep.subr.mxu0 0.0
        %3887 = vmatpush1.xpose.msra.mxu0 0.0
        %3888 = vmatprep.subr.mxu0 0.0
        %3889 = vmatpush1.xpose.msra.mxu0 0.0
        %3890 = vmatprep.subr.mxu0 0.0
        %3891 = vmatpush1.xpose.msra.mxu0 0.0
        %3892 = vmatprep.subr.mxu0 0.0
        %3893 = vmatpush1.xpose.msra.mxu0 0.0
        %3894 = vmatprep.subr.mxu0 0.0
        %3895 = vmatpush1.xpose.msra.mxu0 0.0
        %3896 = vmatprep.subr.mxu0 0.0
        %3897 = vmatpush1.xpose.msra.mxu0 0.0
        %3898 = vmatprep.subr.mxu0 0.0
        %3899 = vmatpush1.xpose.msra.mxu0 0.0
        %3900 = vmatprep.subr.mxu0 0.0
        %3901 = vmatpush1.xpose.msra.mxu0 0.0
        %3902 = vmatprep.subr.mxu0 0.0
        %3903 = vmatpush1.xpose.msra.mxu0 0.0
        %3904 = vmatprep.subr.mxu0 0.0
        %3905 = vmatpush1.xpose.msra.mxu0 0.0
        %3906 = vmatprep.mubr.f32.mxu0 0.0
        %3907 = vmatmul.mubr.f32.gmra.mrb[0].mxu0 %v3837
        %v3908 = vpop.f32.mrb[0].mxu0
        %v3909 = vadd.f32 0.0, %v3908
        %v3910 = vpop.f32.mrb[0].mxu0
        %3911 = vdwg.mxu0
        %v3912 = vmul.f32 %v3909, 0.35355338
        %v3913 = vsel %vm808, %v3912, -inf
        %3914 = vmax.xlane.f32.xlu0 %v3913
        %v3915 = vpop.xlane.xlu0 %3914
        %v3916 = vsub.f32 %v3912, %v3915
        %v3917 = vmul.f32 %v3916, 1.442695
        %v3918 = vpow.pop %v3917
        %v3919 = vsel %vm808, %v3918, 0.0
        %3920 = vadd.xlane.f32.xlu0 %v3919
        %v3921 = vpop.xlane.xlu0 %3920
        %v3922 = vrcp.pop %v3921
        %v3923 = vmul.f32 %v3918, %v3922
        %3924 = vrot.lane.b32.xlu0 %v3833, 96
        %v3925 = vpop.permute.xlu0 %3924
        %v3928 = vsel %vm808, %v3923, 0
        %3930 = vmatprep.subr.mxu0 0.0
        %3931 = vmatpush1.msra.mxu0 %v3925
        %3932 = vmatprep.subr.mxu0 0.0
        %3933 = vmatpush1.msra.mxu0 0.0
        %3934 = vmatprep.subr.mxu0 0.0
        %3935 = vmatpush1.msra.mxu0 0.0
        %3936 = vmatprep.subr.mxu0 0.0
        %3937 = vmatpush1.msra.mxu0 0.0
        %3938 = vmatprep.subr.mxu0 0.0
        %3939 = vmatpush1.msra.mxu0 0.0
        %3940 = vmatprep.subr.mxu0 0.0
        %3941 = vmatpush1.msra.mxu0 0.0
        %3942 = vmatprep.subr.mxu0 0.0
        %3943 = vmatpush1.msra.mxu0 0.0
        %3944 = vmatprep.subr.mxu0 0.0
        %3945 = vmatpush1.msra.mxu0 0.0
        %3946 = vmatprep.subr.mxu0 0.0
        %3947 = vmatpush1.msra.mxu0 0.0
        %3948 = vmatprep.subr.mxu0 0.0
        %3949 = vmatpush1.msra.mxu0 0.0
        %3950 = vmatprep.subr.mxu0 0.0
        %3951 = vmatpush1.msra.mxu0 0.0
        %3952 = vmatprep.subr.mxu0 0.0
        %3953 = vmatpush1.msra.mxu0 0.0
        %3954 = vmatprep.subr.mxu0 0.0
        %3955 = vmatpush1.msra.mxu0 0.0
        %3956 = vmatprep.subr.mxu0 0.0
        %3957 = vmatpush1.msra.mxu0 0.0
        %3958 = vmatprep.subr.mxu0 0.0
        %3959 = vmatpush1.msra.mxu0 0.0
        %3960 = vmatprep.subr.mxu0 0.0
        %3961 = vmatpush1.msra.mxu0 0.0
        %3962 = vmatprep.subr.mxu0 0.0
        %3963 = vmatpush1.msra.mxu0 0.0
        %3964 = vmatprep.subr.mxu0 0.0
        %3965 = vmatpush1.msra.mxu0 0.0
        %3966 = vmatprep.subr.mxu0 0.0
        %3967 = vmatpush1.msra.mxu0 0.0
        %3968 = vmatprep.subr.mxu0 0.0
        %3969 = vmatpush1.msra.mxu0 0.0
        %3970 = vmatprep.subr.mxu0 0.0
        %3971 = vmatpush1.msra.mxu0 0.0
        %3972 = vmatprep.subr.mxu0 0.0
        %3973 = vmatpush1.msra.mxu0 0.0
        %3974 = vmatprep.subr.mxu0 0.0
        %3975 = vmatpush1.msra.mxu0 0.0
        %3976 = vmatprep.subr.mxu0 0.0
        %3977 = vmatpush1.msra.mxu0 0.0
        %3978 = vmatprep.subr.mxu0 0.0
        %3979 = vmatpush1.msra.mxu0 0.0
        %3980 = vmatprep.subr.mxu0 0.0
        %3981 = vmatpush1.msra.mxu0 0.0
        %3982 = vmatprep.subr.mxu0 0.0
        %3983 = vmatpush1.msra.mxu0 0.0
        %3984 = vmatprep.subr.mxu0 0.0
        %3985 = vmatpush1.msra.mxu0 0.0
        %3986 = vmatprep.subr.mxu0 0.0
        %3987 = vmatpush1.msra.mxu0 0.0
        %3988 = vmatprep.subr.mxu0 0.0
        %3989 = vmatpush1.msra.mxu0 0.0
        %3990 = vmatprep.subr.mxu0 0.0
        %3991 = vmatpush1.msra.mxu0 0.0
        %3992 = vmatprep.subr.mxu0 0.0
        %3993 = vmatpush1.msra.mxu0 0.0
        %3994 = vmatprep.mubr.f32.mxu0 0.0
        %3995 = vmatmul.mubr.f32.gmra.mrb[0].mxu0 %v3928
        %v3996 = vpop.f32.mrb[0].mxu0
        %v3997 = vadd.f32 0.0, %v3996
        %v3998 = vpop.f32.mrb[0].mxu0
        %3999 = vdwg.mxu0
        %4000 = vrot.lane.b32.xlu0 %v3744, 120
        %v4001 = vpop.permute.xlu0 %4000
        %4002 = vrot.lane.b32.xlu0 %v3833, 120
        %v4003 = vpop.permute.xlu0 %4002
        %v4004 = vsel %vm808, %v4001, 0
        %v4006 = vsel %vm808, %v4003, 0
        %4008 = vmatprep.subr.mxu0 0.0
        %4009 = vmatpush1.xpose.msra.mxu0 %v4006
        %4010 = vmatprep.subr.mxu0 0.0
        %4011 = vmatpush1.xpose.msra.mxu0 0.0
        %4012 = vmatprep.subr.mxu0 0.0
        %4013 = vmatpush1.xpose.msra.mxu0 0.0
        %4014 = vmatprep.subr.mxu0 0.0
        %4015 = vmatpush1.xpose.msra.mxu0 0.0
        %4016 = vmatprep.subr.mxu0 0.0
        %4017 = vmatpush1.xpose.msra.mxu0 0.0
        %4018 = vmatprep.subr.mxu0 0.0
        %4019 = vmatpush1.xpose.msra.mxu0 0.0
        %4020 = vmatprep.subr.mxu0 0.0
        %4021 = vmatpush1.xpose.msra.mxu0 0.0
        %4022 = vmatprep.subr.mxu0 0.0
        %4023 = vmatpush1.xpose.msra.mxu0 0.0
        %4024 = vmatprep.subr.mxu0 0.0
        %4025 = vmatpush1.xpose.msra.mxu0 0.0
        %4026 = vmatprep.subr.mxu0 0.0
        %4027 = vmatpush1.xpose.msra.mxu0 0.0
        %4028 = vmatprep.subr.mxu0 0.0
        %4029 = vmatpush1.xpose.msra.mxu0 0.0
        %4030 = vmatprep.subr.mxu0 0.0
        %4031 = vmatpush1.xpose.msra.mxu0 0.0
        %4032 = vmatprep.subr.mxu0 0.0
        %4033 = vmatpush1.xpose.msra.mxu0 0.0
        %4034 = vmatprep.subr.mxu0 0.0
        %4035 = vmatpush1.xpose.msra.mxu0 0.0
        %4036 = vmatprep.subr.mxu0 0.0
        %4037 = vmatpush1.xpose.msra.mxu0 0.0
        %4038 = vmatprep.subr.mxu0 0.0
        %4039 = vmatpush1.xpose.msra.mxu0 0.0
        %4040 = vmatprep.subr.mxu0 0.0
        %4041 = vmatpush1.xpose.msra.mxu0 0.0
        %4042 = vmatprep.subr.mxu0 0.0
        %4043 = vmatpush1.xpose.msra.mxu0 0.0
        %4044 = vmatprep.subr.mxu0 0.0
        %4045 = vmatpush1.xpose.msra.mxu0 0.0
        %4046 = vmatprep.subr.mxu0 0.0
        %4047 = vmatpush1.xpose.msra.mxu0 0.0
        %4048 = vmatprep.subr.mxu0 0.0
        %4049 = vmatpush1.xpose.msra.mxu0 0.0
        %4050 = vmatprep.subr.mxu0 0.0
        %4051 = vmatpush1.xpose.msra.mxu0 0.0
        %4052 = vmatprep.subr.mxu0 0.0
        %4053 = vmatpush1.xpose.msra.mxu0 0.0
        %4054 = vmatprep.subr.mxu0 0.0
        %4055 = vmatpush1.xpose.msra.mxu0 0.0
        %4056 = vmatprep.subr.mxu0 0.0
        %4057 = vmatpush1.xpose.msra.mxu0 0.0
        %4058 = vmatprep.subr.mxu0 0.0
        %4059 = vmatpush1.xpose.msra.mxu0 0.0
        %4060 = vmatprep.subr.mxu0 0.0
        %4061 = vmatpush1.xpose.msra.mxu0 0.0
        %4062 = vmatprep.subr.mxu0 0.0
        %4063 = vmatpush1.xpose.msra.mxu0 0.0
        %4064 = vmatprep.subr.mxu0 0.0
        %4065 = vmatpush1.xpose.msra.mxu0 0.0
        %4066 = vmatprep.subr.mxu0 0.0
        %4067 = vmatpush1.xpose.msra.mxu0 0.0
        %4068 = vmatprep.subr.mxu0 0.0
        %4069 = vmatpush1.xpose.msra.mxu0 0.0
        %4070 = vmatprep.subr.mxu0 0.0
        %4071 = vmatpush1.xpose.msra.mxu0 0.0
        %4072 = vmatprep.mubr.f32.mxu0 0.0
        %4073 = vmatmul.mubr.f32.gmra.mrb[0].mxu0 %v4004
        %v4074 = vpop.f32.mrb[0].mxu0
        %v4075 = vadd.f32 0.0, %v4074
        %v4076 = vpop.f32.mrb[0].mxu0
        %4077 = vdwg.mxu0
        %v4078 = vmul.f32 %v4075, 0.35355338
        %v4079 = vsel %vm808, %v4078, -inf
        %4080 = vmax.xlane.f32.xlu0 %v4079
        %v4081 = vpop.xlane.xlu0 %4080
        %v4082 = vsub.f32 %v4078, %v4081
        %v4083 = vmul.f32 %v4082, 1.442695
        %v4084 = vpow.pop %v4083
        %v4085 = vsel %vm808, %v4084, 0.0
        %4086 = vadd.xlane.f32.xlu0 %v4085
        %v4087 = vpop.xlane.xlu0 %4086
        %v4088 = vrcp.pop %v4087
        %v4089 = vmul.f32 %v4084, %v4088
        %4090 = vrot.lane.b32.xlu0 %v3833, 88
        %v4091 = vpop.permute.xlu0 %4090
        %v4094 = vsel %vm808, %v4089, 0
        %4096 = vmatprep.subr.mxu0 0.0
        %4097 = vmatpush1.msra.mxu0 %v4091
        %4098 = vmatprep.subr.mxu0 0.0
        %4099 = vmatpush1.msra.mxu0 0.0
        %4100 = vmatprep.subr.mxu0 0.0
        %4101 = vmatpush1.msra.mxu0 0.0
        %4102 = vmatprep.subr.mxu0 0.0
        %4103 = vmatpush1.msra.mxu0 0.0
        %4104 = vmatprep.subr.mxu0 0.0
        %4105 = vmatpush1.msra.mxu0 0.0
        %4106 = vmatprep.subr.mxu0 0.0
        %4107 = vmatpush1.msra.mxu0 0.0
        %4108 = vmatprep.subr.mxu0 0.0
        %4109 = vmatpush1.msra.mxu0 0.0
        %4110 = vmatprep.subr.mxu0 0.0
        %4111 = vmatpush1.msra.mxu0 0.0
        %4112 = vmatprep.subr.mxu0 0.0
        %4113 = vmatpush1.msra.mxu0 0.0
        %4114 = vmatprep.subr.mxu0 0.0
        %4115 = vmatpush1.msra.mxu0 0.0
        %4116 = vmatprep.subr.mxu0 0.0
        %4117 = vmatpush1.msra.mxu0 0.0
        %4118 = vmatprep.subr.mxu0 0.0
        %4119 = vmatpush1.msra.mxu0 0.0
        %4120 = vmatprep.subr.mxu0 0.0
        %4121 = vmatpush1.msra.mxu0 0.0
        %4122 = vmatprep.subr.mxu0 0.0
        %4123 = vmatpush1.msra.mxu0 0.0
        %4124 = vmatprep.subr.mxu0 0.0
        %4125 = vmatpush1.msra.mxu0 0.0
        %4126 = vmatprep.subr.mxu0 0.0
        %4127 = vmatpush1.msra.mxu0 0.0
        %4128 = vmatprep.subr.mxu0 0.0
        %4129 = vmatpush1.msra.mxu0 0.0
        %4130 = vmatprep.subr.mxu0 0.0
        %4131 = vmatpush1.msra.mxu0 0.0
        %4132 = vmatprep.subr.mxu0 0.0
        %4133 = vmatpush1.msra.mxu0 0.0
        %4134 = vmatprep.subr.mxu0 0.0
        %4135 = vmatpush1.msra.mxu0 0.0
        %4136 = vmatprep.subr.mxu0 0.0
        %4137 = vmatpush1.msra.mxu0 0.0
        %4138 = vmatprep.subr.mxu0 0.0
        %4139 = vmatpush1.msra.mxu0 0.0
        %4140 = vmatprep.subr.mxu0 0.0
        %4141 = vmatpush1.msra.mxu0 0.0
        %4142 = vmatprep.subr.mxu0 0.0
        %4143 = vmatpush1.msra.mxu0 0.0
        %4144 = vmatprep.subr.mxu0 0.0
        %4145 = vmatpush1.msra.mxu0 0.0
        %4146 = vmatprep.subr.mxu0 0.0
        %4147 = vmatpush1.msra.mxu0 0.0
        %4148 = vmatprep.subr.mxu0 0.0
        %4149 = vmatpush1.msra.mxu0 0.0
        %4150 = vmatprep.subr.mxu0 0.0
        %4151 = vmatpush1.msra.mxu0 0.0
        %4152 = vmatprep.subr.mxu0 0.0
        %4153 = vmatpush1.msra.mxu0 0.0
        %4154 = vmatprep.subr.mxu0 0.0
        %4155 = vmatpush1.msra.mxu0 0.0
        %4156 = vmatprep.subr.mxu0 0.0
        %4157 = vmatpush1.msra.mxu0 0.0
        %4158 = vmatprep.subr.mxu0 0.0
        %4159 = vmatpush1.msra.mxu0 0.0
        %4160 = vmatprep.mubr.f32.mxu0 0.0
        %4161 = vmatmul.mubr.f32.gmra.mrb[0].mxu0 %v4094
        %v4162 = vpop.f32.mrb[0].mxu0
        %v4163 = vadd.f32 0.0, %v4162
        %v4164 = vpop.f32.mrb[0].mxu0
        %4165 = vdwg.mxu0
        %4166 = vrot.lane.b32.xlu0 %v3744, 112
        %v4167 = vpop.permute.xlu0 %4166
        %4168 = vrot.lane.b32.xlu0 %v3833, 112
        %v4169 = vpop.permute.xlu0 %4168
        %v4170 = vsel %vm808, %v4167, 0
        %v4172 = vsel %vm808, %v4169, 0
        %4174 = vmatprep.subr.mxu0 0.0
        %4175 = vmatpush1.xpose.msra.mxu0 %v4172
        %4176 = vmatprep.subr.mxu0 0.0
        %4177 = vmatpush1.xpose.msra.mxu0 0.0
        %4178 = vmatprep.subr.mxu0 0.0
        %4179 = vmatpush1.xpose.msra.mxu0 0.0
        %4180 = vmatprep.subr.mxu0 0.0
        %4181 = vmatpush1.xpose.msra.mxu0 0.0
        %4182 = vmatprep.subr.mxu0 0.0
        %4183 = vmatpush1.xpose.msra.mxu0 0.0
        %4184 = vmatprep.subr.mxu0 0.0
        %4185 = vmatpush1.xpose.msra.mxu0 0.0
        %4186 = vmatprep.subr.mxu0 0.0
        %4187 = vmatpush1.xpose.msra.mxu0 0.0
        %4188 = vmatprep.subr.mxu0 0.0
        %4189 = vmatpush1.xpose.msra.mxu0 0.0
        %4190 = vmatprep.subr.mxu0 0.0
        %4191 = vmatpush1.xpose.msra.mxu0 0.0
        %4192 = vmatprep.subr.mxu0 0.0
        %4193 = vmatpush1.xpose.msra.mxu0 0.0
        %4194 = vmatprep.subr.mxu0 0.0
        %4195 = vmatpush1.xpose.msra.mxu0 0.0
        %4196 = vmatprep.subr.mxu0 0.0
        %4197 = vmatpush1.xpose.msra.mxu0 0.0
        %4198 = vmatprep.subr.mxu0 0.0
        %4199 = vmatpush1.xpose.msra.mxu0 0.0
        %4200 = vmatprep.subr.mxu0 0.0
        %4201 = vmatpush1.xpose.msra.mxu0 0.0
        %4202 = vmatprep.subr.mxu0 0.0
        %4203 = vmatpush1.xpose.msra.mxu0 0.0
        %4204 = vmatprep.subr.mxu0 0.0
        %4205 = vmatpush1.xpose.msra.mxu0 0.0
        %4206 = vmatprep.subr.mxu0 0.0
        %4207 = vmatpush1.xpose.msra.mxu0 0.0
        %4208 = vmatprep.subr.mxu0 0.0
        %4209 = vmatpush1.xpose.msra.mxu0 0.0
        %4210 = vmatprep.subr.mxu0 0.0
        %4211 = vmatpush1.xpose.msra.mxu0 0.0
        %4212 = vmatprep.subr.mxu0 0.0
        %4213 = vmatpush1.xpose.msra.mxu0 0.0
        %4214 = vmatprep.subr.mxu0 0.0
        %4215 = vmatpush1.xpose.msra.mxu0 0.0
        %4216 = vmatprep.subr.mxu0 0.0
        %4217 = vmatpush1.xpose.msra.mxu0 0.0
        %4218 = vmatprep.subr.mxu0 0.0
        %4219 = vmatpush1.xpose.msra.mxu0 0.0
        %4220 = vmatprep.subr.mxu0 0.0
        %4221 = vmatpush1.xpose.msra.mxu0 0.0
        %4222 = vmatprep.subr.mxu0 0.0
        %4223 = vmatpush1.xpose.msra.mxu0 0.0
        %4224 = vmatprep.subr.mxu0 0.0
        %4225 = vmatpush1.xpose.msra.mxu0 0.0
        %4226 = vmatprep.subr.mxu0 0.0
        %4227 = vmatpush1.xpose.msra.mxu0 0.0
        %4228 = vmatprep.subr.mxu0 0.0
        %4229 = vmatpush1.xpose.msra.mxu0 0.0
        %4230 = vmatprep.subr.mxu0 0.0
        %4231 = vmatpush1.xpose.msra.mxu0 0.0
        %4232 = vmatprep.subr.mxu0 0.0
        %4233 = vmatpush1.xpose.msra.mxu0 0.0
        %4234 = vmatprep.subr.mxu0 0.0
        %4235 = vmatpush1.xpose.msra.mxu0 0.0
        %4236 = vmatprep.subr.mxu0 0.0
        %4237 = vmatpush1.xpose.msra.mxu0 0.0
        %4238 = vmatprep.mubr.f32.mxu0 0.0
        %4239 = vmatmul.mubr.f32.gmra.mrb[0].mxu0 %v4170
        %v4240 = vpop.f32.mrb[0].mxu0
        %v4241 = vadd.f32 0.0, %v4240
        %v4242 = vpop.f32.mrb[0].mxu0
        %4243 = vdwg.mxu0
        %v4244 = vmul.f32 %v4241, 0.35355338
        %v4245 = vsel %vm808, %v4244, -inf
        %4246 = vmax.xlane.f32.xlu0 %v4245
        %v4247 = vpop.xlane.xlu0 %4246
        %v4248 = vsub.f32 %v4244, %v4247
        %v4249 = vmul.f32 %v4248, 1.442695
        %v4250 = vpow.pop %v4249
        %v4251 = vsel %vm808, %v4250, 0.0
        %4252 = vadd.xlane.f32.xlu0 %v4251
        %v4253 = vpop.xlane.xlu0 %4252
        %v4254 = vrcp.pop %v4253
        %v4255 = vmul.f32 %v4250, %v4254
        %4256 = vrot.lane.b32.xlu0 %v3833, 80
        %v4257 = vpop.permute.xlu0 %4256
        %v4260 = vsel %vm808, %v4255, 0
        %4262 = vmatprep.subr.mxu0 0.0
        %4263 = vmatpush1.msra.mxu0 %v4257
        %4264 = vmatprep.subr.mxu0 0.0
        %4265 = vmatpush1.msra.mxu0 0.0
        %4266 = vmatprep.subr.mxu0 0.0
        %4267 = vmatpush1.msra.mxu0 0.0
        %4268 = vmatprep.subr.mxu0 0.0
        %4269 = vmatpush1.msra.mxu0 0.0
        %4270 = vmatprep.subr.mxu0 0.0
        %4271 = vmatpush1.msra.mxu0 0.0
        %4272 = vmatprep.subr.mxu0 0.0
        %4273 = vmatpush1.msra.mxu0 0.0
        %4274 = vmatprep.subr.mxu0 0.0
        %4275 = vmatpush1.msra.mxu0 0.0
        %4276 = vmatprep.subr.mxu0 0.0
        %4277 = vmatpush1.msra.mxu0 0.0
        %4278 = vmatprep.subr.mxu0 0.0
        %4279 = vmatpush1.msra.mxu0 0.0
        %4280 = vmatprep.subr.mxu0 0.0
        %4281 = vmatpush1.msra.mxu0 0.0
        %4282 = vmatprep.subr.mxu0 0.0
        %4283 = vmatpush1.msra.mxu0 0.0
        %4284 = vmatprep.subr.mxu0 0.0
        %4285 = vmatpush1.msra.mxu0 0.0
        %4286 = vmatprep.subr.mxu0 0.0
        %4287 = vmatpush1.msra.mxu0 0.0
        %4288 = vmatprep.subr.mxu0 0.0
        %4289 = vmatpush1.msra.mxu0 0.0
        %4290 = vmatprep.subr.mxu0 0.0
        %4291 = vmatpush1.msra.mxu0 0.0
        %4292 = vmatprep.subr.mxu0 0.0
        %4293 = vmatpush1.msra.mxu0 0.0
        %4294 = vmatprep.subr.mxu0 0.0
        %4295 = vmatpush1.msra.mxu0 0.0
        %4296 = vmatprep.subr.mxu0 0.0
        %4297 = vmatpush1.msra.mxu0 0.0
        %4298 = vmatprep.subr.mxu0 0.0
        %4299 = vmatpush1.msra.mxu0 0.0
        %4300 = vmatprep.subr.mxu0 0.0
        %4301 = vmatpush1.msra.mxu0 0.0
        %4302 = vmatprep.subr.mxu0 0.0
        %4303 = vmatpush1.msra.mxu0 0.0
        %4304 = vmatprep.subr.mxu0 0.0
        %4305 = vmatpush1.msra.mxu0 0.0
        %4306 = vmatprep.subr.mxu0 0.0
        %4307 = vmatpush1.msra.mxu0 0.0
        %4308 = vmatprep.subr.mxu0 0.0
        %4309 = vmatpush1.msra.mxu0 0.0
        %4310 = vmatprep.subr.mxu0 0.0
        %4311 = vmatpush1.msra.mxu0 0.0
        %4312 = vmatprep.subr.mxu0 0.0
        %4313 = vmatpush1.msra.mxu0 0.0
        %4314 = vmatprep.subr.mxu0 0.0
        %4315 = vmatpush1.msra.mxu0 0.0
        %4316 = vmatprep.subr.mxu0 0.0
        %4317 = vmatpush1.msra.mxu0 0.0
        %4318 = vmatprep.subr.mxu0 0.0
        %4319 = vmatpush1.msra.mxu0 0.0
        %4320 = vmatprep.subr.mxu0 0.0
        %4321 = vmatpush1.msra.mxu0 0.0
        %4322 = vmatprep.subr.mxu0 0.0
        %4323 = vmatpush1.msra.mxu0 0.0
        %4324 = vmatprep.subr.mxu0 0.0
        %4325 = vmatpush1.msra.mxu0 0.0
        %4326 = vmatprep.mubr.f32.mxu0 0.0
        %4327 = vmatmul.mubr.f32.gmra.mrb[0].mxu0 %v4260
        %v4328 = vpop.f32.mrb[0].mxu0
        %v4329 = vadd.f32 0.0, %v4328
        %v4330 = vpop.f32.mrb[0].mxu0
        %4331 = vdwg.mxu0
        %4332 = vrot.lane.b32.xlu0 %v3744, 104
        %v4333 = vpop.permute.xlu0 %4332
        %4334 = vrot.lane.b32.xlu0 %v3833, 104
        %v4335 = vpop.permute.xlu0 %4334
        %v4336 = vsel %vm808, %v4333, 0
        %v4338 = vsel %vm808, %v4335, 0
        %4340 = vmatprep.subr.mxu0 0.0
        %4341 = vmatpush1.xpose.msra.mxu0 %v4338
        %4342 = vmatprep.subr.mxu0 0.0
        %4343 = vmatpush1.xpose.msra.mxu0 0.0
        %4344 = vmatprep.subr.mxu0 0.0
        %4345 = vmatpush1.xpose.msra.mxu0 0.0
        %4346 = vmatprep.subr.mxu0 0.0
        %4347 = vmatpush1.xpose.msra.mxu0 0.0
        %4348 = vmatprep.subr.mxu0 0.0
        %4349 = vmatpush1.xpose.msra.mxu0 0.0
        %4350 = vmatprep.subr.mxu0 0.0
        %4351 = vmatpush1.xpose.msra.mxu0 0.0
        %4352 = vmatprep.subr.mxu0 0.0
        %4353 = vmatpush1.xpose.msra.mxu0 0.0
        %4354 = vmatprep.subr.mxu0 0.0
        %4355 = vmatpush1.xpose.msra.mxu0 0.0
        %4356 = vmatprep.subr.mxu0 0.0
        %4357 = vmatpush1.xpose.msra.mxu0 0.0
        %4358 = vmatprep.subr.mxu0 0.0
        %4359 = vmatpush1.xpose.msra.mxu0 0.0
        %4360 = vmatprep.subr.mxu0 0.0
        %4361 = vmatpush1.xpose.msra.mxu0 0.0
        %4362 = vmatprep.subr.mxu0 0.0
        %4363 = vmatpush1.xpose.msra.mxu0 0.0
        %4364 = vmatprep.subr.mxu0 0.0
        %4365 = vmatpush1.xpose.msra.mxu0 0.0
        %4366 = vmatprep.subr.mxu0 0.0
        %4367 = vmatpush1.xpose.msra.mxu0 0.0
        %4368 = vmatprep.subr.mxu0 0.0
        %4369 = vmatpush1.xpose.msra.mxu0 0.0
        %4370 = vmatprep.subr.mxu0 0.0
        %4371 = vmatpush1.xpose.msra.mxu0 0.0
        %4372 = vmatprep.subr.mxu0 0.0
        %4373 = vmatpush1.xpose.msra.mxu0 0.0
        %4374 = vmatprep.subr.mxu0 0.0
        %4375 = vmatpush1.xpose.msra.mxu0 0.0
        %4376 = vmatprep.subr.mxu0 0.0
        %4377 = vmatpush1.xpose.msra.mxu0 0.0
        %4378 = vmatprep.subr.mxu0 0.0
        %4379 = vmatpush1.xpose.msra.mxu0 0.0
        %4380 = vmatprep.subr.mxu0 0.0
        %4381 = vmatpush1.xpose.msra.mxu0 0.0
        %4382 = vmatprep.subr.mxu0 0.0
        %4383 = vmatpush1.xpose.msra.mxu0 0.0
        %4384 = vmatprep.subr.mxu0 0.0
        %4385 = vmatpush1.xpose.msra.mxu0 0.0
        %4386 = vmatprep.subr.mxu0 0.0
        %4387 = vmatpush1.xpose.msra.mxu0 0.0
        %4388 = vmatprep.subr.mxu0 0.0
        %4389 = vmatpush1.xpose.msra.mxu0 0.0
        %4390 = vmatprep.subr.mxu0 0.0
        %4391 = vmatpush1.xpose.msra.mxu0 0.0
        %4392 = vmatprep.subr.mxu0 0.0
        %4393 = vmatpush1.xpose.msra.mxu0 0.0
        %4394 = vmatprep.subr.mxu0 0.0
        %4395 = vmatpush1.xpose.msra.mxu0 0.0
        %4396 = vmatprep.subr.mxu0 0.0
        %4397 = vmatpush1.xpose.msra.mxu0 0.0
        %4398 = vmatprep.subr.mxu0 0.0
        %4399 = vmatpush1.xpose.msra.mxu0 0.0
        %4400 = vmatprep.subr.mxu0 0.0
        %4401 = vmatpush1.xpose.msra.mxu0 0.0
        %4402 = vmatprep.subr.mxu0 0.0
        %4403 = vmatpush1.xpose.msra.mxu0 0.0
        %4404 = vmatprep.mubr.f32.mxu0 0.0
        %4405 = vmatmul.mubr.f32.gmra.mrb[0].mxu0 %v4336
        %v4406 = vpop.f32.mrb[0].mxu0
        %v4407 = vadd.f32 0.0, %v4406
        %v4408 = vpop.f32.mrb[0].mxu0
        %4409 = vdwg.mxu0
        %v4410 = vmul.f32 %v4407, 0.35355338
        %v4411 = vsel %vm808, %v4410, -inf
        %4412 = vmax.xlane.f32.xlu0 %v4411
        %v4413 = vpop.xlane.xlu0 %4412
        %v4414 = vsub.f32 %v4410, %v4413
        %v4415 = vmul.f32 %v4414, 1.442695
        %v4416 = vpow.pop %v4415
        %v4417 = vsel %vm808, %v4416, 0.0
        %4418 = vadd.xlane.f32.xlu0 %v4417
        %v4419 = vpop.xlane.xlu0 %4418
        %v4420 = vrcp.pop %v4419
        %v4421 = vmul.f32 %v4416, %v4420
        %4422 = vrot.lane.b32.xlu0 %v3833, 72
        %v4423 = vpop.permute.xlu0 %4422
        %v4426 = vsel %vm808, %v4421, 0
        %4428 = vmatprep.subr.mxu0 0.0
        %4429 = vmatpush1.msra.mxu0 %v4423
        %4430 = vmatprep.subr.mxu0 0.0
        %4431 = vmatpush1.msra.mxu0 0.0
        %4432 = vmatprep.subr.mxu0 0.0
        %4433 = vmatpush1.msra.mxu0 0.0
        %4434 = vmatprep.subr.mxu0 0.0
        %4435 = vmatpush1.msra.mxu0 0.0
        %4436 = vmatprep.subr.mxu0 0.0
        %4437 = vmatpush1.msra.mxu0 0.0
        %4438 = vmatprep.subr.mxu0 0.0
        %4439 = vmatpush1.msra.mxu0 0.0
        %4440 = vmatprep.subr.mxu0 0.0
        %4441 = vmatpush1.msra.mxu0 0.0
        %4442 = vmatprep.subr.mxu0 0.0
        %4443 = vmatpush1.msra.mxu0 0.0
        %4444 = vmatprep.subr.mxu0 0.0
        %4445 = vmatpush1.msra.mxu0 0.0
        %4446 = vmatprep.subr.mxu0 0.0
        %4447 = vmatpush1.msra.mxu0 0.0
        %4448 = vmatprep.subr.mxu0 0.0
        %4449 = vmatpush1.msra.mxu0 0.0
        %4450 = vmatprep.subr.mxu0 0.0
        %4451 = vmatpush1.msra.mxu0 0.0
        %4452 = vmatprep.subr.mxu0 0.0
        %4453 = vmatpush1.msra.mxu0 0.0
        %4454 = vmatprep.subr.mxu0 0.0
        %4455 = vmatpush1.msra.mxu0 0.0
        %4456 = vmatprep.subr.mxu0 0.0
        %4457 = vmatpush1.msra.mxu0 0.0
        %4458 = vmatprep.subr.mxu0 0.0
        %4459 = vmatpush1.msra.mxu0 0.0
        %4460 = vmatprep.subr.mxu0 0.0
        %4461 = vmatpush1.msra.mxu0 0.0
        %4462 = vmatprep.subr.mxu0 0.0
        %4463 = vmatpush1.msra.mxu0 0.0
        %4464 = vmatprep.subr.mxu0 0.0
        %4465 = vmatpush1.msra.mxu0 0.0
        %4466 = vmatprep.subr.mxu0 0.0
        %4467 = vmatpush1.msra.mxu0 0.0
        %4468 = vmatprep.subr.mxu0 0.0
        %4469 = vmatpush1.msra.mxu0 0.0
        %4470 = vmatprep.subr.mxu0 0.0
        %4471 = vmatpush1.msra.mxu0 0.0
        %4472 = vmatprep.subr.mxu0 0.0
        %4473 = vmatpush1.msra.mxu0 0.0
        %4474 = vmatprep.subr.mxu0 0.0
        %4475 = vmatpush1.msra.mxu0 0.0
        %4476 = vmatprep.subr.mxu0 0.0
        %4477 = vmatpush1.msra.mxu0 0.0
        %4478 = vmatprep.subr.mxu0 0.0
        %4479 = vmatpush1.msra.mxu0 0.0
        %4480 = vmatprep.subr.mxu0 0.0
        %4481 = vmatpush1.msra.mxu0 0.0
        %4482 = vmatprep.subr.mxu0 0.0
        %4483 = vmatpush1.msra.mxu0 0.0
        %4484 = vmatprep.subr.mxu0 0.0
        %4485 = vmatpush1.msra.mxu0 0.0
        %4486 = vmatprep.subr.mxu0 0.0
        %4487 = vmatpush1.msra.mxu0 0.0
        %4488 = vmatprep.subr.mxu0 0.0
        %4489 = vmatpush1.msra.mxu0 0.0
        %4490 = vmatprep.subr.mxu0 0.0
        %4491 = vmatpush1.msra.mxu0 0.0
        %4492 = vmatprep.mubr.f32.mxu0 0.0
        %4493 = vmatmul.mubr.f32.gmra.mrb[0].mxu0 %v4426
        %v4494 = vpop.f32.mrb[0].mxu0
        %v4495 = vadd.f32 0.0, %v4494
        %v4496 = vpop.f32.mrb[0].mxu0
        %4497 = vdwg.mxu0
        %4499 = vrot.lane.b32.xlu0 %v4163, 8
        %v4500 = vpop.permute.xlu0 %4499
        %4503 = vrot.lane.b32.xlu0 %v4329, 16
        %v4504 = vpop.permute.xlu0 %4503
        %4507 = vrot.lane.b32.xlu0 %v4495, 24
        %v4508 = vpop.permute.xlu0 %4507
        %v4510 = vsel %vm808, %v3997, %v4500
        %v4511 = vsel %vm1482, %v4510, %v4504
        %v4512 = vsel %vm1484, %v4511, %v4508
        %s4513 = scalar_lea.vmem %s6, 96
        %v4514 = vld [vmem:[%s4513] sm:$0xff]
        %v4515 = vld [vmem:[%s4513 + $0x8] sm:$0xff]
        %v4516 = vld [vmem:[%s4513 + $0x10] sm:$0xff]
        %v4517 = vld [vmem:[%s4513 + $0x18] sm:$0xff]
        %s4518 = scalar_lea.vmem [#allocation7], 3
        %v4519 = vld [vmem:[%s4518] sm:$0x1]
        %v4521 = vlaneseq
        %v4522 = vshrl.u32 %v4521, 7
        %v4523 = vsub.s32 0, %v4522
        %v4524 = vrot.slane %v4519, %v4523
        %v4527 = vsel %vm731, %v4512, 0
        %4529 = vmatprep.subr.mxu0 0.0
        %4530 = vmatpush1.msra.mxu0 %v4514
        %4531 = vmatprep.subr.mxu0 0.0
        %4532 = vmatpush1.msra.mxu0 %v4515
        %4533 = vmatprep.subr.mxu0 0.0
        %4534 = vmatpush1.msra.mxu0 %v4516
        %4535 = vmatprep.subr.mxu0 0.0
        %4536 = vmatpush1.msra.mxu0 %v4517
        %4537 = vmatprep.subr.mxu0 0.0
        %4538 = vmatpush1.msra.mxu0 0.0
        %4539 = vmatprep.subr.mxu0 0.0
        %4540 = vmatpush1.msra.mxu0 0.0
        %4541 = vmatprep.subr.mxu0 0.0
        %4542 = vmatpush1.msra.mxu0 0.0
        %4543 = vmatprep.subr.mxu0 0.0
        %4544 = vmatpush1.msra.mxu0 0.0
        %4545 = vmatprep.subr.mxu0 0.0
        %4546 = vmatpush1.msra.mxu0 0.0
        %4547 = vmatprep.subr.mxu0 0.0
        %4548 = vmatpush1.msra.mxu0 0.0
        %4549 = vmatprep.subr.mxu0 0.0
        %4550 = vmatpush1.msra.mxu0 0.0
        %4551 = vmatprep.subr.mxu0 0.0
        %4552 = vmatpush1.msra.mxu0 0.0
        %4553 = vmatprep.subr.mxu0 0.0
        %4554 = vmatpush1.msra.mxu0 0.0
        %4555 = vmatprep.subr.mxu0 0.0
        %4556 = vmatpush1.msra.mxu0 0.0
        %4557 = vmatprep.subr.mxu0 0.0
        %4558 = vmatpush1.msra.mxu0 0.0
        %4559 = vmatprep.subr.mxu0 0.0
        %4560 = vmatpush1.msra.mxu0 0.0
        %4561 = vmatprep.subr.mxu0 0.0
        %4562 = vmatpush1.msra.mxu0 0.0
        %4563 = vmatprep.subr.mxu0 0.0
        %4564 = vmatpush1.msra.mxu0 0.0
        %4565 = vmatprep.subr.mxu0 0.0
        %4566 = vmatpush1.msra.mxu0 0.0
        %4567 = vmatprep.subr.mxu0 0.0
        %4568 = vmatpush1.msra.mxu0 0.0
        %4569 = vmatprep.subr.mxu0 0.0
        %4570 = vmatpush1.msra.mxu0 0.0
        %4571 = vmatprep.subr.mxu0 0.0
        %4572 = vmatpush1.msra.mxu0 0.0
        %4573 = vmatprep.subr.mxu0 0.0
        %4574 = vmatpush1.msra.mxu0 0.0
        %4575 = vmatprep.subr.mxu0 0.0
        %4576 = vmatpush1.msra.mxu0 0.0
        %4577 = vmatprep.subr.mxu0 0.0
        %4578 = vmatpush1.msra.mxu0 0.0
        %4579 = vmatprep.subr.mxu0 0.0
        %4580 = vmatpush1.msra.mxu0 0.0
        %4581 = vmatprep.subr.mxu0 0.0
        %4582 = vmatpush1.msra.mxu0 0.0
        %4583 = vmatprep.subr.mxu0 0.0
        %4584 = vmatpush1.msra.mxu0 0.0
        %4585 = vmatprep.subr.mxu0 0.0
        %4586 = vmatpush1.msra.mxu0 0.0
        %4587 = vmatprep.subr.mxu0 0.0
        %4588 = vmatpush1.msra.mxu0 0.0
        %4589 = vmatprep.subr.mxu0 0.0
        %4590 = vmatpush1.msra.mxu0 0.0
        %4591 = vmatprep.subr.mxu0 0.0
        %4592 = vmatpush1.msra.mxu0 0.0
        %4593 = vmatprep.mubr.f32.mxu0 0.0
        %4594 = vmatmul.mubr.f32.gmra.mrb[0].mxu0 %v4527
        %v4595 = vpop.f32.mrb[0].mxu0
        %v4596 = vadd.f32 %v4524, %v4595
        %v4597 = vpop.f32.mrb[0].mxu0
        %4598 = vdwg.mxu0
        %v4599 = vadd.f32 %v3660, %v4596
        %s4600 = scalar_lea.vmem %s12, 4
        %v4601 = vld [vmem:[%s4600] sm:$0x1]
        %s4602 = scalar_lea.vmem %s13, 4
        %v4603 = vld [vmem:[%s4602] sm:$0x1]
        %v4604 = vsel %vm731, %v4599, 0.0
        %4605 = vadd.xlane.f32.xlu0 %v4604
        %v4606 = vpop.xlane.xlu0 %4605
        %v4607 = vmul.f32 %v4606, %v1576
        %v4608 = vsub.f32 %v4599, %v4607
        %v4609 = vmul.f32 %v4608, %v4608
        %v4610 = vsel %vm731, %v4609, 0.0
        %4611 = vadd.xlane.f32.xlu0 %v4610
        %v4612 = vpop.xlane.xlu0 %4611
        %v4613 = vmul.f32 %v4612, %v1576
        %v4614 = vadd.f32 %v4613, 1e-05
        %v4615 = vrsqrt.pop %v4614
        %v4616 = vmul.f32 %v4608, %v4615
        %v4618 = vlaneseq
        %v4619 = vshrl.u32 %v4618, 7
        %v4620 = vsub.s32 0, %v4619
        %v4621 = vrot.slane %v4601, %v4620
        %v4623 = vmul.f32 %v4616, %v4621
        %v4625 = vlaneseq
        %v4626 = vshrl.u32 %v4625, 7
        %v4627 = vsub.s32 0, %v4626
        %v4628 = vrot.slane %v4603, %v4627
        %v4630 = vadd.f32 %v4623, %v4628
        %s4631 = scalar_lea.vmem %s8, 32
        %v4632 = vld [vmem:[%s4631] sm:$0xff]
        %v4633 = vld [vmem:[%s4631 + $0x8] sm:$0xff]
        %v4634 = vld [vmem:[%s4631 + $0x10] sm:$0xff]
        %v4635 = vld [vmem:[%s4631 + $0x18] sm:$0xff]
        %s4636 = scalar_lea.vmem [#allocation8], 1
        %v4637 = vld [vmem:[%s4636] sm:$0x1]
        %v4639 = vlaneseq
        %v4640 = vshrl.u32 %v4639, 7
        %v4641 = vsub.s32 0, %v4640
        %v4642 = vrot.slane %v4637, %v4641
        %v4645 = vsel %vm731, %v4630, 0
        %4647 = vmatprep.subr.mxu0 0.0
        %4648 = vmatpush1.msra.mxu0 %v4632
        %4649 = vmatprep.subr.mxu0 0.0
        %4650 = vmatpush1.msra.mxu0 %v4633
        %4651 = vmatprep.subr.mxu0 0.0
        %4652 = vmatpush1.msra.mxu0 %v4634
        %4653 = vmatprep.subr.mxu0 0.0
        %4654 = vmatpush1.msra.mxu0 %v4635
        %4655 = vmatprep.subr.mxu0 0.0
        %4656 = vmatpush1.msra.mxu0 0.0
        %4657 = vmatprep.subr.mxu0 0.0
        %4658 = vmatpush1.msra.mxu0 0.0
        %4659 = vmatprep.subr.mxu0 0.0
        %4660 = vmatpush1.msra.mxu0 0.0
        %4661 = vmatprep.subr.mxu0 0.0
        %4662 = vmatpush1.msra.mxu0 0.0
        %4663 = vmatprep.subr.mxu0 0.0
        %4664 = vmatpush1.msra.mxu0 0.0
        %4665 = vmatprep.subr.mxu0 0.0
        %4666 = vmatpush1.msra.mxu0 0.0
        %4667 = vmatprep.subr.mxu0 0.0
        %4668 = vmatpush1.msra.mxu0 0.0
        %4669 = vmatprep.subr.mxu0 0.0
        %4670 = vmatpush1.msra.mxu0 0.0
        %4671 = vmatprep.subr.mxu0 0.0
        %4672 = vmatpush1.msra.mxu0 0.0
        %4673 = vmatprep.subr.mxu0 0.0
        %4674 = vmatpush1.msra.mxu0 0.0
        %4675 = vmatprep.subr.mxu0 0.0
        %4676 = vmatpush1.msra.mxu0 0.0
        %4677 = vmatprep.subr.mxu0 0.0
        %4678 = vmatpush1.msra.mxu0 0.0
        %4679 = vmatprep.subr.mxu0 0.0
        %4680 = vmatpush1.msra.mxu0 0.0
        %4681 = vmatprep.subr.mxu0 0.0
        %4682 = vmatpush1.msra.mxu0 0.0
        %4683 = vmatprep.subr.mxu0 0.0
        %4684 = vmatpush1.msra.mxu0 0.0
        %4685 = vmatprep.subr.mxu0 0.0
        %4686 = vmatpush1.msra.mxu0 0.0
        %4687 = vmatprep.subr.mxu0 0.0
        %4688 = vmatpush1.msra.mxu0 0.0
        %4689 = vmatprep.subr.mxu0 0.0
        %4690 = vmatpush1.msra.mxu0 0.0
        %4691 = vmatprep.subr.mxu0 0.0
        %4692 = vmatpush1.msra.mxu0 0.0
        %4693 = vmatprep.subr.mxu0 0.0
        %4694 = vmatpush1.msra.mxu0 0.0
        %4695 = vmatprep.subr.mxu0 0.0
        %4696 = vmatpush1.msra.mxu0 0.0
        %4697 = vmatprep.subr.mxu0 0.0
        %4698 = vmatpush1.msra.mxu0 0.0
        %4699 = vmatprep.subr.mxu0 0.0
        %4700 = vmatpush1.msra.mxu0 0.0
        %4701 = vmatprep.subr.mxu0 0.0
        %4702 = vmatpush1.msra.mxu0 0.0
        %4703 = vmatprep.subr.mxu0 0.0
        %4704 = vmatpush1.msra.mxu0 0.0
        %4705 = vmatprep.subr.mxu0 0.0
        %4706 = vmatpush1.msra.mxu0 0.0
        %4707 = vmatprep.subr.mxu0 0.0
        %4708 = vmatpush1.msra.mxu0 0.0
        %4709 = vmatprep.subr.mxu0 0.0
        %4710 = vmatpush1.msra.mxu0 0.0
        %4711 = vmatprep.mubr.f32.mxu0 0.0
        %4712 = vmatmul.mubr.f32.gmra.mrb[0].mxu0 %v4645
        %v4713 = vpop.f32.mrb[0].mxu0
        %v4714 = vadd.f32 %v4642, %v4713
        %v4715 = vpop.f32.mrb[0].mxu0
        %4716 = vdwg.mxu0
        %v4717 = vmax.f32 %v4714, 0.0
        %s4718 = scalar_lea.vmem %s10, 64
        %v4719 = vld [vmem:[%s4718] sm:$0xff]
        %v4720 = vld [vmem:[%s4718 + $0x8] sm:$0xff]
        %v4721 = vld [vmem:[%s4718 + $0x10] sm:$0xff]
        %v4722 = vld [vmem:[%s4718 + $0x18] sm:$0xff]
        %v4723 = vld [vmem:[%s4718 + $0x20] sm:$0xff]
        %v4724 = vld [vmem:[%s4718 + $0x28] sm:$0xff]
        %v4725 = vld [vmem:[%s4718 + $0x30] sm:$0xff]
        %v4726 = vld [vmem:[%s4718 + $0x38] sm:$0xff]
        %s4727 = scalar_lea.vmem [#allocation10], 1
        %v4728 = vld [vmem:[%s4727] sm:$0x1]
        %v4730 = vlaneseq
        %v4731 = vshrl.u32 %v4730, 7
        %v4732 = vsub.s32 0, %v4731
        %v4733 = vrot.slane %v4728, %v4732
        %v4736 = vsel %vm645, %v4717, 0
        %4738 = vmatprep.subr.mxu0 0.0
        %4739 = vmatpush1.msra.mxu0 %v4719
        %4740 = vmatprep.subr.mxu0 0.0
        %4741 = vmatpush1.msra.mxu0 %v4720
        %4742 = vmatprep.subr.mxu0 0.0
        %4743 = vmatpush1.msra.mxu0 %v4721
        %4744 = vmatprep.subr.mxu0 0.0
        %4745 = vmatpush1.msra.mxu0 %v4722
        %4746 = vmatprep.subr.mxu0 0.0
        %4747 = vmatpush1.msra.mxu0 %v4723
        %4748 = vmatprep.subr.mxu0 0.0
        %4749 = vmatpush1.msra.mxu0 %v4724
        %4750 = vmatprep.subr.mxu0 0.0
        %4751 = vmatpush1.msra.mxu0 %v4725
        %4752 = vmatprep.subr.mxu0 0.0
        %4753 = vmatpush1.msra.mxu0 %v4726
        %4754 = vmatprep.subr.mxu0 0.0
        %4755 = vmatpush1.msra.mxu0 0.0
        %4756 = vmatprep.subr.mxu0 0.0
        %4757 = vmatpush1.msra.mxu0 0.0
        %4758 = vmatprep.subr.mxu0 0.0
        %4759 = vmatpush1.msra.mxu0 0.0
        %4760 = vmatprep.subr.mxu0 0.0
        %4761 = vmatpush1.msra.mxu0 0.0
        %4762 = vmatprep.subr.mxu0 0.0
        %4763 = vmatpush1.msra.mxu0 0.0
        %4764 = vmatprep.subr.mxu0 0.0
        %4765 = vmatpush1.msra.mxu0 0.0
        %4766 = vmatprep.subr.mxu0 0.0
        %4767 = vmatpush1.msra.mxu0 0.0
        %4768 = vmatprep.subr.mxu0 0.0
        %4769 = vmatpush1.msra.mxu0 0.0
        %4770 = vmatprep.subr.mxu0 0.0
        %4771 = vmatpush1.msra.mxu0 0.0
        %4772 = vmatprep.subr.mxu0 0.0
        %4773 = vmatpush1.msra.mxu0 0.0
        %4774 = vmatprep.subr.mxu0 0.0
        %4775 = vmatpush1.msra.mxu0 0.0
        %4776 = vmatprep.subr.mxu0 0.0
        %4777 = vmatpush1.msra.mxu0 0.0
        %4778 = vmatprep.subr.mxu0 0.0
        %4779 = vmatpush1.msra.mxu0 0.0
        %4780 = vmatprep.subr.mxu0 0.0
        %4781 = vmatpush1.msra.mxu0 0.0
        %4782 = vmatprep.subr.mxu0 0.0
        %4783 = vmatpush1.msra.mxu0 0.0
        %4784 = vmatprep.subr.mxu0 0.0
        %4785 = vmatpush1.msra.mxu0 0.0
        %4786 = vmatprep.subr.mxu0 0.0
        %4787 = vmatpush1.msra.mxu0 0.0
        %4788 = vmatprep.subr.mxu0 0.0
        %4789 = vmatpush1.msra.mxu0 0.0
        %4790 = vmatprep.subr.mxu0 0.0
        %4791 = vmatpush1.msra.mxu0 0.0
        %4792 = vmatprep.subr.mxu0 0.0
        %4793 = vmatpush1.msra.mxu0 0.0
        %4794 = vmatprep.subr.mxu0 0.0
        %4795 = vmatpush1.msra.mxu0 0.0
        %4796 = vmatprep.subr.mxu0 0.0
        %4797 = vmatpush1.msra.mxu0 0.0
        %4798 = vmatprep.subr.mxu0 0.0
        %4799 = vmatpush1.msra.mxu0 0.0
        %4800 = vmatprep.subr.mxu0 0.0
        %4801 = vmatpush1.msra.mxu0 0.0
        %4802 = vmatprep.mubr.f32.mxu0 0.0
        %4803 = vmatmul.mubr.f32.gmra.mrb[0].mxu0 %v4736
        %v4804 = vpop.f32.mrb[0].mxu0
        %v4805 = vadd.f32 %v4733, %v4804
        %v4806 = vpop.f32.mrb[0].mxu0
        %4807 = vdwg.mxu0
        %v4808 = vadd.f32 %v4630, %v4805
        %s4809 = scalar_lea.vmem %s12, 5
        %v4810 = vld [vmem:[%s4809] sm:$0x1]
        %s4811 = scalar_lea.vmem %s13, 5
        %v4812 = vld [vmem:[%s4811] sm:$0x1]
        %v4813 = vsel %vm731, %v4808, 0.0
        %4814 = vadd.xlane.f32.xlu0 %v4813
        %v4815 = vpop.xlane.xlu0 %4814
        %v4816 = vmul.f32 %v4815, %v1576
        %v4817 = vsub.f32 %v4808, %v4816
        %v4818 = vmul.f32 %v4817, %v4817
        %v4819 = vsel %vm731, %v4818, 0.0
        %4820 = vadd.xlane.f32.xlu0 %v4819
        %v4821 = vpop.xlane.xlu0 %4820
        %v4822 = vmul.f32 %v4821, %v1576
        %v4823 = vadd.f32 %v4822, 1e-05
        %v4824 = vrsqrt.pop %v4823
        %v4825 = vmul.f32 %v4817, %v4824
        %v4827 = vlaneseq
        %v4828 = vshrl.u32 %v4827, 7
        %v4829 = vsub.s32 0, %v4828
        %v4830 = vrot.slane %v4810, %v4829
        %v4832 = vmul.f32 %v4825, %v4830
        %v4834 = vlaneseq
        %v4835 = vshrl.u32 %v4834, 7
        %v4836 = vsub.s32 0, %v4835
        %v4837 = vrot.slane %v4812, %v4836
        %v4839 = vadd.f32 %v4832, %v4837
        %v4840 = vld [vmem:[#allocation11] sm:$0xff]
        %v4841 = vld [vmem:[#allocation11 + $0x8] sm:$0xff]
        %v4842 = vld [vmem:[#allocation11 + $0x10] sm:$0xff]
        %v4843 = vld [vmem:[#allocation11 + $0x18] sm:$0xff]
        %v4844 = vld [vmem:[%s15] sm:$0x1]
        %v4846 = vlaneseq
        %v4847 = vshrl.u32 %v4846, 7
        %v4848 = vsub.s32 0, %v4847
        %v4849 = vrot.slane %v4844, %v4848
        %v4852 = vsel %vm731, %v4839, 0
        %4854 = vmatprep.subr.mxu0 0.0
        %4855 = vmatpush1.msra.mxu0 %v4840
        %4856 = vmatprep.subr.mxu0 0.0
        %4857 = vmatpush1.msra.mxu0 %v4841
        %4858 = vmatprep.subr.mxu0 0.0
        %4859 = vmatpush1.msra.mxu0 %v4842
        %4860 = vmatprep.subr.mxu0 0.0
        %4861 = vmatpush1.msra.mxu0 %v4843
        %4862 = vmatprep.subr.mxu0 0.0
        %4863 = vmatpush1.msra.mxu0 0.0
        %4864 = vmatprep.subr.mxu0 0.0
        %4865 = vmatpush1.msra.mxu0 0.0
        %4866 = vmatprep.subr.mxu0 0.0
        %4867 = vmatpush1.msra.mxu0 0.0
        %4868 = vmatprep.subr.mxu0 0.0
        %4869 = vmatpush1.msra.mxu0 0.0
        %4870 = vmatprep.subr.mxu0 0.0
        %4871 = vmatpush1.msra.mxu0 0.0
        %4872 = vmatprep.subr.mxu0 0.0
        %4873 = vmatpush1.msra.mxu0 0.0
        %4874 = vmatprep.subr.mxu0 0.0
        %4875 = vmatpush1.msra.mxu0 0.0
        %4876 = vmatprep.subr.mxu0 0.0
        %4877 = vmatpush1.msra.mxu0 0.0
        %4878 = vmatprep.subr.mxu0 0.0
        %4879 = vmatpush1.msra.mxu0 0.0
        %4880 = vmatprep.subr.mxu0 0.0
        %4881 = vmatpush1.msra.mxu0 0.0
        %4882 = vmatprep.subr.mxu0 0.0
        %4883 = vmatpush1.msra.mxu0 0.0
        %4884 = vmatprep.subr.mxu0 0.0
        %4885 = vmatpush1.msra.mxu0 0.0
        %4886 = vmatprep.subr.mxu0 0.0
        %4887 = vmatpush1.msra.mxu0 0.0
        %4888 = vmatprep.subr.mxu0 0.0
        %4889 = vmatpush1.msra.mxu0 0.0
        %4890 = vmatprep.subr.mxu0 0.0
        %4891 = vmatpush1.msra.mxu0 0.0
        %4892 = vmatprep.subr.mxu0 0.0
        %4893 = vmatpush1.msra.mxu0 0.0
        %4894 = vmatprep.subr.mxu0 0.0
        %4895 = vmatpush1.msra.mxu0 0.0
        %4896 = vmatprep.subr.mxu0 0.0
        %4897 = vmatpush1.msra.mxu0 0.0
        %4898 = vmatprep.subr.mxu0 0.0
        %4899 = vmatpush1.msra.mxu0 0.0
        %4900 = vmatprep.subr.mxu0 0.0
        %4901 = vmatpush1.msra.mxu0 0.0
        %4902 = vmatprep.subr.mxu0 0.0
        %4903 = vmatpush1.msra.mxu0 0.0
        %4904 = vmatprep.subr.mxu0 0.0
        %4905 = vmatpush1.msra.mxu0 0.0
        %4906 = vmatprep.subr.mxu0 0.0
        %4907 = vmatpush1.msra.mxu0 0.0
        %4908 = vmatprep.subr.mxu0 0.0
        %4909 = vmatpush1.msra.mxu0 0.0
        %4910 = vmatprep.subr.mxu0 0.0
        %4911 = vmatpush1.msra.mxu0 0.0
        %4912 = vmatprep.subr.mxu0 0.0
        %4913 = vmatpush1.msra.mxu0 0.0
        %4914 = vmatprep.subr.mxu0 0.0
        %4915 = vmatpush1.msra.mxu0 0.0
        %4916 = vmatprep.subr.mxu0 0.0
        %4917 = vmatpush1.msra.mxu0 0.0
        %4918 = vmatprep.mubr.f32.mxu0 0.0
        %4919 = vmatmul.mubr.f32.gmra.mrb[0].mxu0 %v4852
        %v4920 = vpop.f32.mrb[0].mxu0
        %v4921 = vadd.f32 %v4849, %v4920
        %v4922 = vpop.f32.mrb[0].mxu0
        %4923 = vdwg.mxu0
        %4924 = vst.msk [vmem:[%s622] sm:$0xff] %vm645, %v4921
        %s4925 = sand.u32 %s390, 1
        %s4926 = scalar_lea.sflag [#allocation4], %s4925
        %s4927 = sand.u32 %s390, 1
        %s4928 = smul.addr %s4927, 8
        %s4929 = scalar_lea.vmem [#allocation13], %s4928
        // Predicated region
        $region109: #{caption_decoder_forward.1} parent=83 // pred_check
          %p4930 = pneg %p400
        $region110: #{caption_decoder_forward.1} parent=83 // pred_check_branch
          %4932 = sbr.rel (%p4930) target = $region112
        $region111: #{caption_decoder_forward.1} parent=83 // pred_region
          %s4934 = ssub.s32 128, 128
          %4935 = vsyncadd %s4926, %s4934
          %s4936 = smul.addr %s36, 128
          %s4937 = scalar_lea.hbm %s16, %s4936
          %s4939 = sshll.u32 %s4929, 4
          %s4940 = int_to_ptr.vmem [resolvable:$true] %s4939
          %4942 = dma.vmem_to_hbm [thread:$0]  %s4940, 128, %s4937, %s4926
        $region112: #{caption_decoder_forward.1} parent=83 // pred_fallthru
          _
      $region84: #{caption_decoder_forward.1} parent=5 // pred_fallthru
        _
      %p4943 = scmp.le.s32.totalorder 2, %s31
      // Predicated region
      $region113: #{caption_decoder_forward.1} parent=5 // pred_check
        %p4944 = pneg %p4943
      $region114: #{caption_decoder_forward.1} parent=5 // pred_check_branch
        %4946 = sbr.rel (%p4944) target = $region116
      $region115: #{caption_decoder_forward.1} parent=5 // pred_region
        %s4947 = ssub.s32 %s31, 2
        // Predicated region
        $region117: #{caption_decoder_forward.1} parent=115 // pred_check
          %p4948 = pneg %p406
        $region118: #{caption_decoder_forward.1} parent=115 // pred_check_branch
          %4950 = sbr.rel (%p4948) target = $region120
        $region119: #{caption_decoder_forward.1} parent=115 // pred_region
          %s4951 = sand.u32 %s391, 1
          %s4952 = scalar_lea.sflag [#allocation4], %s4951
          %s4953 = sand.u32 %s391, 1
          %s4954 = smul.addr %s4953, 8
          %s4955 = scalar_lea.vmem [#allocation13], %s4954
          %4956 = dma.done %s4952, 128
        $region120: #{caption_decoder_forward.1} parent=115 // pred_fallthru
          _
      $region116: #{caption_decoder_forward.1} parent=5 // pred_fallthru
        _
    $region6: #{caption_decoder_forward.1} parent=1 // loop_footer
      %s35 = sadd.s32 1, %s31
    $region7: #{caption_decoder_forward.1} parent=1 // loop_footer_branch
      %30 = sbr.rel target = $region3
    $region8: #{caption_decoder_forward.1} parent=1 // loop_exit
      _
    %4957 = vsyncpa [#allocation3], 1
    %s4958 = scalar_lea.sflag [#allocation3], 1
    %4959 = vsyncpa %s4958, 1
    %4960 = vsyncpa [#allocation6], 1
    %4961 = vsyncpa [#allocation9], 1
    %4962 = vsyncpa [#allocation12], 1
    %4963 = vsyncpa [#allocation4], 1
    %s4964 = scalar_lea.sflag [#allocation4], 1
    %4965 = vsyncpa %s4964, 1

</llo_original>
